<compile_context>
chip_gen: v6e
topology: v6e:2x2x1
jax: 0.10.0
libtpu: 0.0.40
codegen_flags: <defaults>
</compile_context>

<pallas_src>
import jax
import jax.numpy as jnp
from jax.experimental import pallas as pl
from jax.experimental.pallas import tpu as pltpu

NEG_SLOPE = 0.01  # nn.LeakyReLU default
# PyTorch layer widths: 100 -> 512 -> 256 -> 128 -> 64 -> 32 -> 16 -> 10
DIMS = [100, 512, 256, 128, 64, 32, 16, 10]
LAYER_DIMS = list(zip(DIMS[:-1], DIMS[1:]))
N_LAYERS = len(LAYER_DIMS)


def _round_up(n, m):
    return ((n + m - 1) // m) * m


# Lane-padded widths: [128, 512, 256, 128, 128, 128, 128, 128]
PADDED_DIMS = [_round_up(d, 128) for d in DIMS]

MAX_TB = 1024    # batch-tile cap (sweepable); VMEM stays well under the scoped limit
MIN_STEPS = 2    # keep >= 2 grid steps so both v7x TensorCores are fed


def mlp_kernel(x_ref, *refs):
    """refs = (w0, b0, w1, b1, ..., w6, b6, out_ref). Weights bf16, biases f32."""
    w_refs = refs[0:2 * N_LAYERS:2]
    b_refs = refs[1:2 * N_LAYERS:2]
    out_ref = refs[2 * N_LAYERS]

    h = x_ref[...]                                   # (TB, 128) bf16
    y = None
    for w_ref, b_ref in zip(w_refs, b_refs):
        # bf16 x bf16 -> f32 accumulate on the MXU.
        y = jnp.dot(h, w_ref[...], preferred_element_type=jnp.float32)
        y = y + b_ref[...]                           # f32 bias, broadcasts rows
        y = jnp.maximum(y, NEG_SLOPE * y)            # LeakyReLU: 2 VALU ops
        h = y.astype(jnp.bfloat16)                   # bf16 feed for next matmul
    out_ref[...] = y                                 # f32 result of last layer


def prepare_params(params):
    """One-time prep: zero-pad every layer to lane-aligned shapes, cast W to bf16.

    Returns a flat tuple (w0, b0, ..., w6, b6) to be cached and reused so the
    per-call forward does no weight padding/casting work.
    """
    flat = []
    for li, (w, b) in enumerate(params):
        kin, kout = PADDED_DIMS[li], PADDED_DIMS[li + 1]
        w_p = jnp.zeros((kin, kout), jnp.float32)
        w_p = w_p.at[:w.shape[0], :w.shape[1]].set(w.astype(jnp.float32))
        b_p = jnp.zeros((1, kout), jnp.float32)
        b_p = b_p.at[:, :b.shape[-1]].set(b.reshape(1, -1).astype(jnp.float32))
        flat.append(w_p.astype(jnp.bfloat16))        # bf16 weights for the MXU
        flat.append(b_p)                             # f32 biases
    return tuple(jax.device_put(a) for a in flat)


def _choose_tiling(batch):
    """Pick (tb, n_steps, padded_batch): >=2 grid steps, tb <= MAX_TB, 8-row aligned."""
    bp8 = _round_up(max(batch, 8), 8)
    n_steps = max(MIN_STEPS, pl.cdiv(bp8, MAX_TB))
    tb = _round_up(pl.cdiv(bp8, n_steps), 8)
    return tb, n_steps, tb * n_steps


@jax.jit
def mlp_forward(x, flat_params):
    """x: (B, 100) f32.  flat_params: output of prepare_params()."""
    batch, in_features = x.shape
    assert in_features == DIMS[0]
    tb, n_steps, bp = _choose_tiling(batch)

    # Pad batch to tb * n_steps rows and features 100 -> 128 lanes (bf16 first,
    # so the pad moves half the bytes).
    x_p = jnp.pad(x.astype(jnp.bfloat16),
                  ((0, bp - batch), (0, PADDED_DIMS[0] - in_features)))

    in_specs = [pl.BlockSpec((tb, PADDED_DIMS[0]), lambda i: (i, 0))]
    flops = 0
    bytes_accessed = bp * PADDED_DIMS[0] * 2 + bp * PADDED_DIMS[-1] * 4
    for li in range(N_LAYERS):
        kin, kout = PADDED_DIMS[li], PADDED_DIMS[li + 1]
        # Constant index_map -> each weight/bias is fetched once and stays
        # VMEM-resident across all grid steps.
        in_specs.append(pl.BlockSpec((kin, kout), lambda i: (0, 0)))
        in_specs.append(pl.BlockSpec((1, kout), lambda i: (0, 0)))
        flops += 2 * bp * kin * kout
        bytes_accessed += kin * kout * 2 + kout * 4

    out = pl.pallas_call(
        mlp_kernel,
        out_shape=jax.ShapeDtypeStruct((bp, PADDED_DIMS[-1]), jnp.float32),
        grid=(n_steps,),
        in_specs=in_specs,
        out_specs=pl.BlockSpec((tb, PADDED_DIMS[-1]), lambda i: (i, 0)),
        compiler_params=pltpu.CompilerParams(
            dimension_semantics=("parallel",)),
        cost_estimate=pl.CostEstimate(
            flops=flops, transcendentals=0, bytes_accessed=bytes_accessed),
    )(x_p, *flat_params)

    # Strip batch padding and the lane padding of the 10-wide output.
    return out[:batch, :DIMS[-1]]


def init_params(key):
    """Deterministic init mimicking PyTorch Linear default U[-1/sqrt(in), 1/sqrt(in)]."""
    params = []
    for (fan_in, fan_out) in LAYER_DIMS:
        key, kw, kb = jax.random.split(key, 3)
        bound = 1.0 / jnp.sqrt(jnp.float32(fan_in))
        w = jax.random.uniform(kw, (fan_in, fan_out), jnp.float32, -bound, bound)
        b = jax.random.uniform(kb, (1, fan_out), jnp.float32, -bound, bound)
        params.append((w, b))
    return params


def reference_forward(x, params):
    """Pure-JAX reference mirroring the kernel's bf16-matmul / f32-elementwise math."""
    h = x.astype(jnp.float32)
    for w, b in params:
        h = jnp.dot(h.astype(jnp.bfloat16), w.astype(jnp.bfloat16),
                    preferred_element_type=jnp.float32)
        h = h + b.reshape(1, -1).astype(jnp.float32)
        h = jnp.maximum(h, NEG_SLOPE * h)
    return h


if __name__ == "__main__":
    key = jax.random.PRNGKey(0)
    key, kx = jax.random.split(key)

    batch = 300  # not a multiple of 8 or the tile -> exercises adaptive padding
    x = jax.random.normal(kx, (batch, DIMS[0]), jnp.float32)
    params = init_params(key)

    flat_params = prepare_params(params)   # one-time prep; reuse across calls
    out = jax.block_until_ready(mlp_forward(x, flat_params))
    ref = reference_forward(x, params)

    assert out.shape == (batch, DIMS[-1]), out.shape
    max_err = float(jnp.max(jnp.abs(out - ref)))
    assert jnp.allclose(out, ref, atol=1e-2, rtol=1e-2), f"mismatch, max_err={max_err}"

    print("KERNEL_OK")
</pallas_src>

<mosaic_0001>
module attributes {stable_mosaic.version = 11 : i64} {
  func.func @mlp_kernel(%arg0: i32, %arg1: memref<152x128xbf16, #tpu.memory_space<vmem>>, %arg2: memref<128x512xbf16, #tpu.memory_space<vmem>>, %arg3: memref<1x512xf32, #tpu.memory_space<vmem>>, %arg4: memref<512x256xbf16, #tpu.memory_space<vmem>>, %arg5: memref<1x256xf32, #tpu.memory_space<vmem>>, %arg6: memref<256x128xbf16, #tpu.memory_space<vmem>>, %arg7: memref<1x128xf32, #tpu.memory_space<vmem>>, %arg8: memref<128x128xbf16, #tpu.memory_space<vmem>>, %arg9: memref<1x128xf32, #tpu.memory_space<vmem>>, %arg10: memref<128x128xbf16, #tpu.memory_space<vmem>>, %arg11: memref<1x128xf32, #tpu.memory_space<vmem>>, %arg12: memref<128x128xbf16, #tpu.memory_space<vmem>>, %arg13: memref<1x128xf32, #tpu.memory_space<vmem>>, %arg14: memref<128x128xbf16, #tpu.memory_space<vmem>>, %arg15: memref<1x128xf32, #tpu.memory_space<vmem>>, %arg16: memref<152x128xf32, #tpu.memory_space<vmem>>) attributes {dimension_semantics = [#tpu.dimension_semantics<parallel>], iteration_bounds = array<i64: 2>, scalar_prefetch = 0 : i64, scratch_operands = 0 : i64, tpu.core_type = #tpu.core_type<tc>, window_params = [{transform_indices = @transform_0, window_bounds = array<i64: 152, 128>}, {pipeline_mode = #tpu.pipeline_mode<synchronous>, transform_indices = @transform_1, window_bounds = array<i64: 128, 512>}, {pipeline_mode = #tpu.pipeline_mode<synchronous>, transform_indices = @transform_2, window_bounds = array<i64: 1, 512>}, {pipeline_mode = #tpu.pipeline_mode<synchronous>, transform_indices = @transform_3, window_bounds = array<i64: 512, 256>}, {pipeline_mode = #tpu.pipeline_mode<synchronous>, transform_indices = @transform_4, window_bounds = array<i64: 1, 256>}, {pipeline_mode = #tpu.pipeline_mode<synchronous>, transform_indices = @transform_5, window_bounds = array<i64: 256, 128>}, {pipeline_mode = #tpu.pipeline_mode<synchronous>, transform_indices = @transform_6, window_bounds = array<i64: 1, 128>}, {pipeline_mode = #tpu.pipeline_mode<synchronous>, transform_indices = @transform_7, window_bounds = array<i64: 128, 128>}, {pipeline_mode = #tpu.pipeline_mode<synchronous>, transform_indices = @transform_8, window_bounds = array<i64: 1, 128>}, {pipeline_mode = #tpu.pipeline_mode<synchronous>, transform_indices = @transform_9, window_bounds = array<i64: 128, 128>}, {pipeline_mode = #tpu.pipeline_mode<synchronous>, transform_indices = @transform_10, window_bounds = array<i64: 1, 128>}, {pipeline_mode = #tpu.pipeline_mode<synchronous>, transform_indices = @transform_11, window_bounds = array<i64: 128, 128>}, {pipeline_mode = #tpu.pipeline_mode<synchronous>, transform_indices = @transform_12, window_bounds = array<i64: 1, 128>}, {pipeline_mode = #tpu.pipeline_mode<synchronous>, transform_indices = @transform_13, window_bounds = array<i64: 128, 128>}, {pipeline_mode = #tpu.pipeline_mode<synchronous>, transform_indices = @transform_14, window_bounds = array<i64: 1, 128>}, {transform_indices = @transform_15, window_bounds = array<i64: 152, 128>}]} {
    %c0 = arith.constant 0 : index
    %c0_0 = arith.constant 0 : index
    %0 = vector.load %arg1[%c0, %c0_0] : memref<152x128xbf16, #tpu.memory_space<vmem>>, vector<152x128xbf16>
    %c0_1 = arith.constant 0 : index
    %c0_2 = arith.constant 0 : index
    %1 = vector.load %arg2[%c0_1, %c0_2] : memref<128x512xbf16, #tpu.memory_space<vmem>>, vector<128x512xbf16>
    %cst = arith.constant dense<0.000000e+00> : vector<152x512xf32>
    %2 = tpu.matmul %0, %1, %cst {dimension_numbers = #tpu.dot_dimension_numbers<[1], [0], [0], [1], [0, 0, 1, 1], [], []>} : vector<152x128xbf16>, vector<128x512xbf16>, vector<152x512xf32> -> vector<152x512xf32>
    %c0_3 = arith.constant 0 : index
    %c0_4 = arith.constant 0 : index
    %3 = vector.load %arg3[%c0_3, %c0_4] : memref<1x512xf32, #tpu.memory_space<vmem>>, vector<1x512xf32>
    %4 = vector.broadcast %3 : vector<1x512xf32> to vector<152x512xf32>
    %5 = arith.addf %2, %4 : vector<152x512xf32>
    %cst_5 = arith.constant 0.00999999977 : f32
    %6 = vector.broadcast %cst_5 : f32 to vector<152x512xf32>
    %7 = arith.mulf %6, %5 : vector<152x512xf32>
    %8 = arith.maximumf %5, %7 : vector<152x512xf32>
    %9 = arith.truncf %8 : vector<152x512xf32> to vector<152x512xbf16>
    %c0_6 = arith.constant 0 : index
    %c0_7 = arith.constant 0 : index
    %10 = vector.load %arg4[%c0_6, %c0_7] : memref<512x256xbf16, #tpu.memory_space<vmem>>, vector<512x256xbf16>
    %cst_8 = arith.constant dense<0.000000e+00> : vector<152x256xf32>
    %11 = tpu.matmul %9, %10, %cst_8 {dimension_numbers = #tpu.dot_dimension_numbers<[1], [0], [0], [1], [0, 0, 1, 1], [], []>} : vector<152x512xbf16>, vector<512x256xbf16>, vector<152x256xf32> -> vector<152x256xf32>
    %c0_9 = arith.constant 0 : index
    %c0_10 = arith.constant 0 : index
    %12 = vector.load %arg5[%c0_9, %c0_10] : memref<1x256xf32, #tpu.memory_space<vmem>>, vector<1x256xf32>
    %13 = vector.broadcast %12 : vector<1x256xf32> to vector<152x256xf32>
    %14 = arith.addf %11, %13 : vector<152x256xf32>
    %cst_11 = arith.constant 0.00999999977 : f32
    %15 = vector.broadcast %cst_11 : f32 to vector<152x256xf32>
    %16 = arith.mulf %15, %14 : vector<152x256xf32>
    %17 = arith.maximumf %14, %16 : vector<152x256xf32>
    %18 = arith.truncf %17 : vector<152x256xf32> to vector<152x256xbf16>
    %c0_12 = arith.constant 0 : index
    %c0_13 = arith.constant 0 : index
    %19 = vector.load %arg6[%c0_12, %c0_13] : memref<256x128xbf16, #tpu.memory_space<vmem>>, vector<256x128xbf16>
    %cst_14 = arith.constant dense<0.000000e+00> : vector<152x128xf32>
    %20 = tpu.matmul %18, %19, %cst_14 {dimension_numbers = #tpu.dot_dimension_numbers<[1], [0], [0], [1], [0, 0, 1, 1], [], []>} : vector<152x256xbf16>, vector<256x128xbf16>, vector<152x128xf32> -> vector<152x128xf32>
    %c0_15 = arith.constant 0 : index
    %c0_16 = arith.constant 0 : index
    %21 = vector.load %arg7[%c0_15, %c0_16] : memref<1x128xf32, #tpu.memory_space<vmem>>, vector<1x128xf32>
    %22 = vector.broadcast %21 : vector<1x128xf32> to vector<152x128xf32>
    %23 = arith.addf %20, %22 : vector<152x128xf32>
    %cst_17 = arith.constant 0.00999999977 : f32
    %24 = vector.broadcast %cst_17 : f32 to vector<152x128xf32>
    %25 = arith.mulf %24, %23 : vector<152x128xf32>
    %26 = arith.maximumf %23, %25 : vector<152x128xf32>
    %27 = arith.truncf %26 : vector<152x128xf32> to vector<152x128xbf16>
    %c0_18 = arith.constant 0 : index
    %c0_19 = arith.constant 0 : index
    %28 = vector.load %arg8[%c0_18, %c0_19] : memref<128x128xbf16, #tpu.memory_space<vmem>>, vector<128x128xbf16>
    %cst_20 = arith.constant dense<0.000000e+00> : vector<152x128xf32>
    %29 = tpu.matmul %27, %28, %cst_20 {dimension_numbers = #tpu.dot_dimension_numbers<[1], [0], [0], [1], [0, 0, 1, 1], [], []>} : vector<152x128xbf16>, vector<128x128xbf16>, vector<152x128xf32> -> vector<152x128xf32>
    %c0_21 = arith.constant 0 : index
    %c0_22 = arith.constant 0 : index
    %30 = vector.load %arg9[%c0_21, %c0_22] : memref<1x128xf32, #tpu.memory_space<vmem>>, vector<1x128xf32>
    %31 = vector.broadcast %30 : vector<1x128xf32> to vector<152x128xf32>
    %32 = arith.addf %29, %31 : vector<152x128xf32>
    %cst_23 = arith.constant 0.00999999977 : f32
    %33 = vector.broadcast %cst_23 : f32 to vector<152x128xf32>
    %34 = arith.mulf %33, %32 : vector<152x128xf32>
    %35 = arith.maximumf %32, %34 : vector<152x128xf32>
    %36 = arith.truncf %35 : vector<152x128xf32> to vector<152x128xbf16>
    %c0_24 = arith.constant 0 : index
    %c0_25 = arith.constant 0 : index
    %37 = vector.load %arg10[%c0_24, %c0_25] : memref<128x128xbf16, #tpu.memory_space<vmem>>, vector<128x128xbf16>
    %cst_26 = arith.constant dense<0.000000e+00> : vector<152x128xf32>
    %38 = tpu.matmul %36, %37, %cst_26 {dimension_numbers = #tpu.dot_dimension_numbers<[1], [0], [0], [1], [0, 0, 1, 1], [], []>} : vector<152x128xbf16>, vector<128x128xbf16>, vector<152x128xf32> -> vector<152x128xf32>
    %c0_27 = arith.constant 0 : index
    %c0_28 = arith.constant 0 : index
    %39 = vector.load %arg11[%c0_27, %c0_28] : memref<1x128xf32, #tpu.memory_space<vmem>>, vector<1x128xf32>
    %40 = vector.broadcast %39 : vector<1x128xf32> to vector<152x128xf32>
    %41 = arith.addf %38, %40 : vector<152x128xf32>
    %cst_29 = arith.constant 0.00999999977 : f32
    %42 = vector.broadcast %cst_29 : f32 to vector<152x128xf32>
    %43 = arith.mulf %42, %41 : vector<152x128xf32>
    %44 = arith.maximumf %41, %43 : vector<152x128xf32>
    %45 = arith.truncf %44 : vector<152x128xf32> to vector<152x128xbf16>
    %c0_30 = arith.constant 0 : index
    %c0_31 = arith.constant 0 : index
    %46 = vector.load %arg12[%c0_30, %c0_31] : memref<128x128xbf16, #tpu.memory_space<vmem>>, vector<128x128xbf16>
    %cst_32 = arith.constant dense<0.000000e+00> : vector<152x128xf32>
    %47 = tpu.matmul %45, %46, %cst_32 {dimension_numbers = #tpu.dot_dimension_numbers<[1], [0], [0], [1], [0, 0, 1, 1], [], []>} : vector<152x128xbf16>, vector<128x128xbf16>, vector<152x128xf32> -> vector<152x128xf32>
    %c0_33 = arith.constant 0 : index
    %c0_34 = arith.constant 0 : index
    %48 = vector.load %arg13[%c0_33, %c0_34] : memref<1x128xf32, #tpu.memory_space<vmem>>, vector<1x128xf32>
    %49 = vector.broadcast %48 : vector<1x128xf32> to vector<152x128xf32>
    %50 = arith.addf %47, %49 : vector<152x128xf32>
    %cst_35 = arith.constant 0.00999999977 : f32
    %51 = vector.broadcast %cst_35 : f32 to vector<152x128xf32>
    %52 = arith.mulf %51, %50 : vector<152x128xf32>
    %53 = arith.maximumf %50, %52 : vector<152x128xf32>
    %54 = arith.truncf %53 : vector<152x128xf32> to vector<152x128xbf16>
    %c0_36 = arith.constant 0 : index
    %c0_37 = arith.constant 0 : index
    %55 = vector.load %arg14[%c0_36, %c0_37] : memref<128x128xbf16, #tpu.memory_space<vmem>>, vector<128x128xbf16>
    %cst_38 = arith.constant dense<0.000000e+00> : vector<152x128xf32>
    %56 = tpu.matmul %54, %55, %cst_38 {dimension_numbers = #tpu.dot_dimension_numbers<[1], [0], [0], [1], [0, 0, 1, 1], [], []>} : vector<152x128xbf16>, vector<128x128xbf16>, vector<152x128xf32> -> vector<152x128xf32>
    %c0_39 = arith.constant 0 : index
    %c0_40 = arith.constant 0 : index
    %57 = vector.load %arg15[%c0_39, %c0_40] : memref<1x128xf32, #tpu.memory_space<vmem>>, vector<1x128xf32>
    %58 = vector.broadcast %57 : vector<1x128xf32> to vector<152x128xf32>
    %59 = arith.addf %56, %58 : vector<152x128xf32>
    %cst_41 = arith.constant 0.00999999977 : f32
    %60 = vector.broadcast %cst_41 : f32 to vector<152x128xf32>
    %61 = arith.mulf %60, %59 : vector<152x128xf32>
    %62 = arith.maximumf %59, %61 : vector<152x128xf32>
    %c0_42 = arith.constant 0 : index
    %c0_43 = arith.constant 0 : index
    %63 = vector.load %arg16[%c0_42, %c0_43] : memref<152x128xf32, #tpu.memory_space<vmem>>, vector<152x128xf32>
    tpu.vector_store %arg16[%c0_42, %c0_43], %62 {strides = array<i32>} : memref<152x128xf32, #tpu.memory_space<vmem>>, vector<152x128xf32>,
    return
  }
  func.func @transform_0(%arg0: i32) -> (i32, i32) {
    %c0_i32 = arith.constant 0 : i32
    %c0_i32_0 = arith.constant 0 : i32
    return %arg0, %c0_i32 : i32, i32
  }
  func.func @transform_1(%arg0: i32) -> (i32, i32) {
    %c0_i32 = arith.constant 0 : i32
    %c0_i32_0 = arith.constant 0 : i32
    %c0_i32_1 = arith.constant 0 : i32
    return %c0_i32, %c0_i32_0 : i32, i32
  }
  func.func @transform_2(%arg0: i32) -> (i32, i32) {
    %c0_i32 = arith.constant 0 : i32
    %c0_i32_0 = arith.constant 0 : i32
    %c0_i32_1 = arith.constant 0 : i32
    return %c0_i32, %c0_i32_0 : i32, i32
  }
  func.func @transform_3(%arg0: i32) -> (i32, i32) {
    %c0_i32 = arith.constant 0 : i32
    %c0_i32_0 = arith.constant 0 : i32
    %c0_i32_1 = arith.constant 0 : i32
    return %c0_i32, %c0_i32_0 : i32, i32
  }
  func.func @transform_4(%arg0: i32) -> (i32, i32) {
    %c0_i32 = arith.constant 0 : i32
    %c0_i32_0 = arith.constant 0 : i32
    %c0_i32_1 = arith.constant 0 : i32
    return %c0_i32, %c0_i32_0 : i32, i32
  }
  func.func @transform_5(%arg0: i32) -> (i32, i32) {
    %c0_i32 = arith.constant 0 : i32
    %c0_i32_0 = arith.constant 0 : i32
    %c0_i32_1 = arith.constant 0 : i32
    return %c0_i32, %c0_i32_0 : i32, i32
  }
  func.func @transform_6(%arg0: i32) -> (i32, i32) {
    %c0_i32 = arith.constant 0 : i32
    %c0_i32_0 = arith.constant 0 : i32
    %c0_i32_1 = arith.constant 0 : i32
    return %c0_i32, %c0_i32_0 : i32, i32
  }
  func.func @transform_7(%arg0: i32) -> (i32, i32) {
    %c0_i32 = arith.constant 0 : i32
    %c0_i32_0 = arith.constant 0 : i32
    %c0_i32_1 = arith.constant 0 : i32
    return %c0_i32, %c0_i32_0 : i32, i32
  }
  func.func @transform_8(%arg0: i32) -> (i32, i32) {
    %c0_i32 = arith.constant 0 : i32
    %c0_i32_0 = arith.constant 0 : i32
    %c0_i32_1 = arith.constant 0 : i32
    return %c0_i32, %c0_i32_0 : i32, i32
  }
  func.func @transform_9(%arg0: i32) -> (i32, i32) {
    %c0_i32 = arith.constant 0 : i32
    %c0_i32_0 = arith.constant 0 : i32
    %c0_i32_1 = arith.constant 0 : i32
    return %c0_i32, %c0_i32_0 : i32, i32
  }
  func.func @transform_10(%arg0: i32) -> (i32, i32) {
    %c0_i32 = arith.constant 0 : i32
    %c0_i32_0 = arith.constant 0 : i32
    %c0_i32_1 = arith.constant 0 : i32
    return %c0_i32, %c0_i32_0 : i32, i32
  }
  func.func @transform_11(%arg0: i32) -> (i32, i32) {
    %c0_i32 = arith.constant 0 : i32
    %c0_i32_0 = arith.constant 0 : i32
    %c0_i32_1 = arith.constant 0 : i32
    return %c0_i32, %c0_i32_0 : i32, i32
  }
  func.func @transform_12(%arg0: i32) -> (i32, i32) {
    %c0_i32 = arith.constant 0 : i32
    %c0_i32_0 = arith.constant 0 : i32
    %c0_i32_1 = arith.constant 0 : i32
    return %c0_i32, %c0_i32_0 : i32, i32
  }
  func.func @transform_13(%arg0: i32) -> (i32, i32) {
    %c0_i32 = arith.constant 0 : i32
    %c0_i32_0 = arith.constant 0 : i32
    %c0_i32_1 = arith.constant 0 : i32
    return %c0_i32, %c0_i32_0 : i32, i32
  }
  func.func @transform_14(%arg0: i32) -> (i32, i32) {
    %c0_i32 = arith.constant 0 : i32
    %c0_i32_0 = arith.constant 0 : i32
    %c0_i32_1 = arith.constant 0 : i32
    return %c0_i32, %c0_i32_0 : i32, i32
  }
  func.func @transform_15(%arg0: i32) -> (i32, i32) {
    %c0_i32 = arith.constant 0 : i32
    %c0_i32_0 = arith.constant 0 : i32
    return %arg0, %c0_i32 : i32, i32
  }
}

</mosaic_0001>

<llo_original>
// kernel: mlp_forward.1
$region0: #{mlp_forward.1}
  #allocation0 [shape = 'u32[]', space=smem, size = 0x4, offset = 0x4, fixed_abs, tag = 'smem constant byte address 0x4 - core index']
  #allocation1 [shape = 'u32[144,128]{1,0:T(1,128)}', space=vmem, size = 0x12000, scoped, tag = 'internal scratch']
  %s0 = inlined_call_operand.vmem [shape: bf16[304,128], index: 0, kind: input, shape index: {}]
  %s1 = inlined_call_operand.hbm [shape: bf16[128,512], index: 1, kind: input, shape index: {}]
  %s2 = inlined_call_operand.hbm [shape: f32[1,512], index: 2, kind: input, shape index: {}]
  %s3 = inlined_call_operand.vmem [shape: bf16[512,256], index: 3, kind: input, shape index: {}]
  %s4 = inlined_call_operand.vmem [shape: f32[1,256], index: 4, kind: input, shape index: {}]
  %s5 = inlined_call_operand.vmem [shape: bf16[256,128], index: 5, kind: input, shape index: {}]
  %s6 = inlined_call_operand.hbm [shape: f32[1,128], index: 6, kind: input, shape index: {}]
  %s7 = inlined_call_operand.vmem [shape: bf16[128,128], index: 7, kind: input, shape index: {}]
  %s8 = inlined_call_operand.hbm [shape: f32[1,128], index: 8, kind: input, shape index: {}]
  %s9 = inlined_call_operand.vmem [shape: bf16[128,128], index: 9, kind: input, shape index: {}]
  %s10 = inlined_call_operand.vmem [shape: f32[1,128], index: 10, kind: input, shape index: {}]
  %s11 = inlined_call_operand.hbm [shape: bf16[128,128], index: 11, kind: input, shape index: {}]
  %s12 = inlined_call_operand.vmem [shape: f32[1,128], index: 12, kind: input, shape index: {}]
  %s13 = inlined_call_operand.hbm [shape: bf16[128,128], index: 13, kind: input, shape index: {}]
  %s14 = inlined_call_operand.vmem [shape: f32[1,128], index: 14, kind: input, shape index: {}]
  %s15 = inlined_call_operand.vmem [shape: f32[304,128], index: 15, kind: output, shape index: {}]
  %s16 = sld [smem:[#allocation0]]
  $region117: #{mlp_forward.1} parent=0
    _
  %s18 = ssub.s32 1, %s16
  %s19 = scalar_select 0, %s18, %s16
  $region1: #{mlp_forward.1} parent=0
    #allocation2 [shape = 'u8[131072]{0}', space=vmem, size = 0x20000, scoped, tag = 'input window, operand 1, single buffered']
    #allocation3 [shape = 's32[2]{0}', space=sflag, size = 0x8, scoped, tag = 'scoped memory for mlp_forward.1']
    #allocation4 [shape = 'u8[2048]{0}', space=vmem, size = 0x800, scoped, tag = 'input window, operand 2, single buffered']
    #allocation5 [shape = 's32[1]{0}', space=sflag, size = 0x4, scoped, tag = 'scoped memory for mlp_forward.1']
    #allocation6 [shape = 'u8[512]{0}', space=vmem, size = 0x400, scoped, tag = 'input window, operand 6, single buffered']
    #allocation7 [shape = 'u8[512]{0}', space=vmem, size = 0x400, scoped, tag = 'input window, operand 8, single buffered']
    #allocation8 [shape = 's32[1]{0}', space=sflag, size = 0x4, scoped, tag = 'scoped memory for mlp_forward.1']
    #allocation9 [shape = 'u8[32768]{0}', space=vmem, size = 0x8000, scoped, tag = 'input window, operand 11, single buffered']
    #allocation10 [shape = 'u8[32768]{0}', space=vmem, size = 0x8000, scoped, tag = 'input window, operand 13, single buffered']
    #allocation11 [shape = 's32[1]{0}', space=sflag, size = 0x4, scoped, tag = 'scoped memory for mlp_forward.1']
    %20 = vsyncpa [#allocation3], 0
    %21 = vsyncpa [#allocation5], 0
    %22 = vsyncpa [#allocation8], 0
    %23 = vsyncpa [#allocation11], 0
    loop: start=0, step=1, limit=4
    $region2: #{mlp_forward.1} parent=1 // loop_pre_header
      _
    $region3: #{mlp_forward.1} parent=1 // loop_header
      %s25 = sphi 0, %s29
      %p26 = scmp.ge.s32.totalorder %s25, 4
      %s35 = sphi 0, %s37
      %s38 = sphi 0, %s35
      %s39 = sphi 0, %s38
      %s55 = sphi 0, %s39
      %s59 = sphi 0, %s59
      %s61 = sphi 0, %s59
      %s62 = sphi 0, %s61
      %s76 = sphi 0, %s62
      %s80 = sphi 0, %s80
      %s82 = sphi 0, %s80
      %s83 = sphi 0, %s82
      %s97 = sphi 0, %s83
      %s101 = sphi 0, %s101
      %s103 = sphi 0, %s101
      %s104 = sphi 0, %s103
      %s118 = sphi 0, %s104
      %s122 = sphi 0, %s122
      %s124 = sphi 0, %s122
      %s125 = sphi 0, %s124
      %s139 = sphi 0, %s125
      %s143 = sphi 0, %s143
      %s145 = sphi 0, %s143
      %s146 = sphi 0, %s145
      %s160 = sphi 0, %s146
      %s164 = sphi 0, %s164
      %s166 = sphi 0, %s164
      %s167 = sphi 0, %s166
      %s181 = sphi 0, %s167
      %s185 = sphi 0, %s185
      %s187 = sphi 0, %s185
      %s188 = sphi 0, %s187
      %s202 = sphi 0, %s188
      %s206 = sphi 0, %s206
      %s208 = sphi 0, %s206
      %s209 = sphi 0, %s208
      %s223 = sphi 0, %s209
      %s227 = sphi 0, %s227
      %s229 = sphi 0, %s227
      %s230 = sphi 0, %s229
      %s244 = sphi 0, %s230
      %s248 = sphi 0, %s248
      %s250 = sphi 0, %s248
      %s251 = sphi 0, %s250
      %s265 = sphi 0, %s251
      %s269 = sphi 0, %s269
      %s271 = sphi 0, %s269
      %s272 = sphi 0, %s271
      %s286 = sphi 0, %s272
      %s290 = sphi 0, %s290
      %s292 = sphi 0, %s290
      %s293 = sphi 0, %s292
      %s307 = sphi 0, %s293
      %s311 = sphi 0, %s311
      %s313 = sphi 0, %s311
      %s314 = sphi 0, %s313
      %s328 = sphi 0, %s314
      %s332 = sphi 0, %s332
      %s334 = sphi 0, %s332
      %s335 = sphi 0, %s334
      %s349 = sphi 0, %s335
      %s355 = sphi 0, %s357
      %s358 = sphi 0, %s355
      %s359 = sphi 0, %s358
      %s375 = sphi 0, %s359
    $region4: #{mlp_forward.1} parent=1 // loop_header_branch
      %28 = sbr.rel (%p26) target = $region8
    $region5: #{mlp_forward.1} parent=1 // loop_body
      %s30 = ssub.s32 %s25, 1
      %s31 = ssub.s32 %s25, 2
      %s32 = sadd.s32 %s25, 1
      %s33 = ssub.s32 %s25, %s32
      %p34 = scmp.eq.s32.totalorder %s33, 0
      %s36 = sadd.s32 %s35, 1
      %s37 = scalar_select %p34, %s35, %s36
      %p40 = pneg %p34
      %p41 = scmp.eq.s32.totalorder %s25, 1
      %p42 = por %p40, %p41
      %p43 = scmp.ne.s32.totalorder %s35, %s38
      %p44 = scmp.eq.s32.totalorder %s25, 0
      %p45 = por %p43, %p44
      %p46 = scmp.ne.s32.totalorder %s35, %s38
      %p47 = scmp.eq.s32.totalorder %s30, 1
      %p48 = por %p46, %p47
      %p49 = scmp.ne.s32.totalorder %s38, %s39
      %p50 = scmp.eq.s32.totalorder %s30, 0
      %p51 = por %p49, %p50
      %p52 = scmp.ne.s32.totalorder %s38, %s39
      %p53 = scmp.eq.s32.totalorder %s31, 1
      %p54 = por %p52, %p53
      %p56 = scmp.ne.s32.totalorder %s39, %s55
      %p57 = scmp.eq.s32.totalorder %s31, 0
      %p58 = por %p56, %p57
      %s60 = sadd.s32 %s59, 1
      %p63 = scmp.eq.s32.totalorder %s25, 1
      %p64 = scmp.ne.s32.totalorder %s59, %s61
      %p65 = scmp.eq.s32.totalorder %s25, 0
      %p66 = por %p64, %p65
      %p67 = scmp.ne.s32.totalorder %s59, %s61
      %p68 = scmp.eq.s32.totalorder %s30, 1
      %p69 = por %p67, %p68
      %p70 = scmp.ne.s32.totalorder %s61, %s62
      %p71 = scmp.eq.s32.totalorder %s30, 0
      %p72 = por %p70, %p71
      %p73 = scmp.ne.s32.totalorder %s61, %s62
      %p74 = scmp.eq.s32.totalorder %s31, 1
      %p75 = por %p73, %p74
      %p77 = scmp.ne.s32.totalorder %s62, %s76
      %p78 = scmp.eq.s32.totalorder %s31, 0
      %p79 = por %p77, %p78
      %s81 = sadd.s32 %s80, 1
      %p84 = scmp.eq.s32.totalorder %s25, 1
      %p85 = scmp.ne.s32.totalorder %s80, %s82
      %p86 = scmp.eq.s32.totalorder %s25, 0
      %p87 = por %p85, %p86
      %p88 = scmp.ne.s32.totalorder %s80, %s82
      %p89 = scmp.eq.s32.totalorder %s30, 1
      %p90 = por %p88, %p89
      %p91 = scmp.ne.s32.totalorder %s82, %s83
      %p92 = scmp.eq.s32.totalorder %s30, 0
      %p93 = por %p91, %p92
      %p94 = scmp.ne.s32.totalorder %s82, %s83
      %p95 = scmp.eq.s32.totalorder %s31, 1
      %p96 = por %p94, %p95
      %p98 = scmp.ne.s32.totalorder %s83, %s97
      %p99 = scmp.eq.s32.totalorder %s31, 0
      %p100 = por %p98, %p99
      %s102 = sadd.s32 %s101, 1
      %p105 = scmp.eq.s32.totalorder %s25, 1
      %p106 = scmp.ne.s32.totalorder %s101, %s103
      %p107 = scmp.eq.s32.totalorder %s25, 0
      %p108 = por %p106, %p107
      %p109 = scmp.ne.s32.totalorder %s101, %s103
      %p110 = scmp.eq.s32.totalorder %s30, 1
      %p111 = por %p109, %p110
      %p112 = scmp.ne.s32.totalorder %s103, %s104
      %p113 = scmp.eq.s32.totalorder %s30, 0
      %p114 = por %p112, %p113
      %p115 = scmp.ne.s32.totalorder %s103, %s104
      %p116 = scmp.eq.s32.totalorder %s31, 1
      %p117 = por %p115, %p116
      %p119 = scmp.ne.s32.totalorder %s104, %s118
      %p120 = scmp.eq.s32.totalorder %s31, 0
      %p121 = por %p119, %p120
      %s123 = sadd.s32 %s122, 1
      %p126 = scmp.eq.s32.totalorder %s25, 1
      %p127 = scmp.ne.s32.totalorder %s122, %s124
      %p128 = scmp.eq.s32.totalorder %s25, 0
      %p129 = por %p127, %p128
      %p130 = scmp.ne.s32.totalorder %s122, %s124
      %p131 = scmp.eq.s32.totalorder %s30, 1
      %p132 = por %p130, %p131
      %p133 = scmp.ne.s32.totalorder %s124, %s125
      %p134 = scmp.eq.s32.totalorder %s30, 0
      %p135 = por %p133, %p134
      %p136 = scmp.ne.s32.totalorder %s124, %s125
      %p137 = scmp.eq.s32.totalorder %s31, 1
      %p138 = por %p136, %p137
      %p140 = scmp.ne.s32.totalorder %s125, %s139
      %p141 = scmp.eq.s32.totalorder %s31, 0
      %p142 = por %p140, %p141
      %s144 = sadd.s32 %s143, 1
      %p147 = scmp.eq.s32.totalorder %s25, 1
      %p148 = scmp.ne.s32.totalorder %s143, %s145
      %p149 = scmp.eq.s32.totalorder %s25, 0
      %p150 = por %p148, %p149
      %p151 = scmp.ne.s32.totalorder %s143, %s145
      %p152 = scmp.eq.s32.totalorder %s30, 1
      %p153 = por %p151, %p152
      %p154 = scmp.ne.s32.totalorder %s145, %s146
      %p155 = scmp.eq.s32.totalorder %s30, 0
      %p156 = por %p154, %p155
      %p157 = scmp.ne.s32.totalorder %s145, %s146
      %p158 = scmp.eq.s32.totalorder %s31, 1
      %p159 = por %p157, %p158
      %p161 = scmp.ne.s32.totalorder %s146, %s160
      %p162 = scmp.eq.s32.totalorder %s31, 0
      %p163 = por %p161, %p162
      %s165 = sadd.s32 %s164, 1
      %p168 = scmp.eq.s32.totalorder %s25, 1
      %p169 = scmp.ne.s32.totalorder %s164, %s166
      %p170 = scmp.eq.s32.totalorder %s25, 0
      %p171 = por %p169, %p170
      %p172 = scmp.ne.s32.totalorder %s164, %s166
      %p173 = scmp.eq.s32.totalorder %s30, 1
      %p174 = por %p172, %p173
      %p175 = scmp.ne.s32.totalorder %s166, %s167
      %p176 = scmp.eq.s32.totalorder %s30, 0
      %p177 = por %p175, %p176
      %p178 = scmp.ne.s32.totalorder %s166, %s167
      %p179 = scmp.eq.s32.totalorder %s31, 1
      %p180 = por %p178, %p179
      %p182 = scmp.ne.s32.totalorder %s167, %s181
      %p183 = scmp.eq.s32.totalorder %s31, 0
      %p184 = por %p182, %p183
      %s186 = sadd.s32 %s185, 1
      %p189 = scmp.eq.s32.totalorder %s25, 1
      %p190 = scmp.ne.s32.totalorder %s185, %s187
      %p191 = scmp.eq.s32.totalorder %s25, 0
      %p192 = por %p190, %p191
      %p193 = scmp.ne.s32.totalorder %s185, %s187
      %p194 = scmp.eq.s32.totalorder %s30, 1
      %p195 = por %p193, %p194
      %p196 = scmp.ne.s32.totalorder %s187, %s188
      %p197 = scmp.eq.s32.totalorder %s30, 0
      %p198 = por %p196, %p197
      %p199 = scmp.ne.s32.totalorder %s187, %s188
      %p200 = scmp.eq.s32.totalorder %s31, 1
      %p201 = por %p199, %p200
      %p203 = scmp.ne.s32.totalorder %s188, %s202
      %p204 = scmp.eq.s32.totalorder %s31, 0
      %p205 = por %p203, %p204
      %s207 = sadd.s32 %s206, 1
      %p210 = scmp.eq.s32.totalorder %s25, 1
      %p211 = scmp.ne.s32.totalorder %s206, %s208
      %p212 = scmp.eq.s32.totalorder %s25, 0
      %p213 = por %p211, %p212
      %p214 = scmp.ne.s32.totalorder %s206, %s208
      %p215 = scmp.eq.s32.totalorder %s30, 1
      %p216 = por %p214, %p215
      %p217 = scmp.ne.s32.totalorder %s208, %s209
      %p218 = scmp.eq.s32.totalorder %s30, 0
      %p219 = por %p217, %p218
      %p220 = scmp.ne.s32.totalorder %s208, %s209
      %p221 = scmp.eq.s32.totalorder %s31, 1
      %p222 = por %p220, %p221
      %p224 = scmp.ne.s32.totalorder %s209, %s223
      %p225 = scmp.eq.s32.totalorder %s31, 0
      %p226 = por %p224, %p225
      %s228 = sadd.s32 %s227, 1
      %p231 = scmp.eq.s32.totalorder %s25, 1
      %p232 = scmp.ne.s32.totalorder %s227, %s229
      %p233 = scmp.eq.s32.totalorder %s25, 0
      %p234 = por %p232, %p233
      %p235 = scmp.ne.s32.totalorder %s227, %s229
      %p236 = scmp.eq.s32.totalorder %s30, 1
      %p237 = por %p235, %p236
      %p238 = scmp.ne.s32.totalorder %s229, %s230
      %p239 = scmp.eq.s32.totalorder %s30, 0
      %p240 = por %p238, %p239
      %p241 = scmp.ne.s32.totalorder %s229, %s230
      %p242 = scmp.eq.s32.totalorder %s31, 1
      %p243 = por %p241, %p242
      %p245 = scmp.ne.s32.totalorder %s230, %s244
      %p246 = scmp.eq.s32.totalorder %s31, 0
      %p247 = por %p245, %p246
      %s249 = sadd.s32 %s248, 1
      %p252 = scmp.eq.s32.totalorder %s25, 1
      %p253 = scmp.ne.s32.totalorder %s248, %s250
      %p254 = scmp.eq.s32.totalorder %s25, 0
      %p255 = por %p253, %p254
      %p256 = scmp.ne.s32.totalorder %s248, %s250
      %p257 = scmp.eq.s32.totalorder %s30, 1
      %p258 = por %p256, %p257
      %p259 = scmp.ne.s32.totalorder %s250, %s251
      %p260 = scmp.eq.s32.totalorder %s30, 0
      %p261 = por %p259, %p260
      %p262 = scmp.ne.s32.totalorder %s250, %s251
      %p263 = scmp.eq.s32.totalorder %s31, 1
      %p264 = por %p262, %p263
      %p266 = scmp.ne.s32.totalorder %s251, %s265
      %p267 = scmp.eq.s32.totalorder %s31, 0
      %p268 = por %p266, %p267
      %s270 = sadd.s32 %s269, 1
      %p273 = scmp.eq.s32.totalorder %s25, 1
      %p274 = scmp.ne.s32.totalorder %s269, %s271
      %p275 = scmp.eq.s32.totalorder %s25, 0
      %p276 = por %p274, %p275
      %p277 = scmp.ne.s32.totalorder %s269, %s271
      %p278 = scmp.eq.s32.totalorder %s30, 1
      %p279 = por %p277, %p278
      %p280 = scmp.ne.s32.totalorder %s271, %s272
      %p281 = scmp.eq.s32.totalorder %s30, 0
      %p282 = por %p280, %p281
      %p283 = scmp.ne.s32.totalorder %s271, %s272
      %p284 = scmp.eq.s32.totalorder %s31, 1
      %p285 = por %p283, %p284
      %p287 = scmp.ne.s32.totalorder %s272, %s286
      %p288 = scmp.eq.s32.totalorder %s31, 0
      %p289 = por %p287, %p288
      %s291 = sadd.s32 %s290, 1
      %p294 = scmp.eq.s32.totalorder %s25, 1
      %p295 = scmp.ne.s32.totalorder %s290, %s292
      %p296 = scmp.eq.s32.totalorder %s25, 0
      %p297 = por %p295, %p296
      %p298 = scmp.ne.s32.totalorder %s290, %s292
      %p299 = scmp.eq.s32.totalorder %s30, 1
      %p300 = por %p298, %p299
      %p301 = scmp.ne.s32.totalorder %s292, %s293
      %p302 = scmp.eq.s32.totalorder %s30, 0
      %p303 = por %p301, %p302
      %p304 = scmp.ne.s32.totalorder %s292, %s293
      %p305 = scmp.eq.s32.totalorder %s31, 1
      %p306 = por %p304, %p305
      %p308 = scmp.ne.s32.totalorder %s293, %s307
      %p309 = scmp.eq.s32.totalorder %s31, 0
      %p310 = por %p308, %p309
      %s312 = sadd.s32 %s311, 1
      %p315 = scmp.eq.s32.totalorder %s25, 1
      %p316 = scmp.ne.s32.totalorder %s311, %s313
      %p317 = scmp.eq.s32.totalorder %s25, 0
      %p318 = por %p316, %p317
      %p319 = scmp.ne.s32.totalorder %s311, %s313
      %p320 = scmp.eq.s32.totalorder %s30, 1
      %p321 = por %p319, %p320
      %p322 = scmp.ne.s32.totalorder %s313, %s314
      %p323 = scmp.eq.s32.totalorder %s30, 0
      %p324 = por %p322, %p323
      %p325 = scmp.ne.s32.totalorder %s313, %s314
      %p326 = scmp.eq.s32.totalorder %s31, 1
      %p327 = por %p325, %p326
      %p329 = scmp.ne.s32.totalorder %s314, %s328
      %p330 = scmp.eq.s32.totalorder %s31, 0
      %p331 = por %p329, %p330
      %s333 = sadd.s32 %s332, 1
      %p336 = scmp.eq.s32.totalorder %s25, 1
      %p337 = scmp.ne.s32.totalorder %s332, %s334
      %p338 = scmp.eq.s32.totalorder %s25, 0
      %p339 = por %p337, %p338
      %p340 = scmp.ne.s32.totalorder %s332, %s334
      %p341 = scmp.eq.s32.totalorder %s30, 1
      %p342 = por %p340, %p341
      %p343 = scmp.ne.s32.totalorder %s334, %s335
      %p344 = scmp.eq.s32.totalorder %s30, 0
      %p345 = por %p343, %p344
      %p346 = scmp.ne.s32.totalorder %s334, %s335
      %p347 = scmp.eq.s32.totalorder %s31, 1
      %p348 = por %p346, %p347
      %p350 = scmp.ne.s32.totalorder %s335, %s349
      %p351 = scmp.eq.s32.totalorder %s31, 0
      %p352 = por %p350, %p351
      %s353 = ssub.s32 %s25, %s32
      %p354 = scmp.eq.s32.totalorder %s353, 0
      %s356 = sadd.s32 %s355, 1
      %s357 = scalar_select %p354, %s355, %s356
      %p360 = pneg %p354
      %p361 = scmp.eq.s32.totalorder %s25, 1
      %p362 = por %p360, %p361
      %p363 = scmp.ne.s32.totalorder %s355, %s358
      %p364 = scmp.eq.s32.totalorder %s25, 0
      %p365 = por %p363, %p364
      %p366 = scmp.ne.s32.totalorder %s355, %s358
      %p367 = scmp.eq.s32.totalorder %s30, 1
      %p368 = por %p366, %p367
      %p369 = scmp.ne.s32.totalorder %s358, %s359
      %p370 = scmp.eq.s32.totalorder %s30, 0
      %p371 = por %p369, %p370
      %p372 = scmp.ne.s32.totalorder %s358, %s359
      %p373 = scmp.eq.s32.totalorder %s31, 1
      %p374 = por %p372, %p373
      %p376 = scmp.ne.s32.totalorder %s359, %s375
      %p377 = scmp.eq.s32.totalorder %s31, 0
      %p378 = por %p376, %p377
      %p379 = scmp.le.s32.totalorder 1, %s25
      %p380 = scmp.lt.s32.totalorder %s25, 3
      %p381 = pnand %p379, %p380
      %p382 = pneg %p381
      // Predicated region
      $region9: #{mlp_forward.1} parent=5 // pred_check
        _
      $region10: #{mlp_forward.1} parent=5 // pred_check_branch
        %384 = sbr.rel (%p381) target = $region12
      $region11: #{mlp_forward.1} parent=5 // pred_region
        %s385 = ssub.s32 %s25, 1
        // Predicated region
        $region13: #{mlp_forward.1} parent=11 // pred_check
          %p386 = pneg %p72
        $region14: #{mlp_forward.1} parent=11 // pred_check_branch
          %388 = sbr.rel (%p386) target = $region16
        $region15: #{mlp_forward.1} parent=11 // pred_region
          %s390 = ssub.s32 4096, 4096
          %391 = vsyncadd [#allocation3], %s390
          %s392 = sshll.u32 [#allocation2], 4
          %s393 = int_to_ptr.vmem [resolvable:$true] %s392
          %398 = dma.hbm_to_vmem [thread:$0]  %s1, 4096, %s393, [#allocation3], 256, 256, 16
        $region16: #{mlp_forward.1} parent=11 // pred_fallthru
          _
        // Predicated region
        $region17: #{mlp_forward.1} parent=11 // pred_check
          %p399 = pneg %p93
        $region18: #{mlp_forward.1} parent=11 // pred_check_branch
          %401 = sbr.rel (%p399) target = $region20
        $region19: #{mlp_forward.1} parent=11 // pred_region
          %s403 = ssub.s32 64, 64
          %404 = vsyncadd [#allocation5], %s403
          %s406 = sshll.u32 [#allocation4], 4
          %s407 = int_to_ptr.vmem [resolvable:$true] %s406
          %409 = dma.hbm_to_vmem [thread:$0]  %s2, 64, %s407, [#allocation5]
        $region20: #{mlp_forward.1} parent=11 // pred_fallthru
          _
        // Predicated region
        $region21: #{mlp_forward.1} parent=11 // pred_check
          %p410 = pneg %p114
        $region22: #{mlp_forward.1} parent=11 // pred_check_branch
          %412 = sbr.rel (%p410) target = $region24
        $region23: #{mlp_forward.1} parent=11 // pred_region
          _
        $region24: #{mlp_forward.1} parent=11 // pred_fallthru
          _
        // Predicated region
        $region25: #{mlp_forward.1} parent=11 // pred_check
          %p413 = pneg %p135
        $region26: #{mlp_forward.1} parent=11 // pred_check_branch
          %415 = sbr.rel (%p413) target = $region28
        $region27: #{mlp_forward.1} parent=11 // pred_region
          _
        $region28: #{mlp_forward.1} parent=11 // pred_fallthru
          _
        // Predicated region
        $region29: #{mlp_forward.1} parent=11 // pred_check
          %p416 = pneg %p156
        $region30: #{mlp_forward.1} parent=11 // pred_check_branch
          %418 = sbr.rel (%p416) target = $region32
        $region31: #{mlp_forward.1} parent=11 // pred_region
          _
        $region32: #{mlp_forward.1} parent=11 // pred_fallthru
          _
        // Predicated region
        $region33: #{mlp_forward.1} parent=11 // pred_check
          %p419 = pneg %p177
        $region34: #{mlp_forward.1} parent=11 // pred_check_branch
          %421 = sbr.rel (%p419) target = $region36
        $region35: #{mlp_forward.1} parent=11 // pred_region
          %s423 = ssub.s32 16, 16
          %424 = vsyncadd [#allocation5], %s423
          %s426 = sshll.u32 [#allocation6], 4
          %s427 = int_to_ptr.vmem [resolvable:$true] %s426
          %429 = dma.hbm_to_vmem [thread:$0]  %s6, 16, %s427, [#allocation5]
        $region36: #{mlp_forward.1} parent=11 // pred_fallthru
          _
        // Predicated region
        $region37: #{mlp_forward.1} parent=11 // pred_check
          %p430 = pneg %p198
        $region38: #{mlp_forward.1} parent=11 // pred_check_branch
          %432 = sbr.rel (%p430) target = $region40
        $region39: #{mlp_forward.1} parent=11 // pred_region
          _
        $region40: #{mlp_forward.1} parent=11 // pred_fallthru
          _
        // Predicated region
        $region41: #{mlp_forward.1} parent=11 // pred_check
          %p433 = pneg %p219
        $region42: #{mlp_forward.1} parent=11 // pred_check_branch
          %435 = sbr.rel (%p433) target = $region44
        $region43: #{mlp_forward.1} parent=11 // pred_region
          %s437 = ssub.s32 16, 16
          %438 = vsyncadd [#allocation8], %s437
          %s440 = sshll.u32 [#allocation7], 4
          %s441 = int_to_ptr.vmem [resolvable:$true] %s440
          %443 = dma.hbm_to_vmem [thread:$0]  %s8, 16, %s441, [#allocation8]
        $region44: #{mlp_forward.1} parent=11 // pred_fallthru
          _
        // Predicated region
        $region45: #{mlp_forward.1} parent=11 // pred_check
          %p444 = pneg %p240
        $region46: #{mlp_forward.1} parent=11 // pred_check_branch
          %446 = sbr.rel (%p444) target = $region48
        $region47: #{mlp_forward.1} parent=11 // pred_region
          _
        $region48: #{mlp_forward.1} parent=11 // pred_fallthru
          _
        // Predicated region
        $region49: #{mlp_forward.1} parent=11 // pred_check
          %p447 = pneg %p261
        $region50: #{mlp_forward.1} parent=11 // pred_check_branch
          %449 = sbr.rel (%p447) target = $region52
        $region51: #{mlp_forward.1} parent=11 // pred_region
          _
        $region52: #{mlp_forward.1} parent=11 // pred_fallthru
          _
        // Predicated region
        $region53: #{mlp_forward.1} parent=11 // pred_check
          %p450 = pneg %p282
        $region54: #{mlp_forward.1} parent=11 // pred_check_branch
          %452 = sbr.rel (%p450) target = $region56
        $region55: #{mlp_forward.1} parent=11 // pred_region
          %s454 = ssub.s32 1024, 1024
          %455 = vsyncadd [#allocation8], %s454
          %s456 = sshll.u32 [#allocation9], 4
          %s457 = int_to_ptr.vmem [resolvable:$true] %s456
          %462 = dma.hbm_to_vmem [thread:$0]  %s11, 1024, %s457, [#allocation8], 64, 64, 4
        $region56: #{mlp_forward.1} parent=11 // pred_fallthru
          _
        // Predicated region
        $region57: #{mlp_forward.1} parent=11 // pred_check
          %p463 = pneg %p303
        $region58: #{mlp_forward.1} parent=11 // pred_check_branch
          %465 = sbr.rel (%p463) target = $region60
        $region59: #{mlp_forward.1} parent=11 // pred_region
          _
        $region60: #{mlp_forward.1} parent=11 // pred_fallthru
          _
        // Predicated region
        $region61: #{mlp_forward.1} parent=11 // pred_check
          %p466 = pneg %p324
        $region62: #{mlp_forward.1} parent=11 // pred_check_branch
          %468 = sbr.rel (%p466) target = $region64
        $region63: #{mlp_forward.1} parent=11 // pred_region
          %s470 = ssub.s32 1024, 1024
          %471 = vsyncadd [#allocation11], %s470
          %s472 = sshll.u32 [#allocation10], 4
          %s473 = int_to_ptr.vmem [resolvable:$true] %s472
          %478 = dma.hbm_to_vmem [thread:$0]  %s13, 1024, %s473, [#allocation11], 64, 64, 4
        $region64: #{mlp_forward.1} parent=11 // pred_fallthru
          _
        // Predicated region
        $region65: #{mlp_forward.1} parent=11 // pred_check
          %p479 = pneg %p345
        $region66: #{mlp_forward.1} parent=11 // pred_check_branch
          %481 = sbr.rel (%p479) target = $region68
        $region67: #{mlp_forward.1} parent=11 // pred_region
          _
        $region68: #{mlp_forward.1} parent=11 // pred_fallthru
          _
      $region12: #{mlp_forward.1} parent=5 // pred_fallthru
        _
      %p482 = scmp.lt.s32.totalorder %s25, 2
      // Predicated region
      $region69: #{mlp_forward.1} parent=5 // pred_check
        %p483 = pneg %p482
      $region70: #{mlp_forward.1} parent=5 // pred_check_branch
        %485 = sbr.rel (%p483) target = $region72
      $region71: #{mlp_forward.1} parent=5 // pred_region
        // Predicated region
        $region73: #{mlp_forward.1} parent=71 // pred_check
          %p486 = pneg %p45
        $region74: #{mlp_forward.1} parent=71 // pred_check_branch
          %488 = sbr.rel (%p486) target = $region76
        $region75: #{mlp_forward.1} parent=71 // pred_region
          %s489 = smul.u32 19, %s25
          %p490 = scmp.lt.s32.totalorder %s489, 37
          %s491 = scalar_select %p490, %s489, 37
          %s492 = smul.addr %s491, 4
          %s493 = scalar_lea.vmem %s0, %s492
          %s494 = smul.u32 19, %s25
        $region76: #{mlp_forward.1} parent=71 // pred_fallthru
          _
      $region72: #{mlp_forward.1} parent=5 // pred_fallthru
        _
      %p495 = scmp.le.s32.totalorder 1, %s25
      %p496 = scmp.lt.s32.totalorder %s25, 3
      %p497 = pnand %p495, %p496
      %p498 = pneg %p497
      // Predicated region
      $region77: #{mlp_forward.1} parent=5 // pred_check
        _
      $region78: #{mlp_forward.1} parent=5 // pred_check_branch
        %500 = sbr.rel (%p497) target = $region80
      $region79: #{mlp_forward.1} parent=5 // pred_region
        %s501 = ssub.s32 %s25, 1
        // Predicated region
        $region81: #{mlp_forward.1} parent=79 // pred_check
          %p502 = pneg %p72
        $region82: #{mlp_forward.1} parent=79 // pred_check_branch
          %504 = sbr.rel (%p502) target = $region84
        $region83: #{mlp_forward.1} parent=79 // pred_region
          %505 = dma.done [#allocation3], 4096
        $region84: #{mlp_forward.1} parent=79 // pred_fallthru
          _
        // Predicated region
        $region85: #{mlp_forward.1} parent=79 // pred_check
          %p506 = pneg %p93
        $region86: #{mlp_forward.1} parent=79 // pred_check_branch
          %508 = sbr.rel (%p506) target = $region88
        $region87: #{mlp_forward.1} parent=79 // pred_region
          %509 = dma.done [#allocation5], 64
        $region88: #{mlp_forward.1} parent=79 // pred_fallthru
          _
        // Predicated region
        $region89: #{mlp_forward.1} parent=79 // pred_check
          %p510 = pneg %p177
        $region90: #{mlp_forward.1} parent=79 // pred_check_branch
          %512 = sbr.rel (%p510) target = $region92
        $region91: #{mlp_forward.1} parent=79 // pred_region
          %513 = dma.done [#allocation5], 16
        $region92: #{mlp_forward.1} parent=79 // pred_fallthru
          _
        // Predicated region
        $region93: #{mlp_forward.1} parent=79 // pred_check
          %p514 = pneg %p219
        $region94: #{mlp_forward.1} parent=79 // pred_check_branch
          %516 = sbr.rel (%p514) target = $region96
        $region95: #{mlp_forward.1} parent=79 // pred_region
          %517 = dma.done [#allocation8], 16
        $region96: #{mlp_forward.1} parent=79 // pred_fallthru
          _
        // Predicated region
        $region97: #{mlp_forward.1} parent=79 // pred_check
          %p518 = pneg %p282
        $region98: #{mlp_forward.1} parent=79 // pred_check_branch
          %520 = sbr.rel (%p518) target = $region100
        $region99: #{mlp_forward.1} parent=79 // pred_region
          %521 = dma.done [#allocation8], 1024
        $region100: #{mlp_forward.1} parent=79 // pred_fallthru
          _
        // Predicated region
        $region101: #{mlp_forward.1} parent=79 // pred_check
          %p522 = pneg %p324
        $region102: #{mlp_forward.1} parent=79 // pred_check_branch
          %524 = sbr.rel (%p522) target = $region104
        $region103: #{mlp_forward.1} parent=79 // pred_region
          %525 = dma.done [#allocation11], 1024
        $region104: #{mlp_forward.1} parent=79 // pred_fallthru
          _
        %s526 = smul.u32 19, %s30
        %p527 = scmp.lt.s32.totalorder %s526, 37
        %s528 = scalar_select %p527, %s526, 37
        %s529 = smul.addr %s528, 4
        %s530 = scalar_lea.vmem %s0, %s529
        %p531 = pneg %p51
        %p532 = pneg %p48
        %p533 = pneg %p72
        %p534 = pneg %p69
        %p535 = pneg %p93
        %p536 = pneg %p90
        %p537 = pneg %p114
        %p538 = pneg %p111
        %p539 = pneg %p135
        %p540 = pneg %p132
        %p541 = pneg %p156
        %p542 = pneg %p153
        %p543 = pneg %p177
        %p544 = pneg %p174
        %p545 = pneg %p198
        %p546 = pneg %p195
        %p547 = pneg %p219
        %p548 = pneg %p216
        %p549 = pneg %p240
        %p550 = pneg %p237
        %p551 = pneg %p261
        %p552 = pneg %p258
        %p553 = pneg %p282
        %p554 = pneg %p279
        %p555 = pneg %p303
        %p556 = pneg %p300
        %p557 = pneg %p324
        %p558 = pneg %p321
        %p559 = pneg %p345
        %p560 = pneg %p342
        %p561 = pneg %p371
        %p562 = pneg %p368
        %s563 = smul.u32 19, %s30
        %p564 = scmp.lt.s32.totalorder %s563, 37
        %s565 = scalar_select %p564, %s563, 37
        %s566 = smul.addr %s565, 8
        %s567 = scalar_lea.vmem %s15, %s566
        %s568 = smul.u32 19, %s30
        %p569 = scmp.lt.s32.totalorder %s568, 37
        %s570 = scalar_select %p569, %s568, 37
        %s571 = smul.addr %s570, 4
        %s572 = scalar_lea.vmem %s0, %s571
        %s573 = smul.u32 19, %s30
        %s574 = smul.u32 19, %s30
        %p575 = scmp.lt.s32.totalorder %s574, 37
        %s576 = scalar_select %p575, %s574, 37
        %s577 = smul.addr %s576, 8
        %s578 = scalar_lea.vmem %s15, %s577
        %s579 = smul.u32 19, %s30
        %v581 = vld [vmem:[%s572] sm:$0xf]
        %v582 = vld [vmem:[%s572 + $0x4] sm:$0xf]
        %v583 = vld [vmem:[%s572 + $0x8] sm:$0xf]
        %v584 = vld [vmem:[%s572 + $0xc] sm:$0xf]
        %v585 = vld [vmem:[%s572 + $0x10] sm:$0xf]
        %v586 = vld [vmem:[%s572 + $0x14] sm:$0xf]
        %v587 = vld [vmem:[%s572 + $0x18] sm:$0xf]
        %v588 = vld [vmem:[%s572 + $0x1c] sm:$0xf]
        %v589 = vld [vmem:[%s572 + $0x20] sm:$0xf]
        %v590 = vld [vmem:[%s572 + $0x24] sm:$0xf]
        %v591 = vld [vmem:[%s572 + $0x28] sm:$0xf]
        %v592 = vld [vmem:[%s572 + $0x2c] sm:$0xf]
        %v593 = vld [vmem:[%s572 + $0x30] sm:$0xf]
        %v594 = vld [vmem:[%s572 + $0x34] sm:$0xf]
        %v595 = vld [vmem:[%s572 + $0x38] sm:$0xf]
        %v596 = vld [vmem:[%s572 + $0x3c] sm:$0xf]
        %v597 = vld [vmem:[%s572 + $0x40] sm:$0xf]
        %v598 = vld [vmem:[%s572 + $0x44] sm:$0xf]
        %v599 = vld [vmem:[%s572 + $0x48] sm:$0xf]
        %v600 = vld [vmem:[#allocation2] sm:$0xff]
        %v601 = vld [vmem:[#allocation2 + $0x8] sm:$0xff]
        %v602 = vld [vmem:[#allocation2 + $0x10] sm:$0xff]
        %v603 = vld [vmem:[#allocation2 + $0x18] sm:$0xff]
        %v604 = vld [vmem:[#allocation2 + $0x20] sm:$0xff]
        %v605 = vld [vmem:[#allocation2 + $0x28] sm:$0xff]
        %v606 = vld [vmem:[#allocation2 + $0x30] sm:$0xff]
        %v607 = vld [vmem:[#allocation2 + $0x38] sm:$0xff]
        %v608 = vld [vmem:[#allocation2 + $0x40] sm:$0xff]
        %v609 = vld [vmem:[#allocation2 + $0x48] sm:$0xff]
        %v610 = vld [vmem:[#allocation2 + $0x50] sm:$0xff]
        %v611 = vld [vmem:[#allocation2 + $0x58] sm:$0xff]
        %v612 = vld [vmem:[#allocation2 + $0x60] sm:$0xff]
        %v613 = vld [vmem:[#allocation2 + $0x68] sm:$0xff]
        %v614 = vld [vmem:[#allocation2 + $0x70] sm:$0xff]
        %v615 = vld [vmem:[#allocation2 + $0x78] sm:$0xff]
        %v616 = vld [vmem:[#allocation2 + $0x80] sm:$0xff]
        %v617 = vld [vmem:[#allocation2 + $0x88] sm:$0xff]
        %v618 = vld [vmem:[#allocation2 + $0x90] sm:$0xff]
        %v619 = vld [vmem:[#allocation2 + $0x98] sm:$0xff]
        %v620 = vld [vmem:[#allocation2 + $0xa0] sm:$0xff]
        %v621 = vld [vmem:[#allocation2 + $0xa8] sm:$0xff]
        %v622 = vld [vmem:[#allocation2 + $0xb0] sm:$0xff]
        %v623 = vld [vmem:[#allocation2 + $0xb8] sm:$0xff]
        %v624 = vld [vmem:[#allocation2 + $0xc0] sm:$0xff]
        %v625 = vld [vmem:[#allocation2 + $0xc8] sm:$0xff]
        %v626 = vld [vmem:[#allocation2 + $0xd0] sm:$0xff]
        %v627 = vld [vmem:[#allocation2 + $0xd8] sm:$0xff]
        %v628 = vld [vmem:[#allocation2 + $0xe0] sm:$0xff]
        %v629 = vld [vmem:[#allocation2 + $0xe8] sm:$0xff]
        %v630 = vld [vmem:[#allocation2 + $0xf0] sm:$0xff]
        %v631 = vld [vmem:[#allocation2 + $0xf8] sm:$0xff]
        %v632 = vld [vmem:[#allocation4] sm:$0xf]
        %v634 = vlaneseq
        %v635 = vshrl.u32 %v634, 7
        %v636 = vsub.s32 0, %v635
        %v637 = vrot.slane %v632, %v636
        %v638 = vlaneseq
        %v639 = vshrl.u32 %v638, 7
        %v640 = vsub.s32 1, %v639
        %v641 = vrot.slane %v632, %v640
        %v642 = vlaneseq
        %v643 = vshrl.u32 %v642, 7
        %v644 = vsub.s32 2, %v643
        %v645 = vrot.slane %v632, %v644
        %v646 = vlaneseq
        %v647 = vshrl.u32 %v646, 7
        %v648 = vsub.s32 3, %v647
        %v649 = vrot.slane %v632, %v648
        %v673 = vunpack.c.l.b16 %v581
        %v674 = vunpack.c.l.b16 %v582
        %v675 = vunpack.c.l.b16 %v583
        %v676 = vunpack.c.l.b16 %v584
        %v677 = vunpack.c.l.b16 %v585
        %v678 = vunpack.c.l.b16 %v586
        %v679 = vunpack.c.l.b16 %v587
        %v680 = vunpack.c.l.b16 %v588
        %v681 = vunpack.c.l.b16 %v589
        %v682 = vunpack.c.l.b16 %v590
        %v683 = vunpack.c.l.b16 %v591
        %v684 = vunpack.c.l.b16 %v592
        %v685 = vunpack.c.l.b16 %v593
        %v686 = vunpack.c.l.b16 %v594
        %v687 = vunpack.c.l.b16 %v595
        %v688 = vunpack.c.l.b16 %v596
        %v689 = vunpack.c.l.b16 %v597
        %v690 = vunpack.c.l.b16 %v598
        %v691 = vunpack.c.l.b16 %v599
        %v692 = vpack.c.b16 %v674, %v673
        %v693 = vpack.c.b16 %v676, %v675
        %v694 = vpack.c.b16 %v678, %v677
        %v695 = vpack.c.b16 %v680, %v679
        %v696 = vpack.c.b16 %v682, %v681
        %v697 = vpack.c.b16 %v684, %v683
        %v698 = vpack.c.b16 %v686, %v685
        %v699 = vpack.c.b16 %v688, %v687
        %v700 = vpack.c.b16 %v690, %v689
        %v701 = vpack.c.b16 %v691, %v691
        %v744 = vunpack.c.l.b16 %v600
        %v745 = vunpack.c.h.b16 %v600
        %v746 = vunpack.c.l.b16 %v601
        %v747 = vunpack.c.h.b16 %v601
        %v748 = vunpack.c.l.b16 %v602
        %v749 = vunpack.c.h.b16 %v602
        %v750 = vunpack.c.l.b16 %v603
        %v751 = vunpack.c.h.b16 %v603
        %v752 = vunpack.c.l.b16 %v604
        %v753 = vunpack.c.h.b16 %v604
        %v754 = vunpack.c.l.b16 %v605
        %v755 = vunpack.c.h.b16 %v605
        %v756 = vunpack.c.l.b16 %v606
        %v757 = vunpack.c.h.b16 %v606
        %v758 = vunpack.c.l.b16 %v607
        %v759 = vunpack.c.h.b16 %v607
        %v760 = vunpack.c.l.b16 %v608
        %v761 = vunpack.c.h.b16 %v608
        %v762 = vunpack.c.l.b16 %v609
        %v763 = vunpack.c.h.b16 %v609
        %v764 = vunpack.c.l.b16 %v610
        %v765 = vunpack.c.h.b16 %v610
        %v766 = vunpack.c.l.b16 %v611
        %v767 = vunpack.c.h.b16 %v611
        %v768 = vunpack.c.l.b16 %v612
        %v769 = vunpack.c.h.b16 %v612
        %v770 = vunpack.c.l.b16 %v613
        %v771 = vunpack.c.h.b16 %v613
        %v772 = vunpack.c.l.b16 %v614
        %v773 = vunpack.c.h.b16 %v614
        %v774 = vunpack.c.l.b16 %v615
        %v775 = vunpack.c.h.b16 %v615
        %v776 = vunpack.c.l.b16 %v616
        %v777 = vunpack.c.h.b16 %v616
        %v778 = vunpack.c.l.b16 %v617
        %v779 = vunpack.c.h.b16 %v617
        %v780 = vunpack.c.l.b16 %v618
        %v781 = vunpack.c.h.b16 %v618
        %v782 = vunpack.c.l.b16 %v619
        %v783 = vunpack.c.h.b16 %v619
        %v784 = vunpack.c.l.b16 %v620
        %v785 = vunpack.c.h.b16 %v620
        %v786 = vunpack.c.l.b16 %v621
        %v787 = vunpack.c.h.b16 %v621
        %v788 = vunpack.c.l.b16 %v622
        %v789 = vunpack.c.h.b16 %v622
        %v790 = vunpack.c.l.b16 %v623
        %v791 = vunpack.c.h.b16 %v623
        %v792 = vunpack.c.l.b16 %v624
        %v793 = vunpack.c.h.b16 %v624
        %v794 = vunpack.c.l.b16 %v625
        %v795 = vunpack.c.h.b16 %v625
        %v796 = vunpack.c.l.b16 %v626
        %v797 = vunpack.c.h.b16 %v626
        %v798 = vunpack.c.l.b16 %v627
        %v799 = vunpack.c.h.b16 %v627
        %v800 = vunpack.c.l.b16 %v628
        %v801 = vunpack.c.h.b16 %v628
        %v802 = vunpack.c.l.b16 %v629
        %v803 = vunpack.c.h.b16 %v629
        %v804 = vunpack.c.l.b16 %v630
        %v805 = vunpack.c.h.b16 %v630
        %v806 = vunpack.c.l.b16 %v631
        %v807 = vunpack.c.h.b16 %v631
        %v808 = vpack.c.b16 %v748, %v744
        %v809 = vpack.c.b16 %v749, %v745
        %v810 = vpack.c.b16 %v750, %v746
        %v811 = vpack.c.b16 %v751, %v747
        %v812 = vpack.c.b16 %v756, %v752
        %v813 = vpack.c.b16 %v757, %v753
        %v814 = vpack.c.b16 %v758, %v754
        %v815 = vpack.c.b16 %v759, %v755
        %v816 = vpack.c.b16 %v764, %v760
        %v817 = vpack.c.b16 %v765, %v761
        %v818 = vpack.c.b16 %v766, %v762
        %v819 = vpack.c.b16 %v767, %v763
        %v820 = vpack.c.b16 %v772, %v768
        %v821 = vpack.c.b16 %v773, %v769
        %v822 = vpack.c.b16 %v774, %v770
        %v823 = vpack.c.b16 %v775, %v771
        %v824 = vpack.c.b16 %v780, %v776
        %v825 = vpack.c.b16 %v781, %v777
        %v826 = vpack.c.b16 %v782, %v778
        %v827 = vpack.c.b16 %v783, %v779
        %v828 = vpack.c.b16 %v788, %v784
        %v829 = vpack.c.b16 %v789, %v785
        %v830 = vpack.c.b16 %v790, %v786
        %v831 = vpack.c.b16 %v791, %v787
        %v832 = vpack.c.b16 %v796, %v792
        %v833 = vpack.c.b16 %v797, %v793
        %v834 = vpack.c.b16 %v798, %v794
        %v835 = vpack.c.b16 %v799, %v795
        %v836 = vpack.c.b16 %v804, %v800
        %v837 = vpack.c.b16 %v805, %v801
        %v838 = vpack.c.b16 %v806, %v802
        %v839 = vpack.c.b16 %v807, %v803
        %872 = vmatprep.subr.bf16.mxu0 %v837
        %873 = vmatpush1.bf16.msra.mxu0 %v836
        %874 = vmatprep.subr.bf16.mxu0 %v833
        %875 = vmatpush1.bf16.msra.mxu0 %v832
        %876 = vmatprep.subr.bf16.mxu0 %v829
        %877 = vmatpush1.bf16.msra.mxu0 %v828
        %878 = vmatprep.subr.bf16.mxu0 %v825
        %879 = vmatpush1.bf16.msra.mxu0 %v824
        %880 = vmatprep.subr.bf16.mxu0 %v821
        %881 = vmatpush1.bf16.msra.mxu0 %v820
        %882 = vmatprep.subr.bf16.mxu0 %v817
        %883 = vmatpush1.bf16.msra.mxu0 %v816
        %884 = vmatprep.subr.bf16.mxu0 %v813
        %885 = vmatpush1.bf16.msra.mxu0 %v812
        %886 = vmatprep.subr.bf16.mxu0 %v809
        %887 = vmatpush1.bf16.msra.mxu0 %v808
        %888 = vmatprep.subr.bf16.mxu0 0
        %889 = vmatpush2.bf16.msra.mxu0 0
        %890 = vmatprep.subr.bf16.mxu0 0
        %891 = vmatpush2.bf16.msra.mxu0 0
        %892 = vmatprep.subr.bf16.mxu0 0
        %893 = vmatpush2.bf16.msra.mxu0 0
        %894 = vmatprep.subr.bf16.mxu0 0
        %895 = vmatpush2.bf16.msra.mxu0 0
        %896 = vmatprep.subr.bf16.mxu0 0
        %897 = vmatpush2.bf16.msra.mxu0 0
        %898 = vmatprep.subr.bf16.mxu0 0
        %899 = vmatpush2.bf16.msra.mxu0 0
        %900 = vmatprep.subr.bf16.mxu0 0
        %901 = vmatpush2.bf16.msra.mxu0 0
        %902 = vmatprep.subr.bf16.mxu0 0
        %903 = vmatpush2.bf16.msra.mxu0 0
        %904 = vmatprep.mubr.bf16.mxu0 0
        %905 = vmatmul.mubr.bf16.gmra.mxu0 %v692
        %v906 = vpop.f32.mrf.mxu0
        %v907 = vadd.f32 %v637, %v906
        %v908 = vpop.f32.mrf.mxu0
        %v909 = vadd.f32 %v641, %v908
        %v910 = vpop.f32.mrf.mxu0
        %v911 = vadd.f32 %v637, %v910
        %v912 = vpop.f32.mrf.mxu0
        %v913 = vadd.f32 %v641, %v912
        %914 = vmatprep.mubr.bf16.mxu0 0
        %915 = vmatmul.mubr.bf16.gmra.mxu0 %v693
        %v916 = vpop.f32.mrf.mxu0
        %v917 = vadd.f32 %v637, %v916
        %v918 = vpop.f32.mrf.mxu0
        %v919 = vadd.f32 %v641, %v918
        %v920 = vpop.f32.mrf.mxu0
        %v921 = vadd.f32 %v637, %v920
        %v922 = vpop.f32.mrf.mxu0
        %v923 = vadd.f32 %v641, %v922
        %924 = vmatprep.mubr.bf16.mxu0 0
        %925 = vmatmul.mubr.bf16.gmra.mxu0 %v694
        %v926 = vpop.f32.mrf.mxu0
        %v927 = vadd.f32 %v637, %v926
        %v928 = vpop.f32.mrf.mxu0
        %v929 = vadd.f32 %v641, %v928
        %v930 = vpop.f32.mrf.mxu0
        %v931 = vadd.f32 %v637, %v930
        %v932 = vpop.f32.mrf.mxu0
        %v933 = vadd.f32 %v641, %v932
        %934 = vmatprep.mubr.bf16.mxu0 0
        %935 = vmatmul.mubr.bf16.gmra.mxu0 %v695
        %v936 = vpop.f32.mrf.mxu0
        %v937 = vadd.f32 %v637, %v936
        %v938 = vpop.f32.mrf.mxu0
        %v939 = vadd.f32 %v641, %v938
        %v940 = vpop.f32.mrf.mxu0
        %v941 = vadd.f32 %v637, %v940
        %v942 = vpop.f32.mrf.mxu0
        %v943 = vadd.f32 %v641, %v942
        %944 = vmatprep.mubr.bf16.mxu0 0
        %945 = vmatmul.mubr.bf16.gmra.mxu0 %v696
        %v946 = vpop.f32.mrf.mxu0
        %v947 = vadd.f32 %v637, %v946
        %v948 = vpop.f32.mrf.mxu0
        %v949 = vadd.f32 %v641, %v948
        %v950 = vpop.f32.mrf.mxu0
        %v951 = vadd.f32 %v637, %v950
        %v952 = vpop.f32.mrf.mxu0
        %v953 = vadd.f32 %v641, %v952
        %954 = vmatprep.mubr.bf16.mxu0 0
        %955 = vmatmul.mubr.bf16.gmra.mxu0 %v697
        %v956 = vpop.f32.mrf.mxu0
        %v957 = vadd.f32 %v637, %v956
        %v958 = vpop.f32.mrf.mxu0
        %v959 = vadd.f32 %v641, %v958
        %v960 = vpop.f32.mrf.mxu0
        %v961 = vadd.f32 %v637, %v960
        %v962 = vpop.f32.mrf.mxu0
        %v963 = vadd.f32 %v641, %v962
        %964 = vmatprep.mubr.bf16.mxu0 0
        %965 = vmatmul.mubr.bf16.gmra.mxu0 %v698
        %v966 = vpop.f32.mrf.mxu0
        %v967 = vadd.f32 %v637, %v966
        %v968 = vpop.f32.mrf.mxu0
        %v969 = vadd.f32 %v641, %v968
        %v970 = vpop.f32.mrf.mxu0
        %v971 = vadd.f32 %v637, %v970
        %v972 = vpop.f32.mrf.mxu0
        %v973 = vadd.f32 %v641, %v972
        %974 = vmatprep.mubr.bf16.mxu0 0
        %975 = vmatmul.mubr.bf16.gmra.mxu0 %v699
        %v976 = vpop.f32.mrf.mxu0
        %v977 = vadd.f32 %v637, %v976
        %v978 = vpop.f32.mrf.mxu0
        %v979 = vadd.f32 %v641, %v978
        %v980 = vpop.f32.mrf.mxu0
        %v981 = vadd.f32 %v637, %v980
        %v982 = vpop.f32.mrf.mxu0
        %v983 = vadd.f32 %v641, %v982
        %984 = vmatprep.mubr.bf16.mxu0 0
        %985 = vmatmul.mubr.bf16.gmra.mxu0 %v700
        %v986 = vpop.f32.mrf.mxu0
        %v987 = vadd.f32 %v637, %v986
        %v988 = vpop.f32.mrf.mxu0
        %v989 = vadd.f32 %v641, %v988
        %v990 = vpop.f32.mrf.mxu0
        %v991 = vadd.f32 %v637, %v990
        %v992 = vpop.f32.mrf.mxu0
        %v993 = vadd.f32 %v641, %v992
        %994 = vmatprep.mubr.bf16.mxu0 0
        %995 = vmatmul.mubr.bf16.gmra.mxu0 %v701
        %v996 = vpop.f32.mrf.mxu0
        %v997 = vadd.f32 %v637, %v996
        %v998 = vpop.f32.mrf.mxu0
        %v999 = vadd.f32 %v641, %v998
        %v1000 = vpop.f32.mrf.mxu0
        %v1001 = vpop.f32.mrf.mxu0
        %1002 = vdwg.mxu0
        %1003 = vmatprep.subr.bf16.mxu0 %v839
        %1004 = vmatpush1.bf16.msra.mxu0 %v838
        %1005 = vmatprep.subr.bf16.mxu0 %v835
        %1006 = vmatpush1.bf16.msra.mxu0 %v834
        %1007 = vmatprep.subr.bf16.mxu0 %v831
        %1008 = vmatpush1.bf16.msra.mxu0 %v830
        %1009 = vmatprep.subr.bf16.mxu0 %v827
        %1010 = vmatpush1.bf16.msra.mxu0 %v826
        %1011 = vmatprep.subr.bf16.mxu0 %v823
        %1012 = vmatpush1.bf16.msra.mxu0 %v822
        %1013 = vmatprep.subr.bf16.mxu0 %v819
        %1014 = vmatpush1.bf16.msra.mxu0 %v818
        %1015 = vmatprep.subr.bf16.mxu0 %v815
        %1016 = vmatpush1.bf16.msra.mxu0 %v814
        %1017 = vmatprep.subr.bf16.mxu0 %v811
        %1018 = vmatpush1.bf16.msra.mxu0 %v810
        %1019 = vmatprep.subr.bf16.mxu0 0
        %1020 = vmatpush2.bf16.msra.mxu0 0
        %1021 = vmatprep.subr.bf16.mxu0 0
        %1022 = vmatpush2.bf16.msra.mxu0 0
        %1023 = vmatprep.subr.bf16.mxu0 0
        %1024 = vmatpush2.bf16.msra.mxu0 0
        %1025 = vmatprep.subr.bf16.mxu0 0
        %1026 = vmatpush2.bf16.msra.mxu0 0
        %1027 = vmatprep.subr.bf16.mxu0 0
        %1028 = vmatpush2.bf16.msra.mxu0 0
        %1029 = vmatprep.subr.bf16.mxu0 0
        %1030 = vmatpush2.bf16.msra.mxu0 0
        %1031 = vmatprep.subr.bf16.mxu0 0
        %1032 = vmatpush2.bf16.msra.mxu0 0
        %1033 = vmatprep.subr.bf16.mxu0 0
        %1034 = vmatpush2.bf16.msra.mxu0 0
        %1035 = vmatprep.mubr.bf16.mxu0 0
        %1036 = vmatmul.mubr.bf16.gmra.mxu0 %v692
        %v1037 = vpop.f32.mrf.mxu0
        %v1038 = vadd.f32 %v645, %v1037
        %v1039 = vpop.f32.mrf.mxu0
        %v1040 = vadd.f32 %v649, %v1039
        %v1041 = vpop.f32.mrf.mxu0
        %v1042 = vadd.f32 %v645, %v1041
        %v1043 = vpop.f32.mrf.mxu0
        %v1044 = vadd.f32 %v649, %v1043
        %1045 = vmatprep.mubr.bf16.mxu0 0
        %1046 = vmatmul.mubr.bf16.gmra.mxu0 %v693
        %v1047 = vpop.f32.mrf.mxu0
        %v1048 = vadd.f32 %v645, %v1047
        %v1049 = vpop.f32.mrf.mxu0
        %v1050 = vadd.f32 %v649, %v1049
        %v1051 = vpop.f32.mrf.mxu0
        %v1052 = vadd.f32 %v645, %v1051
        %v1053 = vpop.f32.mrf.mxu0
        %v1054 = vadd.f32 %v649, %v1053
        %1055 = vmatprep.mubr.bf16.mxu0 0
        %1056 = vmatmul.mubr.bf16.gmra.mxu0 %v694
        %v1057 = vpop.f32.mrf.mxu0
        %v1058 = vadd.f32 %v645, %v1057
        %v1059 = vpop.f32.mrf.mxu0
        %v1060 = vadd.f32 %v649, %v1059
        %v1061 = vpop.f32.mrf.mxu0
        %v1062 = vadd.f32 %v645, %v1061
        %v1063 = vpop.f32.mrf.mxu0
        %v1064 = vadd.f32 %v649, %v1063
        %1065 = vmatprep.mubr.bf16.mxu0 0
        %1066 = vmatmul.mubr.bf16.gmra.mxu0 %v695
        %v1067 = vpop.f32.mrf.mxu0
        %v1068 = vadd.f32 %v645, %v1067
        %v1069 = vpop.f32.mrf.mxu0
        %v1070 = vadd.f32 %v649, %v1069
        %v1071 = vpop.f32.mrf.mxu0
        %v1072 = vadd.f32 %v645, %v1071
        %v1073 = vpop.f32.mrf.mxu0
        %v1074 = vadd.f32 %v649, %v1073
        %1075 = vmatprep.mubr.bf16.mxu0 0
        %1076 = vmatmul.mubr.bf16.gmra.mxu0 %v696
        %v1077 = vpop.f32.mrf.mxu0
        %v1078 = vadd.f32 %v645, %v1077
        %v1079 = vpop.f32.mrf.mxu0
        %v1080 = vadd.f32 %v649, %v1079
        %v1081 = vpop.f32.mrf.mxu0
        %v1082 = vadd.f32 %v645, %v1081
        %v1083 = vpop.f32.mrf.mxu0
        %v1084 = vadd.f32 %v649, %v1083
        %1085 = vmatprep.mubr.bf16.mxu0 0
        %1086 = vmatmul.mubr.bf16.gmra.mxu0 %v697
        %v1087 = vpop.f32.mrf.mxu0
        %v1088 = vadd.f32 %v645, %v1087
        %v1089 = vpop.f32.mrf.mxu0
        %v1090 = vadd.f32 %v649, %v1089
        %v1091 = vpop.f32.mrf.mxu0
        %v1092 = vadd.f32 %v645, %v1091
        %v1093 = vpop.f32.mrf.mxu0
        %v1094 = vadd.f32 %v649, %v1093
        %1095 = vmatprep.mubr.bf16.mxu0 0
        %1096 = vmatmul.mubr.bf16.gmra.mxu0 %v698
        %v1097 = vpop.f32.mrf.mxu0
        %v1098 = vadd.f32 %v645, %v1097
        %v1099 = vpop.f32.mrf.mxu0
        %v1100 = vadd.f32 %v649, %v1099
        %v1101 = vpop.f32.mrf.mxu0
        %v1102 = vadd.f32 %v645, %v1101
        %v1103 = vpop.f32.mrf.mxu0
        %v1104 = vadd.f32 %v649, %v1103
        %1105 = vmatprep.mubr.bf16.mxu0 0
        %1106 = vmatmul.mubr.bf16.gmra.mxu0 %v699
        %v1107 = vpop.f32.mrf.mxu0
        %v1108 = vadd.f32 %v645, %v1107
        %v1109 = vpop.f32.mrf.mxu0
        %v1110 = vadd.f32 %v649, %v1109
        %v1111 = vpop.f32.mrf.mxu0
        %v1112 = vadd.f32 %v645, %v1111
        %v1113 = vpop.f32.mrf.mxu0
        %v1114 = vadd.f32 %v649, %v1113
        %1115 = vmatprep.mubr.bf16.mxu0 0
        %1116 = vmatmul.mubr.bf16.gmra.mxu0 %v700
        %v1117 = vpop.f32.mrf.mxu0
        %v1118 = vadd.f32 %v645, %v1117
        %v1119 = vpop.f32.mrf.mxu0
        %v1120 = vadd.f32 %v649, %v1119
        %v1121 = vpop.f32.mrf.mxu0
        %v1122 = vadd.f32 %v645, %v1121
        %v1123 = vpop.f32.mrf.mxu0
        %v1124 = vadd.f32 %v649, %v1123
        %1125 = vmatprep.mubr.bf16.mxu0 0
        %1126 = vmatmul.mubr.bf16.gmra.mxu0 %v701
        %v1127 = vpop.f32.mrf.mxu0
        %v1128 = vadd.f32 %v645, %v1127
        %v1129 = vpop.f32.mrf.mxu0
        %v1130 = vadd.f32 %v649, %v1129
        %v1131 = vpop.f32.mrf.mxu0
        %v1132 = vpop.f32.mrf.mxu0
        %1133 = vdwg.mxu0
        %v1134 = vmul.f32 %v907, 0.01
        %v1135 = vmul.f32 %v909, 0.01
        %v1136 = vmul.f32 %v1038, 0.01
        %v1137 = vmul.f32 %v1040, 0.01
        %v1138 = vmul.f32 %v911, 0.01
        %v1139 = vmul.f32 %v913, 0.01
        %v1140 = vmul.f32 %v1042, 0.01
        %v1141 = vmul.f32 %v1044, 0.01
        %v1142 = vmul.f32 %v917, 0.01
        %v1143 = vmul.f32 %v919, 0.01
        %v1144 = vmul.f32 %v1048, 0.01
        %v1145 = vmul.f32 %v1050, 0.01
        %v1146 = vmul.f32 %v921, 0.01
        %v1147 = vmul.f32 %v923, 0.01
        %v1148 = vmul.f32 %v1052, 0.01
        %v1149 = vmul.f32 %v1054, 0.01
        %v1150 = vmul.f32 %v927, 0.01
        %v1151 = vmul.f32 %v929, 0.01
        %v1152 = vmul.f32 %v1058, 0.01
        %v1153 = vmul.f32 %v1060, 0.01
        %v1154 = vmul.f32 %v931, 0.01
        %v1155 = vmul.f32 %v933, 0.01
        %v1156 = vmul.f32 %v1062, 0.01
        %v1157 = vmul.f32 %v1064, 0.01
        %v1158 = vmul.f32 %v937, 0.01
        %v1159 = vmul.f32 %v939, 0.01
        %v1160 = vmul.f32 %v1068, 0.01
        %v1161 = vmul.f32 %v1070, 0.01
        %v1162 = vmul.f32 %v941, 0.01
        %v1163 = vmul.f32 %v943, 0.01
        %v1164 = vmul.f32 %v1072, 0.01
        %v1165 = vmul.f32 %v1074, 0.01
        %v1166 = vmul.f32 %v947, 0.01
        %v1167 = vmul.f32 %v949, 0.01
        %v1168 = vmul.f32 %v1078, 0.01
        %v1169 = vmul.f32 %v1080, 0.01
        %v1170 = vmul.f32 %v951, 0.01
        %v1171 = vmul.f32 %v953, 0.01
        %v1172 = vmul.f32 %v1082, 0.01
        %v1173 = vmul.f32 %v1084, 0.01
        %v1174 = vmul.f32 %v957, 0.01
        %v1175 = vmul.f32 %v959, 0.01
        %v1176 = vmul.f32 %v1088, 0.01
        %v1177 = vmul.f32 %v1090, 0.01
        %v1178 = vmul.f32 %v961, 0.01
        %v1179 = vmul.f32 %v963, 0.01
        %v1180 = vmul.f32 %v1092, 0.01
        %v1181 = vmul.f32 %v1094, 0.01
        %v1182 = vmul.f32 %v967, 0.01
        %v1183 = vmul.f32 %v969, 0.01
        %v1184 = vmul.f32 %v1098, 0.01
        %v1185 = vmul.f32 %v1100, 0.01
        %v1186 = vmul.f32 %v971, 0.01
        %v1187 = vmul.f32 %v973, 0.01
        %v1188 = vmul.f32 %v1102, 0.01
        %v1189 = vmul.f32 %v1104, 0.01
        %v1190 = vmul.f32 %v977, 0.01
        %v1191 = vmul.f32 %v979, 0.01
        %v1192 = vmul.f32 %v1108, 0.01
        %v1193 = vmul.f32 %v1110, 0.01
        %v1194 = vmul.f32 %v981, 0.01
        %v1195 = vmul.f32 %v983, 0.01
        %v1196 = vmul.f32 %v1112, 0.01
        %v1197 = vmul.f32 %v1114, 0.01
        %v1198 = vmul.f32 %v987, 0.01
        %v1199 = vmul.f32 %v989, 0.01
        %v1200 = vmul.f32 %v1118, 0.01
        %v1201 = vmul.f32 %v1120, 0.01
        %v1202 = vmul.f32 %v991, 0.01
        %v1203 = vmul.f32 %v993, 0.01
        %v1204 = vmul.f32 %v1122, 0.01
        %v1205 = vmul.f32 %v1124, 0.01
        %v1206 = vmul.f32 %v997, 0.01
        %v1207 = vmul.f32 %v999, 0.01
        %v1208 = vmul.f32 %v1128, 0.01
        %v1209 = vmul.f32 %v1130, 0.01
        %v1210 = vmax.f32 %v907, %v1134
        %v1211 = vmax.f32 %v909, %v1135
        %v1212 = vmax.f32 %v1038, %v1136
        %v1213 = vmax.f32 %v1040, %v1137
        %v1214 = vmax.f32 %v911, %v1138
        %v1215 = vmax.f32 %v913, %v1139
        %v1216 = vmax.f32 %v1042, %v1140
        %v1217 = vmax.f32 %v1044, %v1141
        %v1218 = vmax.f32 %v917, %v1142
        %v1219 = vmax.f32 %v919, %v1143
        %v1220 = vmax.f32 %v1048, %v1144
        %v1221 = vmax.f32 %v1050, %v1145
        %v1222 = vmax.f32 %v921, %v1146
        %v1223 = vmax.f32 %v923, %v1147
        %v1224 = vmax.f32 %v1052, %v1148
        %v1225 = vmax.f32 %v1054, %v1149
        %v1226 = vmax.f32 %v927, %v1150
        %v1227 = vmax.f32 %v929, %v1151
        %v1228 = vmax.f32 %v1058, %v1152
        %v1229 = vmax.f32 %v1060, %v1153
        %v1230 = vmax.f32 %v931, %v1154
        %v1231 = vmax.f32 %v933, %v1155
        %v1232 = vmax.f32 %v1062, %v1156
        %v1233 = vmax.f32 %v1064, %v1157
        %v1234 = vmax.f32 %v937, %v1158
        %v1235 = vmax.f32 %v939, %v1159
        %v1236 = vmax.f32 %v1068, %v1160
        %v1237 = vmax.f32 %v1070, %v1161
        %v1238 = vmax.f32 %v941, %v1162
        %v1239 = vmax.f32 %v943, %v1163
        %v1240 = vmax.f32 %v1072, %v1164
        %v1241 = vmax.f32 %v1074, %v1165
        %v1242 = vmax.f32 %v947, %v1166
        %v1243 = vmax.f32 %v949, %v1167
        %v1244 = vmax.f32 %v1078, %v1168
        %v1245 = vmax.f32 %v1080, %v1169
        %v1246 = vmax.f32 %v951, %v1170
        %v1247 = vmax.f32 %v953, %v1171
        %v1248 = vmax.f32 %v1082, %v1172
        %v1249 = vmax.f32 %v1084, %v1173
        %v1250 = vmax.f32 %v957, %v1174
        %v1251 = vmax.f32 %v959, %v1175
        %v1252 = vmax.f32 %v1088, %v1176
        %v1253 = vmax.f32 %v1090, %v1177
        %v1254 = vmax.f32 %v961, %v1178
        %v1255 = vmax.f32 %v963, %v1179
        %v1256 = vmax.f32 %v1092, %v1180
        %v1257 = vmax.f32 %v1094, %v1181
        %v1258 = vmax.f32 %v967, %v1182
        %v1259 = vmax.f32 %v969, %v1183
        %v1260 = vmax.f32 %v1098, %v1184
        %v1261 = vmax.f32 %v1100, %v1185
        %v1262 = vmax.f32 %v971, %v1186
        %v1263 = vmax.f32 %v973, %v1187
        %v1264 = vmax.f32 %v1102, %v1188
        %v1265 = vmax.f32 %v1104, %v1189
        %v1266 = vmax.f32 %v977, %v1190
        %v1267 = vmax.f32 %v979, %v1191
        %v1268 = vmax.f32 %v1108, %v1192
        %v1269 = vmax.f32 %v1110, %v1193
        %v1270 = vmax.f32 %v981, %v1194
        %v1271 = vmax.f32 %v983, %v1195
        %v1272 = vmax.f32 %v1112, %v1196
        %v1273 = vmax.f32 %v1114, %v1197
        %v1274 = vmax.f32 %v987, %v1198
        %v1275 = vmax.f32 %v989, %v1199
        %v1276 = vmax.f32 %v1118, %v1200
        %v1277 = vmax.f32 %v1120, %v1201
        %v1278 = vmax.f32 %v991, %v1202
        %v1279 = vmax.f32 %v993, %v1203
        %v1280 = vmax.f32 %v1122, %v1204
        %v1281 = vmax.f32 %v1124, %v1205
        %v1282 = vmax.f32 %v997, %v1206
        %v1283 = vmax.f32 %v999, %v1207
        %v1284 = vmax.f32 %v1128, %v1208
        %v1285 = vmax.f32 %v1130, %v1209
        %v1286 = vpack.c.bf16 %v1214, %v1210
        %v1287 = vpack.c.bf16 %v1215, %v1211
        %v1288 = vpack.c.bf16 %v1216, %v1212
        %v1289 = vpack.c.bf16 %v1217, %v1213
        %v1290 = vpack.c.bf16 %v1222, %v1218
        %v1291 = vpack.c.bf16 %v1223, %v1219
        %v1292 = vpack.c.bf16 %v1224, %v1220
        %v1293 = vpack.c.bf16 %v1225, %v1221
        %v1294 = vpack.c.bf16 %v1230, %v1226
        %v1295 = vpack.c.bf16 %v1231, %v1227
        %v1296 = vpack.c.bf16 %v1232, %v1228
        %v1297 = vpack.c.bf16 %v1233, %v1229
        %v1298 = vpack.c.bf16 %v1238, %v1234
        %v1299 = vpack.c.bf16 %v1239, %v1235
        %v1300 = vpack.c.bf16 %v1240, %v1236
        %v1301 = vpack.c.bf16 %v1241, %v1237
        %v1302 = vpack.c.bf16 %v1246, %v1242
        %v1303 = vpack.c.bf16 %v1247, %v1243
        %v1304 = vpack.c.bf16 %v1248, %v1244
        %v1305 = vpack.c.bf16 %v1249, %v1245
        %v1306 = vpack.c.bf16 %v1254, %v1250
        %v1307 = vpack.c.bf16 %v1255, %v1251
        %v1308 = vpack.c.bf16 %v1256, %v1252
        %v1309 = vpack.c.bf16 %v1257, %v1253
        %v1310 = vpack.c.bf16 %v1262, %v1258
        %v1311 = vpack.c.bf16 %v1263, %v1259
        %v1312 = vpack.c.bf16 %v1264, %v1260
        %v1313 = vpack.c.bf16 %v1265, %v1261
        %v1314 = vpack.c.bf16 %v1270, %v1266
        %v1315 = vpack.c.bf16 %v1271, %v1267
        %v1316 = vpack.c.bf16 %v1272, %v1268
        %v1317 = vpack.c.bf16 %v1273, %v1269
        %v1318 = vpack.c.bf16 %v1278, %v1274
        %v1319 = vpack.c.bf16 %v1279, %v1275
        %v1320 = vpack.c.bf16 %v1280, %v1276
        %v1321 = vpack.c.bf16 %v1281, %v1277
        %v1322 = vpack.c.bf16 %v1282, %v1282
        %v1323 = vpack.c.bf16 %v1283, %v1283
        %v1324 = vpack.c.bf16 %v1284, %v1284
        %v1325 = vpack.c.bf16 %v1285, %v1285
        %v1326 = vld [vmem:[%s3] sm:$0xff]
        %v1327 = vld [vmem:[%s3 + $0x8] sm:$0xff]
        %v1328 = vld [vmem:[%s3 + $0x10] sm:$0xff]
        %v1329 = vld [vmem:[%s3 + $0x18] sm:$0xff]
        %v1330 = vld [vmem:[%s3 + $0x20] sm:$0xff]
        %v1331 = vld [vmem:[%s3 + $0x28] sm:$0xff]
        %v1332 = vld [vmem:[%s3 + $0x30] sm:$0xff]
        %v1333 = vld [vmem:[%s3 + $0x38] sm:$0xff]
        %v1334 = vld [vmem:[%s3 + $0x40] sm:$0xff]
        %v1335 = vld [vmem:[%s3 + $0x48] sm:$0xff]
        %v1336 = vld [vmem:[%s3 + $0x50] sm:$0xff]
        %v1337 = vld [vmem:[%s3 + $0x58] sm:$0xff]
        %v1338 = vld [vmem:[%s3 + $0x60] sm:$0xff]
        %v1339 = vld [vmem:[%s3 + $0x68] sm:$0xff]
        %v1340 = vld [vmem:[%s3 + $0x70] sm:$0xff]
        %v1341 = vld [vmem:[%s3 + $0x78] sm:$0xff]
        %v1342 = vld [vmem:[%s3 + $0x80] sm:$0xff]
        %v1343 = vld [vmem:[%s3 + $0x88] sm:$0xff]
        %v1344 = vld [vmem:[%s3 + $0x90] sm:$0xff]
        %v1345 = vld [vmem:[%s3 + $0x98] sm:$0xff]
        %v1346 = vld [vmem:[%s3 + $0xa0] sm:$0xff]
        %v1347 = vld [vmem:[%s3 + $0xa8] sm:$0xff]
        %v1348 = vld [vmem:[%s3 + $0xb0] sm:$0xff]
        %v1349 = vld [vmem:[%s3 + $0xb8] sm:$0xff]
        %v1350 = vld [vmem:[%s3 + $0xc0] sm:$0xff]
        %v1351 = vld [vmem:[%s3 + $0xc8] sm:$0xff]
        %v1352 = vld [vmem:[%s3 + $0xd0] sm:$0xff]
        %v1353 = vld [vmem:[%s3 + $0xd8] sm:$0xff]
        %v1354 = vld [vmem:[%s3 + $0xe0] sm:$0xff]
        %v1355 = vld [vmem:[%s3 + $0xe8] sm:$0xff]
        %v1356 = vld [vmem:[%s3 + $0xf0] sm:$0xff]
        %v1357 = vld [vmem:[%s3 + $0xf8] sm:$0xff]
        %v1358 = vld [vmem:[%s3 + $0x100] sm:$0xff]
        %v1359 = vld [vmem:[%s3 + $0x108] sm:$0xff]
        %v1360 = vld [vmem:[%s3 + $0x110] sm:$0xff]
        %v1361 = vld [vmem:[%s3 + $0x118] sm:$0xff]
        %v1362 = vld [vmem:[%s3 + $0x120] sm:$0xff]
        %v1363 = vld [vmem:[%s3 + $0x128] sm:$0xff]
        %v1364 = vld [vmem:[%s3 + $0x130] sm:$0xff]
        %v1365 = vld [vmem:[%s3 + $0x138] sm:$0xff]
        %v1366 = vld [vmem:[%s3 + $0x140] sm:$0xff]
        %v1367 = vld [vmem:[%s3 + $0x148] sm:$0xff]
        %v1368 = vld [vmem:[%s3 + $0x150] sm:$0xff]
        %v1369 = vld [vmem:[%s3 + $0x158] sm:$0xff]
        %v1370 = vld [vmem:[%s3 + $0x160] sm:$0xff]
        %v1371 = vld [vmem:[%s3 + $0x168] sm:$0xff]
        %v1372 = vld [vmem:[%s3 + $0x170] sm:$0xff]
        %v1373 = vld [vmem:[%s3 + $0x178] sm:$0xff]
        %v1374 = vld [vmem:[%s3 + $0x180] sm:$0xff]
        %v1375 = vld [vmem:[%s3 + $0x188] sm:$0xff]
        %v1376 = vld [vmem:[%s3 + $0x190] sm:$0xff]
        %v1377 = vld [vmem:[%s3 + $0x198] sm:$0xff]
        %v1378 = vld [vmem:[%s3 + $0x1a0] sm:$0xff]
        %v1379 = vld [vmem:[%s3 + $0x1a8] sm:$0xff]
        %v1380 = vld [vmem:[%s3 + $0x1b0] sm:$0xff]
        %v1381 = vld [vmem:[%s3 + $0x1b8] sm:$0xff]
        %v1382 = vld [vmem:[%s3 + $0x1c0] sm:$0xff]
        %v1383 = vld [vmem:[%s3 + $0x1c8] sm:$0xff]
        %v1384 = vld [vmem:[%s3 + $0x1d0] sm:$0xff]
        %v1385 = vld [vmem:[%s3 + $0x1d8] sm:$0xff]
        %v1386 = vld [vmem:[%s3 + $0x1e0] sm:$0xff]
        %v1387 = vld [vmem:[%s3 + $0x1e8] sm:$0xff]
        %v1388 = vld [vmem:[%s3 + $0x1f0] sm:$0xff]
        %v1389 = vld [vmem:[%s3 + $0x1f8] sm:$0xff]
        %v1390 = vld [vmem:[%s4] sm:$0x3]
        %v1392 = vlaneseq
        %v1393 = vshrl.u32 %v1392, 7
        %v1394 = vsub.s32 0, %v1393
        %v1395 = vrot.slane %v1390, %v1394
        %v1396 = vlaneseq
        %v1397 = vshrl.u32 %v1396, 7
        %v1398 = vsub.s32 1, %v1397
        %v1399 = vrot.slane %v1390, %v1398
        %v1466 = vunpack.c.l.b16 %v1326
        %v1467 = vunpack.c.h.b16 %v1326
        %v1468 = vunpack.c.l.b16 %v1327
        %v1469 = vunpack.c.h.b16 %v1327
        %v1470 = vunpack.c.l.b16 %v1328
        %v1471 = vunpack.c.h.b16 %v1328
        %v1472 = vunpack.c.l.b16 %v1329
        %v1473 = vunpack.c.h.b16 %v1329
        %v1474 = vunpack.c.l.b16 %v1330
        %v1475 = vunpack.c.h.b16 %v1330
        %v1476 = vunpack.c.l.b16 %v1331
        %v1477 = vunpack.c.h.b16 %v1331
        %v1478 = vunpack.c.l.b16 %v1332
        %v1479 = vunpack.c.h.b16 %v1332
        %v1480 = vunpack.c.l.b16 %v1333
        %v1481 = vunpack.c.h.b16 %v1333
        %v1482 = vunpack.c.l.b16 %v1334
        %v1483 = vunpack.c.h.b16 %v1334
        %v1484 = vunpack.c.l.b16 %v1335
        %v1485 = vunpack.c.h.b16 %v1335
        %v1486 = vunpack.c.l.b16 %v1336
        %v1487 = vunpack.c.h.b16 %v1336
        %v1488 = vunpack.c.l.b16 %v1337
        %v1489 = vunpack.c.h.b16 %v1337
        %v1490 = vunpack.c.l.b16 %v1338
        %v1491 = vunpack.c.h.b16 %v1338
        %v1492 = vunpack.c.l.b16 %v1339
        %v1493 = vunpack.c.h.b16 %v1339
        %v1494 = vunpack.c.l.b16 %v1340
        %v1495 = vunpack.c.h.b16 %v1340
        %v1496 = vunpack.c.l.b16 %v1341
        %v1497 = vunpack.c.h.b16 %v1341
        %v1498 = vunpack.c.l.b16 %v1342
        %v1499 = vunpack.c.h.b16 %v1342
        %v1500 = vunpack.c.l.b16 %v1343
        %v1501 = vunpack.c.h.b16 %v1343
        %v1502 = vunpack.c.l.b16 %v1344
        %v1503 = vunpack.c.h.b16 %v1344
        %v1504 = vunpack.c.l.b16 %v1345
        %v1505 = vunpack.c.h.b16 %v1345
        %v1506 = vunpack.c.l.b16 %v1346
        %v1507 = vunpack.c.h.b16 %v1346
        %v1508 = vunpack.c.l.b16 %v1347
        %v1509 = vunpack.c.h.b16 %v1347
        %v1510 = vunpack.c.l.b16 %v1348
        %v1511 = vunpack.c.h.b16 %v1348
        %v1512 = vunpack.c.l.b16 %v1349
        %v1513 = vunpack.c.h.b16 %v1349
        %v1514 = vunpack.c.l.b16 %v1350
        %v1515 = vunpack.c.h.b16 %v1350
        %v1516 = vunpack.c.l.b16 %v1351
        %v1517 = vunpack.c.h.b16 %v1351
        %v1518 = vunpack.c.l.b16 %v1352
        %v1519 = vunpack.c.h.b16 %v1352
        %v1520 = vunpack.c.l.b16 %v1353
        %v1521 = vunpack.c.h.b16 %v1353
        %v1522 = vunpack.c.l.b16 %v1354
        %v1523 = vunpack.c.h.b16 %v1354
        %v1524 = vunpack.c.l.b16 %v1355
        %v1525 = vunpack.c.h.b16 %v1355
        %v1526 = vunpack.c.l.b16 %v1356
        %v1527 = vunpack.c.h.b16 %v1356
        %v1528 = vunpack.c.l.b16 %v1357
        %v1529 = vunpack.c.h.b16 %v1357
        %v1530 = vunpack.c.l.b16 %v1358
        %v1531 = vunpack.c.h.b16 %v1358
        %v1532 = vunpack.c.l.b16 %v1359
        %v1533 = vunpack.c.h.b16 %v1359
        %v1534 = vunpack.c.l.b16 %v1360
        %v1535 = vunpack.c.h.b16 %v1360
        %v1536 = vunpack.c.l.b16 %v1361
        %v1537 = vunpack.c.h.b16 %v1361
        %v1538 = vunpack.c.l.b16 %v1362
        %v1539 = vunpack.c.h.b16 %v1362
        %v1540 = vunpack.c.l.b16 %v1363
        %v1541 = vunpack.c.h.b16 %v1363
        %v1542 = vunpack.c.l.b16 %v1364
        %v1543 = vunpack.c.h.b16 %v1364
        %v1544 = vunpack.c.l.b16 %v1365
        %v1545 = vunpack.c.h.b16 %v1365
        %v1546 = vunpack.c.l.b16 %v1366
        %v1547 = vunpack.c.h.b16 %v1366
        %v1548 = vunpack.c.l.b16 %v1367
        %v1549 = vunpack.c.h.b16 %v1367
        %v1550 = vunpack.c.l.b16 %v1368
        %v1551 = vunpack.c.h.b16 %v1368
        %v1552 = vunpack.c.l.b16 %v1369
        %v1553 = vunpack.c.h.b16 %v1369
        %v1554 = vunpack.c.l.b16 %v1370
        %v1555 = vunpack.c.h.b16 %v1370
        %v1556 = vunpack.c.l.b16 %v1371
        %v1557 = vunpack.c.h.b16 %v1371
        %v1558 = vunpack.c.l.b16 %v1372
        %v1559 = vunpack.c.h.b16 %v1372
        %v1560 = vunpack.c.l.b16 %v1373
        %v1561 = vunpack.c.h.b16 %v1373
        %v1562 = vunpack.c.l.b16 %v1374
        %v1563 = vunpack.c.h.b16 %v1374
        %v1564 = vunpack.c.l.b16 %v1375
        %v1565 = vunpack.c.h.b16 %v1375
        %v1566 = vunpack.c.l.b16 %v1376
        %v1567 = vunpack.c.h.b16 %v1376
        %v1568 = vunpack.c.l.b16 %v1377
        %v1569 = vunpack.c.h.b16 %v1377
        %v1570 = vunpack.c.l.b16 %v1378
        %v1571 = vunpack.c.h.b16 %v1378
        %v1572 = vunpack.c.l.b16 %v1379
        %v1573 = vunpack.c.h.b16 %v1379
        %v1574 = vunpack.c.l.b16 %v1380
        %v1575 = vunpack.c.h.b16 %v1380
        %v1576 = vunpack.c.l.b16 %v1381
        %v1577 = vunpack.c.h.b16 %v1381
        %v1578 = vunpack.c.l.b16 %v1382
        %v1579 = vunpack.c.h.b16 %v1382
        %v1580 = vunpack.c.l.b16 %v1383
        %v1581 = vunpack.c.h.b16 %v1383
        %v1582 = vunpack.c.l.b16 %v1384
        %v1583 = vunpack.c.h.b16 %v1384
        %v1584 = vunpack.c.l.b16 %v1385
        %v1585 = vunpack.c.h.b16 %v1385
        %v1586 = vunpack.c.l.b16 %v1386
        %v1587 = vunpack.c.h.b16 %v1386
        %v1588 = vunpack.c.l.b16 %v1387
        %v1589 = vunpack.c.h.b16 %v1387
        %v1590 = vunpack.c.l.b16 %v1388
        %v1591 = vunpack.c.h.b16 %v1388
        %v1592 = vunpack.c.l.b16 %v1389
        %v1593 = vunpack.c.h.b16 %v1389
        %v1594 = vpack.c.b16 %v1468, %v1466
        %v1595 = vpack.c.b16 %v1469, %v1467
        %v1596 = vpack.c.b16 %v1472, %v1470
        %v1597 = vpack.c.b16 %v1473, %v1471
        %v1598 = vpack.c.b16 %v1476, %v1474
        %v1599 = vpack.c.b16 %v1477, %v1475
        %v1600 = vpack.c.b16 %v1480, %v1478
        %v1601 = vpack.c.b16 %v1481, %v1479
        %v1602 = vpack.c.b16 %v1484, %v1482
        %v1603 = vpack.c.b16 %v1485, %v1483
        %v1604 = vpack.c.b16 %v1488, %v1486
        %v1605 = vpack.c.b16 %v1489, %v1487
        %v1606 = vpack.c.b16 %v1492, %v1490
        %v1607 = vpack.c.b16 %v1493, %v1491
        %v1608 = vpack.c.b16 %v1496, %v1494
        %v1609 = vpack.c.b16 %v1497, %v1495
        %v1610 = vpack.c.b16 %v1500, %v1498
        %v1611 = vpack.c.b16 %v1501, %v1499
        %v1612 = vpack.c.b16 %v1504, %v1502
        %v1613 = vpack.c.b16 %v1505, %v1503
        %v1614 = vpack.c.b16 %v1508, %v1506
        %v1615 = vpack.c.b16 %v1509, %v1507
        %v1616 = vpack.c.b16 %v1512, %v1510
        %v1617 = vpack.c.b16 %v1513, %v1511
        %v1618 = vpack.c.b16 %v1516, %v1514
        %v1619 = vpack.c.b16 %v1517, %v1515
        %v1620 = vpack.c.b16 %v1520, %v1518
        %v1621 = vpack.c.b16 %v1521, %v1519
        %v1622 = vpack.c.b16 %v1524, %v1522
        %v1623 = vpack.c.b16 %v1525, %v1523
        %v1624 = vpack.c.b16 %v1528, %v1526
        %v1625 = vpack.c.b16 %v1529, %v1527
        %v1626 = vpack.c.b16 %v1532, %v1530
        %v1627 = vpack.c.b16 %v1533, %v1531
        %v1628 = vpack.c.b16 %v1536, %v1534
        %v1629 = vpack.c.b16 %v1537, %v1535
        %v1630 = vpack.c.b16 %v1540, %v1538
        %v1631 = vpack.c.b16 %v1541, %v1539
        %v1632 = vpack.c.b16 %v1544, %v1542
        %v1633 = vpack.c.b16 %v1545, %v1543
        %v1634 = vpack.c.b16 %v1548, %v1546
        %v1635 = vpack.c.b16 %v1549, %v1547
        %v1636 = vpack.c.b16 %v1552, %v1550
        %v1637 = vpack.c.b16 %v1553, %v1551
        %v1638 = vpack.c.b16 %v1556, %v1554
        %v1639 = vpack.c.b16 %v1557, %v1555
        %v1640 = vpack.c.b16 %v1560, %v1558
        %v1641 = vpack.c.b16 %v1561, %v1559
        %v1642 = vpack.c.b16 %v1564, %v1562
        %v1643 = vpack.c.b16 %v1565, %v1563
        %v1644 = vpack.c.b16 %v1568, %v1566
        %v1645 = vpack.c.b16 %v1569, %v1567
        %v1646 = vpack.c.b16 %v1572, %v1570
        %v1647 = vpack.c.b16 %v1573, %v1571
        %v1648 = vpack.c.b16 %v1576, %v1574
        %v1649 = vpack.c.b16 %v1577, %v1575
        %v1650 = vpack.c.b16 %v1580, %v1578
        %v1651 = vpack.c.b16 %v1581, %v1579
        %v1652 = vpack.c.b16 %v1584, %v1582
        %v1653 = vpack.c.b16 %v1585, %v1583
        %v1654 = vpack.c.b16 %v1588, %v1586
        %v1655 = vpack.c.b16 %v1589, %v1587
        %v1656 = vpack.c.b16 %v1592, %v1590
        %v1657 = vpack.c.b16 %v1593, %v1591
        %1722 = vmatprep.subr.bf16.mxu0 %v1609
        %1723 = vmatpush1.bf16.msra.mxu0 %v1608
        %1724 = vmatprep.subr.bf16.mxu0 %v1607
        %1725 = vmatpush1.bf16.msra.mxu0 %v1606
        %1726 = vmatprep.subr.bf16.mxu0 %v1605
        %1727 = vmatpush1.bf16.msra.mxu0 %v1604
        %1728 = vmatprep.subr.bf16.mxu0 %v1603
        %1729 = vmatpush1.bf16.msra.mxu0 %v1602
        %1730 = vmatprep.subr.bf16.mxu0 %v1601
        %1731 = vmatpush1.bf16.msra.mxu0 %v1600
        %1732 = vmatprep.subr.bf16.mxu0 %v1599
        %1733 = vmatpush1.bf16.msra.mxu0 %v1598
        %1734 = vmatprep.subr.bf16.mxu0 %v1597
        %1735 = vmatpush1.bf16.msra.mxu0 %v1596
        %1736 = vmatprep.subr.bf16.mxu0 %v1595
        %1737 = vmatpush1.bf16.msra.mxu0 %v1594
        %1738 = vmatprep.subr.bf16.mxu0 %v1625
        %1739 = vmatpush2.bf16.msra.mxu0 %v1624
        %1740 = vmatprep.subr.bf16.mxu0 %v1623
        %1741 = vmatpush2.bf16.msra.mxu0 %v1622
        %1742 = vmatprep.subr.bf16.mxu0 %v1621
        %1743 = vmatpush2.bf16.msra.mxu0 %v1620
        %1744 = vmatprep.subr.bf16.mxu0 %v1619
        %1745 = vmatpush2.bf16.msra.mxu0 %v1618
        %1746 = vmatprep.subr.bf16.mxu0 %v1617
        %1747 = vmatpush2.bf16.msra.mxu0 %v1616
        %1748 = vmatprep.subr.bf16.mxu0 %v1615
        %1749 = vmatpush2.bf16.msra.mxu0 %v1614
        %1750 = vmatprep.subr.bf16.mxu0 %v1613
        %1751 = vmatpush2.bf16.msra.mxu0 %v1612
        %1752 = vmatprep.subr.bf16.mxu0 %v1611
        %1753 = vmatpush2.bf16.msra.mxu0 %v1610
        %1754 = vmatprep.mubr.bf16.mxu0 %v1287
        %1755 = vmatmul.mubr.bf16.gmra.mxu0 %v1286
        %v1756 = vpop.f32.mrf.mxu0
        %v1757 = vadd.f32 %v1395, %v1756
        %v1758 = vpop.f32.mrf.mxu0
        %v1759 = vadd.f32 %v1399, %v1758
        %v1760 = vpop.f32.mrf.mxu0
        %v1761 = vadd.f32 %v1395, %v1760
        %v1762 = vpop.f32.mrf.mxu0
        %v1763 = vadd.f32 %v1399, %v1762
        %1764 = vmatprep.mubr.bf16.mxu0 %v1291
        %1765 = vmatmul.mubr.bf16.gmra.mxu0 %v1290
        %v1766 = vpop.f32.mrf.mxu0
        %v1767 = vadd.f32 %v1395, %v1766
        %v1768 = vpop.f32.mrf.mxu0
        %v1769 = vadd.f32 %v1399, %v1768
        %v1770 = vpop.f32.mrf.mxu0
        %v1771 = vadd.f32 %v1395, %v1770
        %v1772 = vpop.f32.mrf.mxu0
        %v1773 = vadd.f32 %v1399, %v1772
        %1774 = vmatprep.mubr.bf16.mxu0 %v1295
        %1775 = vmatmul.mubr.bf16.gmra.mxu0 %v1294
        %v1776 = vpop.f32.mrf.mxu0
        %v1777 = vadd.f32 %v1395, %v1776
        %v1778 = vpop.f32.mrf.mxu0
        %v1779 = vadd.f32 %v1399, %v1778
        %v1780 = vpop.f32.mrf.mxu0
        %v1781 = vadd.f32 %v1395, %v1780
        %v1782 = vpop.f32.mrf.mxu0
        %v1783 = vadd.f32 %v1399, %v1782
        %1784 = vmatprep.mubr.bf16.mxu0 %v1299
        %1785 = vmatmul.mubr.bf16.gmra.mxu0 %v1298
        %v1786 = vpop.f32.mrf.mxu0
        %v1787 = vadd.f32 %v1395, %v1786
        %v1788 = vpop.f32.mrf.mxu0
        %v1789 = vadd.f32 %v1399, %v1788
        %v1790 = vpop.f32.mrf.mxu0
        %v1791 = vadd.f32 %v1395, %v1790
        %v1792 = vpop.f32.mrf.mxu0
        %v1793 = vadd.f32 %v1399, %v1792
        %1794 = vmatprep.mubr.bf16.mxu0 %v1303
        %1795 = vmatmul.mubr.bf16.gmra.mxu0 %v1302
        %v1796 = vpop.f32.mrf.mxu0
        %v1797 = vadd.f32 %v1395, %v1796
        %v1798 = vpop.f32.mrf.mxu0
        %v1799 = vadd.f32 %v1399, %v1798
        %v1800 = vpop.f32.mrf.mxu0
        %v1801 = vadd.f32 %v1395, %v1800
        %v1802 = vpop.f32.mrf.mxu0
        %v1803 = vadd.f32 %v1399, %v1802
        %1804 = vmatprep.mubr.bf16.mxu0 %v1307
        %1805 = vmatmul.mubr.bf16.gmra.mxu0 %v1306
        %v1806 = vpop.f32.mrf.mxu0
        %v1807 = vadd.f32 %v1395, %v1806
        %v1808 = vpop.f32.mrf.mxu0
        %v1809 = vadd.f32 %v1399, %v1808
        %v1810 = vpop.f32.mrf.mxu0
        %v1811 = vadd.f32 %v1395, %v1810
        %v1812 = vpop.f32.mrf.mxu0
        %v1813 = vadd.f32 %v1399, %v1812
        %1814 = vmatprep.mubr.bf16.mxu0 %v1311
        %1815 = vmatmul.mubr.bf16.gmra.mxu0 %v1310
        %v1816 = vpop.f32.mrf.mxu0
        %v1817 = vadd.f32 %v1395, %v1816
        %v1818 = vpop.f32.mrf.mxu0
        %v1819 = vadd.f32 %v1399, %v1818
        %v1820 = vpop.f32.mrf.mxu0
        %v1821 = vadd.f32 %v1395, %v1820
        %v1822 = vpop.f32.mrf.mxu0
        %v1823 = vadd.f32 %v1399, %v1822
        %1824 = vmatprep.mubr.bf16.mxu0 %v1315
        %1825 = vmatmul.mubr.bf16.gmra.mxu0 %v1314
        %v1826 = vpop.f32.mrf.mxu0
        %v1827 = vadd.f32 %v1395, %v1826
        %v1828 = vpop.f32.mrf.mxu0
        %v1829 = vadd.f32 %v1399, %v1828
        %v1830 = vpop.f32.mrf.mxu0
        %v1831 = vadd.f32 %v1395, %v1830
        %v1832 = vpop.f32.mrf.mxu0
        %v1833 = vadd.f32 %v1399, %v1832
        %1834 = vmatprep.mubr.bf16.mxu0 %v1319
        %1835 = vmatmul.mubr.bf16.gmra.mxu0 %v1318
        %v1836 = vpop.f32.mrf.mxu0
        %v1837 = vadd.f32 %v1395, %v1836
        %v1838 = vpop.f32.mrf.mxu0
        %v1839 = vadd.f32 %v1399, %v1838
        %v1840 = vpop.f32.mrf.mxu0
        %v1841 = vadd.f32 %v1395, %v1840
        %v1842 = vpop.f32.mrf.mxu0
        %v1843 = vadd.f32 %v1399, %v1842
        %1844 = vmatprep.mubr.bf16.mxu0 %v1323
        %1845 = vmatmul.mubr.bf16.gmra.mxu0 %v1322
        %v1846 = vpop.f32.mrf.mxu0
        %v1847 = vadd.f32 %v1395, %v1846
        %v1848 = vpop.f32.mrf.mxu0
        %v1849 = vadd.f32 %v1399, %v1848
        %v1850 = vpop.f32.mrf.mxu0
        %v1851 = vpop.f32.mrf.mxu0
        %1852 = vdwg.mxu0
        %1853 = vmatprep.subr.bf16.mxu0 %v1641
        %1854 = vmatpush1.bf16.msra.mxu0 %v1640
        %1855 = vmatprep.subr.bf16.mxu0 %v1639
        %1856 = vmatpush1.bf16.msra.mxu0 %v1638
        %1857 = vmatprep.subr.bf16.mxu0 %v1637
        %1858 = vmatpush1.bf16.msra.mxu0 %v1636
        %1859 = vmatprep.subr.bf16.mxu0 %v1635
        %1860 = vmatpush1.bf16.msra.mxu0 %v1634
        %1861 = vmatprep.subr.bf16.mxu0 %v1633
        %1862 = vmatpush1.bf16.msra.mxu0 %v1632
        %1863 = vmatprep.subr.bf16.mxu0 %v1631
        %1864 = vmatpush1.bf16.msra.mxu0 %v1630
        %1865 = vmatprep.subr.bf16.mxu0 %v1629
        %1866 = vmatpush1.bf16.msra.mxu0 %v1628
        %1867 = vmatprep.subr.bf16.mxu0 %v1627
        %1868 = vmatpush1.bf16.msra.mxu0 %v1626
        %1869 = vmatprep.subr.bf16.mxu0 %v1657
        %1870 = vmatpush2.bf16.msra.mxu0 %v1656
        %1871 = vmatprep.subr.bf16.mxu0 %v1655
        %1872 = vmatpush2.bf16.msra.mxu0 %v1654
        %1873 = vmatprep.subr.bf16.mxu0 %v1653
        %1874 = vmatpush2.bf16.msra.mxu0 %v1652
        %1875 = vmatprep.subr.bf16.mxu0 %v1651
        %1876 = vmatpush2.bf16.msra.mxu0 %v1650
        %1877 = vmatprep.subr.bf16.mxu0 %v1649
        %1878 = vmatpush2.bf16.msra.mxu0 %v1648
        %1879 = vmatprep.subr.bf16.mxu0 %v1647
        %1880 = vmatpush2.bf16.msra.mxu0 %v1646
        %1881 = vmatprep.subr.bf16.mxu0 %v1645
        %1882 = vmatpush2.bf16.msra.mxu0 %v1644
        %1883 = vmatprep.subr.bf16.mxu0 %v1643
        %1884 = vmatpush2.bf16.msra.mxu0 %v1642
        %1885 = vmatprep.mubr.bf16.mxu0 %v1289
        %1886 = vmatmul.mubr.bf16.gmra.mxu0 %v1288
        %v1887 = vpop.f32.mrf.mxu0
        %v1888 = vadd.f32 %v1757, %v1887
        %v1889 = vpop.f32.mrf.mxu0
        %v1890 = vadd.f32 %v1759, %v1889
        %v1891 = vpop.f32.mrf.mxu0
        %v1892 = vadd.f32 %v1761, %v1891
        %v1893 = vpop.f32.mrf.mxu0
        %v1894 = vadd.f32 %v1763, %v1893
        %1895 = vmatprep.mubr.bf16.mxu0 %v1293
        %1896 = vmatmul.mubr.bf16.gmra.mxu0 %v1292
        %v1897 = vpop.f32.mrf.mxu0
        %v1898 = vadd.f32 %v1767, %v1897
        %v1899 = vpop.f32.mrf.mxu0
        %v1900 = vadd.f32 %v1769, %v1899
        %v1901 = vpop.f32.mrf.mxu0
        %v1902 = vadd.f32 %v1771, %v1901
        %v1903 = vpop.f32.mrf.mxu0
        %v1904 = vadd.f32 %v1773, %v1903
        %1905 = vmatprep.mubr.bf16.mxu0 %v1297
        %1906 = vmatmul.mubr.bf16.gmra.mxu0 %v1296
        %v1907 = vpop.f32.mrf.mxu0
        %v1908 = vadd.f32 %v1777, %v1907
        %v1909 = vpop.f32.mrf.mxu0
        %v1910 = vadd.f32 %v1779, %v1909
        %v1911 = vpop.f32.mrf.mxu0
        %v1912 = vadd.f32 %v1781, %v1911
        %v1913 = vpop.f32.mrf.mxu0
        %v1914 = vadd.f32 %v1783, %v1913
        %1915 = vmatprep.mubr.bf16.mxu0 %v1301
        %1916 = vmatmul.mubr.bf16.gmra.mxu0 %v1300
        %v1917 = vpop.f32.mrf.mxu0
        %v1918 = vadd.f32 %v1787, %v1917
        %v1919 = vpop.f32.mrf.mxu0
        %v1920 = vadd.f32 %v1789, %v1919
        %v1921 = vpop.f32.mrf.mxu0
        %v1922 = vadd.f32 %v1791, %v1921
        %v1923 = vpop.f32.mrf.mxu0
        %v1924 = vadd.f32 %v1793, %v1923
        %1925 = vmatprep.mubr.bf16.mxu0 %v1305
        %1926 = vmatmul.mubr.bf16.gmra.mxu0 %v1304
        %v1927 = vpop.f32.mrf.mxu0
        %v1928 = vadd.f32 %v1797, %v1927
        %v1929 = vpop.f32.mrf.mxu0
        %v1930 = vadd.f32 %v1799, %v1929
        %v1931 = vpop.f32.mrf.mxu0
        %v1932 = vadd.f32 %v1801, %v1931
        %v1933 = vpop.f32.mrf.mxu0
        %v1934 = vadd.f32 %v1803, %v1933
        %1935 = vmatprep.mubr.bf16.mxu0 %v1309
        %1936 = vmatmul.mubr.bf16.gmra.mxu0 %v1308
        %v1937 = vpop.f32.mrf.mxu0
        %v1938 = vadd.f32 %v1807, %v1937
        %v1939 = vpop.f32.mrf.mxu0
        %v1940 = vadd.f32 %v1809, %v1939
        %v1941 = vpop.f32.mrf.mxu0
        %v1942 = vadd.f32 %v1811, %v1941
        %v1943 = vpop.f32.mrf.mxu0
        %v1944 = vadd.f32 %v1813, %v1943
        %1945 = vmatprep.mubr.bf16.mxu0 %v1313
        %1946 = vmatmul.mubr.bf16.gmra.mxu0 %v1312
        %v1947 = vpop.f32.mrf.mxu0
        %v1948 = vadd.f32 %v1817, %v1947
        %v1949 = vpop.f32.mrf.mxu0
        %v1950 = vadd.f32 %v1819, %v1949
        %v1951 = vpop.f32.mrf.mxu0
        %v1952 = vadd.f32 %v1821, %v1951
        %v1953 = vpop.f32.mrf.mxu0
        %v1954 = vadd.f32 %v1823, %v1953
        %1955 = vmatprep.mubr.bf16.mxu0 %v1317
        %1956 = vmatmul.mubr.bf16.gmra.mxu0 %v1316
        %v1957 = vpop.f32.mrf.mxu0
        %v1958 = vadd.f32 %v1827, %v1957
        %v1959 = vpop.f32.mrf.mxu0
        %v1960 = vadd.f32 %v1829, %v1959
        %v1961 = vpop.f32.mrf.mxu0
        %v1962 = vadd.f32 %v1831, %v1961
        %v1963 = vpop.f32.mrf.mxu0
        %v1964 = vadd.f32 %v1833, %v1963
        %1965 = vmatprep.mubr.bf16.mxu0 %v1321
        %1966 = vmatmul.mubr.bf16.gmra.mxu0 %v1320
        %v1967 = vpop.f32.mrf.mxu0
        %v1968 = vadd.f32 %v1837, %v1967
        %v1969 = vpop.f32.mrf.mxu0
        %v1970 = vadd.f32 %v1839, %v1969
        %v1971 = vpop.f32.mrf.mxu0
        %v1972 = vadd.f32 %v1841, %v1971
        %v1973 = vpop.f32.mrf.mxu0
        %v1974 = vadd.f32 %v1843, %v1973
        %1975 = vmatprep.mubr.bf16.mxu0 %v1325
        %1976 = vmatmul.mubr.bf16.gmra.mxu0 %v1324
        %v1977 = vpop.f32.mrf.mxu0
        %v1978 = vadd.f32 %v1847, %v1977
        %v1979 = vpop.f32.mrf.mxu0
        %v1980 = vadd.f32 %v1849, %v1979
        %v1981 = vpop.f32.mrf.mxu0
        %v1982 = vpop.f32.mrf.mxu0
        %1983 = vdwg.mxu0
        %v1984 = vmul.f32 %v1888, 0.01
        %v1985 = vmul.f32 %v1890, 0.01
        %v1986 = vmul.f32 %v1892, 0.01
        %v1987 = vmul.f32 %v1894, 0.01
        %v1988 = vmul.f32 %v1898, 0.01
        %v1989 = vmul.f32 %v1900, 0.01
        %v1990 = vmul.f32 %v1902, 0.01
        %v1991 = vmul.f32 %v1904, 0.01
        %v1992 = vmul.f32 %v1908, 0.01
        %v1993 = vmul.f32 %v1910, 0.01
        %v1994 = vmul.f32 %v1912, 0.01
        %v1995 = vmul.f32 %v1914, 0.01
        %v1996 = vmul.f32 %v1918, 0.01
        %v1997 = vmul.f32 %v1920, 0.01
        %v1998 = vmul.f32 %v1922, 0.01
        %v1999 = vmul.f32 %v1924, 0.01
        %v2000 = vmul.f32 %v1928, 0.01
        %v2001 = vmul.f32 %v1930, 0.01
        %v2002 = vmul.f32 %v1932, 0.01
        %v2003 = vmul.f32 %v1934, 0.01
        %v2004 = vmul.f32 %v1938, 0.01
        %v2005 = vmul.f32 %v1940, 0.01
        %v2006 = vmul.f32 %v1942, 0.01
        %v2007 = vmul.f32 %v1944, 0.01
        %v2008 = vmul.f32 %v1948, 0.01
        %v2009 = vmul.f32 %v1950, 0.01
        %v2010 = vmul.f32 %v1952, 0.01
        %v2011 = vmul.f32 %v1954, 0.01
        %v2012 = vmul.f32 %v1958, 0.01
        %v2013 = vmul.f32 %v1960, 0.01
        %v2014 = vmul.f32 %v1962, 0.01
        %v2015 = vmul.f32 %v1964, 0.01
        %v2016 = vmul.f32 %v1968, 0.01
        %v2017 = vmul.f32 %v1970, 0.01
        %v2018 = vmul.f32 %v1972, 0.01
        %v2019 = vmul.f32 %v1974, 0.01
        %v2020 = vmul.f32 %v1978, 0.01
        %v2021 = vmul.f32 %v1980, 0.01
        %v2022 = vmax.f32 %v1888, %v1984
        %v2023 = vmax.f32 %v1890, %v1985
        %v2024 = vmax.f32 %v1892, %v1986
        %v2025 = vmax.f32 %v1894, %v1987
        %v2026 = vmax.f32 %v1898, %v1988
        %v2027 = vmax.f32 %v1900, %v1989
        %v2028 = vmax.f32 %v1902, %v1990
        %v2029 = vmax.f32 %v1904, %v1991
        %v2030 = vmax.f32 %v1908, %v1992
        %v2031 = vmax.f32 %v1910, %v1993
        %v2032 = vmax.f32 %v1912, %v1994
        %v2033 = vmax.f32 %v1914, %v1995
        %v2034 = vmax.f32 %v1918, %v1996
        %v2035 = vmax.f32 %v1920, %v1997
        %v2036 = vmax.f32 %v1922, %v1998
        %v2037 = vmax.f32 %v1924, %v1999
        %v2038 = vmax.f32 %v1928, %v2000
        %v2039 = vmax.f32 %v1930, %v2001
        %v2040 = vmax.f32 %v1932, %v2002
        %v2041 = vmax.f32 %v1934, %v2003
        %v2042 = vmax.f32 %v1938, %v2004
        %v2043 = vmax.f32 %v1940, %v2005
        %v2044 = vmax.f32 %v1942, %v2006
        %v2045 = vmax.f32 %v1944, %v2007
        %v2046 = vmax.f32 %v1948, %v2008
        %v2047 = vmax.f32 %v1950, %v2009
        %v2048 = vmax.f32 %v1952, %v2010
        %v2049 = vmax.f32 %v1954, %v2011
        %v2050 = vmax.f32 %v1958, %v2012
        %v2051 = vmax.f32 %v1960, %v2013
        %v2052 = vmax.f32 %v1962, %v2014
        %v2053 = vmax.f32 %v1964, %v2015
        %v2054 = vmax.f32 %v1968, %v2016
        %v2055 = vmax.f32 %v1970, %v2017
        %v2056 = vmax.f32 %v1972, %v2018
        %v2057 = vmax.f32 %v1974, %v2019
        %v2058 = vmax.f32 %v1978, %v2020
        %v2059 = vmax.f32 %v1980, %v2021
        %v2060 = vpack.c.bf16 %v2024, %v2022
        %v2061 = vpack.c.bf16 %v2025, %v2023
        %v2062 = vpack.c.bf16 %v2028, %v2026
        %v2063 = vpack.c.bf16 %v2029, %v2027
        %v2064 = vpack.c.bf16 %v2032, %v2030
        %v2065 = vpack.c.bf16 %v2033, %v2031
        %v2066 = vpack.c.bf16 %v2036, %v2034
        %v2067 = vpack.c.bf16 %v2037, %v2035
        %v2068 = vpack.c.bf16 %v2040, %v2038
        %v2069 = vpack.c.bf16 %v2041, %v2039
        %v2070 = vpack.c.bf16 %v2044, %v2042
        %v2071 = vpack.c.bf16 %v2045, %v2043
        %v2072 = vpack.c.bf16 %v2048, %v2046
        %v2073 = vpack.c.bf16 %v2049, %v2047
        %v2074 = vpack.c.bf16 %v2052, %v2050
        %v2075 = vpack.c.bf16 %v2053, %v2051
        %v2076 = vpack.c.bf16 %v2056, %v2054
        %v2077 = vpack.c.bf16 %v2057, %v2055
        %v2078 = vpack.c.bf16 %v2058, %v2058
        %v2079 = vpack.c.bf16 %v2059, %v2059
        %v2080 = vld [vmem:[%s5] sm:$0xf]
        %v2081 = vld [vmem:[%s5 + $0x4] sm:$0xf]
        %v2082 = vld [vmem:[%s5 + $0x8] sm:$0xf]
        %v2083 = vld [vmem:[%s5 + $0xc] sm:$0xf]
        %v2084 = vld [vmem:[%s5 + $0x10] sm:$0xf]
        %v2085 = vld [vmem:[%s5 + $0x14] sm:$0xf]
        %v2086 = vld [vmem:[%s5 + $0x18] sm:$0xf]
        %v2087 = vld [vmem:[%s5 + $0x1c] sm:$0xf]
        %v2088 = vld [vmem:[%s5 + $0x20] sm:$0xf]
        %v2089 = vld [vmem:[%s5 + $0x24] sm:$0xf]
        %v2090 = vld [vmem:[%s5 + $0x28] sm:$0xf]
        %v2091 = vld [vmem:[%s5 + $0x2c] sm:$0xf]
        %v2092 = vld [vmem:[%s5 + $0x30] sm:$0xf]
        %v2093 = vld [vmem:[%s5 + $0x34] sm:$0xf]
        %v2094 = vld [vmem:[%s5 + $0x38] sm:$0xf]
        %v2095 = vld [vmem:[%s5 + $0x3c] sm:$0xf]
        %v2096 = vld [vmem:[%s5 + $0x40] sm:$0xf]
        %v2097 = vld [vmem:[%s5 + $0x44] sm:$0xf]
        %v2098 = vld [vmem:[%s5 + $0x48] sm:$0xf]
        %v2099 = vld [vmem:[%s5 + $0x4c] sm:$0xf]
        %v2100 = vld [vmem:[%s5 + $0x50] sm:$0xf]
        %v2101 = vld [vmem:[%s5 + $0x54] sm:$0xf]
        %v2102 = vld [vmem:[%s5 + $0x58] sm:$0xf]
        %v2103 = vld [vmem:[%s5 + $0x5c] sm:$0xf]
        %v2104 = vld [vmem:[%s5 + $0x60] sm:$0xf]
        %v2105 = vld [vmem:[%s5 + $0x64] sm:$0xf]
        %v2106 = vld [vmem:[%s5 + $0x68] sm:$0xf]
        %v2107 = vld [vmem:[%s5 + $0x6c] sm:$0xf]
        %v2108 = vld [vmem:[%s5 + $0x70] sm:$0xf]
        %v2109 = vld [vmem:[%s5 + $0x74] sm:$0xf]
        %v2110 = vld [vmem:[%s5 + $0x78] sm:$0xf]
        %v2111 = vld [vmem:[%s5 + $0x7c] sm:$0xf]
        %v2112 = vld [vmem:[#allocation6] sm:$0x1]
        %v2114 = vlaneseq
        %v2115 = vshrl.u32 %v2114, 7
        %v2116 = vsub.s32 0, %v2115
        %v2117 = vrot.slane %v2112, %v2116
        %v2151 = vunpack.c.l.b16 %v2080
        %v2152 = vunpack.c.l.b16 %v2081
        %v2153 = vunpack.c.l.b16 %v2082
        %v2154 = vunpack.c.l.b16 %v2083
        %v2155 = vunpack.c.l.b16 %v2084
        %v2156 = vunpack.c.l.b16 %v2085
        %v2157 = vunpack.c.l.b16 %v2086
        %v2158 = vunpack.c.l.b16 %v2087
        %v2159 = vunpack.c.l.b16 %v2088
        %v2160 = vunpack.c.l.b16 %v2089
        %v2161 = vunpack.c.l.b16 %v2090
        %v2162 = vunpack.c.l.b16 %v2091
        %v2163 = vunpack.c.l.b16 %v2092
        %v2164 = vunpack.c.l.b16 %v2093
        %v2165 = vunpack.c.l.b16 %v2094
        %v2166 = vunpack.c.l.b16 %v2095
        %v2167 = vunpack.c.l.b16 %v2096
        %v2168 = vunpack.c.l.b16 %v2097
        %v2169 = vunpack.c.l.b16 %v2098
        %v2170 = vunpack.c.l.b16 %v2099
        %v2171 = vunpack.c.l.b16 %v2100
        %v2172 = vunpack.c.l.b16 %v2101
        %v2173 = vunpack.c.l.b16 %v2102
        %v2174 = vunpack.c.l.b16 %v2103
        %v2175 = vunpack.c.l.b16 %v2104
        %v2176 = vunpack.c.l.b16 %v2105
        %v2177 = vunpack.c.l.b16 %v2106
        %v2178 = vunpack.c.l.b16 %v2107
        %v2179 = vunpack.c.l.b16 %v2108
        %v2180 = vunpack.c.l.b16 %v2109
        %v2181 = vunpack.c.l.b16 %v2110
        %v2182 = vunpack.c.l.b16 %v2111
        %v2183 = vpack.c.b16 %v2152, %v2151
        %v2184 = vpack.c.b16 %v2154, %v2153
        %v2185 = vpack.c.b16 %v2156, %v2155
        %v2186 = vpack.c.b16 %v2158, %v2157
        %v2187 = vpack.c.b16 %v2160, %v2159
        %v2188 = vpack.c.b16 %v2162, %v2161
        %v2189 = vpack.c.b16 %v2164, %v2163
        %v2190 = vpack.c.b16 %v2166, %v2165
        %v2191 = vpack.c.b16 %v2168, %v2167
        %v2192 = vpack.c.b16 %v2170, %v2169
        %v2193 = vpack.c.b16 %v2172, %v2171
        %v2194 = vpack.c.b16 %v2174, %v2173
        %v2195 = vpack.c.b16 %v2176, %v2175
        %v2196 = vpack.c.b16 %v2178, %v2177
        %v2197 = vpack.c.b16 %v2180, %v2179
        %v2198 = vpack.c.b16 %v2182, %v2181
        %2215 = vmatprep.subr.bf16.mxu0 0
        %2216 = vmatpush1.bf16.msra.mxu0 %v2190
        %2217 = vmatprep.subr.bf16.mxu0 0
        %2218 = vmatpush1.bf16.msra.mxu0 %v2189
        %2219 = vmatprep.subr.bf16.mxu0 0
        %2220 = vmatpush1.bf16.msra.mxu0 %v2188
        %2221 = vmatprep.subr.bf16.mxu0 0
        %2222 = vmatpush1.bf16.msra.mxu0 %v2187
        %2223 = vmatprep.subr.bf16.mxu0 0
        %2224 = vmatpush1.bf16.msra.mxu0 %v2186
        %2225 = vmatprep.subr.bf16.mxu0 0
        %2226 = vmatpush1.bf16.msra.mxu0 %v2185
        %2227 = vmatprep.subr.bf16.mxu0 0
        %2228 = vmatpush1.bf16.msra.mxu0 %v2184
        %2229 = vmatprep.subr.bf16.mxu0 0
        %2230 = vmatpush1.bf16.msra.mxu0 %v2183
        %2231 = vmatprep.subr.bf16.mxu0 0
        %2232 = vmatpush2.bf16.msra.mxu0 %v2198
        %2233 = vmatprep.subr.bf16.mxu0 0
        %2234 = vmatpush2.bf16.msra.mxu0 %v2197
        %2235 = vmatprep.subr.bf16.mxu0 0
        %2236 = vmatpush2.bf16.msra.mxu0 %v2196
        %2237 = vmatprep.subr.bf16.mxu0 0
        %2238 = vmatpush2.bf16.msra.mxu0 %v2195
        %2239 = vmatprep.subr.bf16.mxu0 0
        %2240 = vmatpush2.bf16.msra.mxu0 %v2194
        %2241 = vmatprep.subr.bf16.mxu0 0
        %2242 = vmatpush2.bf16.msra.mxu0 %v2193
        %2243 = vmatprep.subr.bf16.mxu0 0
        %2244 = vmatpush2.bf16.msra.mxu0 %v2192
        %2245 = vmatprep.subr.bf16.mxu0 0
        %2246 = vmatpush2.bf16.msra.mxu0 %v2191
        %2247 = vmatprep.mubr.bf16.mxu0 %v2061
        %2248 = vmatmul.mubr.bf16.gmra.mxu0 %v2060
        %v2249 = vpop.f32.mrf.mxu0
        %v2250 = vadd.f32 %v2117, %v2249
        %v2251 = vpop.f32.mrf.mxu0
        %v2252 = vpop.f32.mrf.mxu0
        %v2253 = vadd.f32 %v2117, %v2252
        %v2254 = vpop.f32.mrf.mxu0
        %2255 = vmatprep.mubr.bf16.mxu0 %v2063
        %2256 = vmatmul.mubr.bf16.gmra.mxu0 %v2062
        %v2257 = vpop.f32.mrf.mxu0
        %v2258 = vadd.f32 %v2117, %v2257
        %v2259 = vpop.f32.mrf.mxu0
        %v2260 = vpop.f32.mrf.mxu0
        %v2261 = vadd.f32 %v2117, %v2260
        %v2262 = vpop.f32.mrf.mxu0
        %2263 = vmatprep.mubr.bf16.mxu0 %v2065
        %2264 = vmatmul.mubr.bf16.gmra.mxu0 %v2064
        %v2265 = vpop.f32.mrf.mxu0
        %v2266 = vadd.f32 %v2117, %v2265
        %v2267 = vpop.f32.mrf.mxu0
        %v2268 = vpop.f32.mrf.mxu0
        %v2269 = vadd.f32 %v2117, %v2268
        %v2270 = vpop.f32.mrf.mxu0
        %2271 = vmatprep.mubr.bf16.mxu0 %v2067
        %2272 = vmatmul.mubr.bf16.gmra.mxu0 %v2066
        %v2273 = vpop.f32.mrf.mxu0
        %v2274 = vadd.f32 %v2117, %v2273
        %v2275 = vpop.f32.mrf.mxu0
        %v2276 = vpop.f32.mrf.mxu0
        %v2277 = vadd.f32 %v2117, %v2276
        %v2278 = vpop.f32.mrf.mxu0
        %2279 = vmatprep.mubr.bf16.mxu0 %v2069
        %2280 = vmatmul.mubr.bf16.gmra.mxu0 %v2068
        %v2281 = vpop.f32.mrf.mxu0
        %v2282 = vadd.f32 %v2117, %v2281
        %v2283 = vpop.f32.mrf.mxu0
        %v2284 = vpop.f32.mrf.mxu0
        %v2285 = vadd.f32 %v2117, %v2284
        %v2286 = vpop.f32.mrf.mxu0
        %2287 = vmatprep.mubr.bf16.mxu0 %v2071
        %2288 = vmatmul.mubr.bf16.gmra.mxu0 %v2070
        %v2289 = vpop.f32.mrf.mxu0
        %v2290 = vadd.f32 %v2117, %v2289
        %v2291 = vpop.f32.mrf.mxu0
        %v2292 = vpop.f32.mrf.mxu0
        %v2293 = vadd.f32 %v2117, %v2292
        %v2294 = vpop.f32.mrf.mxu0
        %2295 = vmatprep.mubr.bf16.mxu0 %v2073
        %2296 = vmatmul.mubr.bf16.gmra.mxu0 %v2072
        %v2297 = vpop.f32.mrf.mxu0
        %v2298 = vadd.f32 %v2117, %v2297
        %v2299 = vpop.f32.mrf.mxu0
        %v2300 = vpop.f32.mrf.mxu0
        %v2301 = vadd.f32 %v2117, %v2300
        %v2302 = vpop.f32.mrf.mxu0
        %2303 = vmatprep.mubr.bf16.mxu0 %v2075
        %2304 = vmatmul.mubr.bf16.gmra.mxu0 %v2074
        %v2305 = vpop.f32.mrf.mxu0
        %v2306 = vadd.f32 %v2117, %v2305
        %v2307 = vpop.f32.mrf.mxu0
        %v2308 = vpop.f32.mrf.mxu0
        %v2309 = vadd.f32 %v2117, %v2308
        %v2310 = vpop.f32.mrf.mxu0
        %2311 = vmatprep.mubr.bf16.mxu0 %v2077
        %2312 = vmatmul.mubr.bf16.gmra.mxu0 %v2076
        %v2313 = vpop.f32.mrf.mxu0
        %v2314 = vadd.f32 %v2117, %v2313
        %v2315 = vpop.f32.mrf.mxu0
        %v2316 = vpop.f32.mrf.mxu0
        %v2317 = vadd.f32 %v2117, %v2316
        %v2318 = vpop.f32.mrf.mxu0
        %2319 = vmatprep.mubr.bf16.mxu0 %v2079
        %2320 = vmatmul.mubr.bf16.gmra.mxu0 %v2078
        %v2321 = vpop.f32.mrf.mxu0
        %v2322 = vadd.f32 %v2117, %v2321
        %v2323 = vpop.f32.mrf.mxu0
        %v2324 = vpop.f32.mrf.mxu0
        %v2325 = vpop.f32.mrf.mxu0
        %2326 = vdwg.mxu0
        %v2327 = vmul.f32 %v2250, 0.01
        %v2328 = vmul.f32 %v2253, 0.01
        %v2329 = vmul.f32 %v2258, 0.01
        %v2330 = vmul.f32 %v2261, 0.01
        %v2331 = vmul.f32 %v2266, 0.01
        %v2332 = vmul.f32 %v2269, 0.01
        %v2333 = vmul.f32 %v2274, 0.01
        %v2334 = vmul.f32 %v2277, 0.01
        %v2335 = vmul.f32 %v2282, 0.01
        %v2336 = vmul.f32 %v2285, 0.01
        %v2337 = vmul.f32 %v2290, 0.01
        %v2338 = vmul.f32 %v2293, 0.01
        %v2339 = vmul.f32 %v2298, 0.01
        %v2340 = vmul.f32 %v2301, 0.01
        %v2341 = vmul.f32 %v2306, 0.01
        %v2342 = vmul.f32 %v2309, 0.01
        %v2343 = vmul.f32 %v2314, 0.01
        %v2344 = vmul.f32 %v2317, 0.01
        %v2345 = vmul.f32 %v2322, 0.01
        %v2346 = vmax.f32 %v2250, %v2327
        %v2347 = vmax.f32 %v2253, %v2328
        %v2348 = vmax.f32 %v2258, %v2329
        %v2349 = vmax.f32 %v2261, %v2330
        %v2350 = vmax.f32 %v2266, %v2331
        %v2351 = vmax.f32 %v2269, %v2332
        %v2352 = vmax.f32 %v2274, %v2333
        %v2353 = vmax.f32 %v2277, %v2334
        %v2354 = vmax.f32 %v2282, %v2335
        %v2355 = vmax.f32 %v2285, %v2336
        %v2356 = vmax.f32 %v2290, %v2337
        %v2357 = vmax.f32 %v2293, %v2338
        %v2358 = vmax.f32 %v2298, %v2339
        %v2359 = vmax.f32 %v2301, %v2340
        %v2360 = vmax.f32 %v2306, %v2341
        %v2361 = vmax.f32 %v2309, %v2342
        %v2362 = vmax.f32 %v2314, %v2343
        %v2363 = vmax.f32 %v2317, %v2344
        %v2364 = vmax.f32 %v2322, %v2345
        %v2365 = vpack.c.bf16 %v2347, %v2346
        %v2366 = vpack.c.bf16 %v2349, %v2348
        %v2367 = vpack.c.bf16 %v2351, %v2350
        %v2368 = vpack.c.bf16 %v2353, %v2352
        %v2369 = vpack.c.bf16 %v2355, %v2354
        %v2370 = vpack.c.bf16 %v2357, %v2356
        %v2371 = vpack.c.bf16 %v2359, %v2358
        %v2372 = vpack.c.bf16 %v2361, %v2360
        %v2373 = vpack.c.bf16 %v2363, %v2362
        %v2374 = vpack.c.bf16 %v2364, %v2364
        %v2375 = vld [vmem:[%s7] sm:$0xf]
        %v2376 = vld [vmem:[%s7 + $0x4] sm:$0xf]
        %v2377 = vld [vmem:[%s7 + $0x8] sm:$0xf]
        %v2378 = vld [vmem:[%s7 + $0xc] sm:$0xf]
        %v2379 = vld [vmem:[%s7 + $0x10] sm:$0xf]
        %v2380 = vld [vmem:[%s7 + $0x14] sm:$0xf]
        %v2381 = vld [vmem:[%s7 + $0x18] sm:$0xf]
        %v2382 = vld [vmem:[%s7 + $0x1c] sm:$0xf]
        %v2383 = vld [vmem:[%s7 + $0x20] sm:$0xf]
        %v2384 = vld [vmem:[%s7 + $0x24] sm:$0xf]
        %v2385 = vld [vmem:[%s7 + $0x28] sm:$0xf]
        %v2386 = vld [vmem:[%s7 + $0x2c] sm:$0xf]
        %v2387 = vld [vmem:[%s7 + $0x30] sm:$0xf]
        %v2388 = vld [vmem:[%s7 + $0x34] sm:$0xf]
        %v2389 = vld [vmem:[%s7 + $0x38] sm:$0xf]
        %v2390 = vld [vmem:[%s7 + $0x3c] sm:$0xf]
        %v2391 = vld [vmem:[#allocation7] sm:$0x1]
        %v2393 = vlaneseq
        %v2394 = vshrl.u32 %v2393, 7
        %v2395 = vsub.s32 0, %v2394
        %v2396 = vrot.slane %v2391, %v2395
        %v2414 = vunpack.c.l.b16 %v2375
        %v2415 = vunpack.c.l.b16 %v2376
        %v2416 = vunpack.c.l.b16 %v2377
        %v2417 = vunpack.c.l.b16 %v2378
        %v2418 = vunpack.c.l.b16 %v2379
        %v2419 = vunpack.c.l.b16 %v2380
        %v2420 = vunpack.c.l.b16 %v2381
        %v2421 = vunpack.c.l.b16 %v2382
        %v2422 = vunpack.c.l.b16 %v2383
        %v2423 = vunpack.c.l.b16 %v2384
        %v2424 = vunpack.c.l.b16 %v2385
        %v2425 = vunpack.c.l.b16 %v2386
        %v2426 = vunpack.c.l.b16 %v2387
        %v2427 = vunpack.c.l.b16 %v2388
        %v2428 = vunpack.c.l.b16 %v2389
        %v2429 = vunpack.c.l.b16 %v2390
        %v2430 = vpack.c.b16 %v2415, %v2414
        %v2431 = vpack.c.b16 %v2417, %v2416
        %v2432 = vpack.c.b16 %v2419, %v2418
        %v2433 = vpack.c.b16 %v2421, %v2420
        %v2434 = vpack.c.b16 %v2423, %v2422
        %v2435 = vpack.c.b16 %v2425, %v2424
        %v2436 = vpack.c.b16 %v2427, %v2426
        %v2437 = vpack.c.b16 %v2429, %v2428
        %2446 = vmatprep.subr.bf16.mxu0 0
        %2447 = vmatpush1.bf16.msra.mxu0 %v2437
        %2448 = vmatprep.subr.bf16.mxu0 0
        %2449 = vmatpush1.bf16.msra.mxu0 %v2436
        %2450 = vmatprep.subr.bf16.mxu0 0
        %2451 = vmatpush1.bf16.msra.mxu0 %v2435
        %2452 = vmatprep.subr.bf16.mxu0 0
        %2453 = vmatpush1.bf16.msra.mxu0 %v2434
        %2454 = vmatprep.subr.bf16.mxu0 0
        %2455 = vmatpush1.bf16.msra.mxu0 %v2433
        %2456 = vmatprep.subr.bf16.mxu0 0
        %2457 = vmatpush1.bf16.msra.mxu0 %v2432
        %2458 = vmatprep.subr.bf16.mxu0 0
        %2459 = vmatpush1.bf16.msra.mxu0 %v2431
        %2460 = vmatprep.subr.bf16.mxu0 0
        %2461 = vmatpush1.bf16.msra.mxu0 %v2430
        %2462 = vmatprep.subr.bf16.mxu0 0
        %2463 = vmatpush2.bf16.msra.mxu0 0
        %2464 = vmatprep.subr.bf16.mxu0 0
        %2465 = vmatpush2.bf16.msra.mxu0 0
        %2466 = vmatprep.subr.bf16.mxu0 0
        %2467 = vmatpush2.bf16.msra.mxu0 0
        %2468 = vmatprep.subr.bf16.mxu0 0
        %2469 = vmatpush2.bf16.msra.mxu0 0
        %2470 = vmatprep.subr.bf16.mxu0 0
        %2471 = vmatpush2.bf16.msra.mxu0 0
        %2472 = vmatprep.subr.bf16.mxu0 0
        %2473 = vmatpush2.bf16.msra.mxu0 0
        %2474 = vmatprep.subr.bf16.mxu0 0
        %2475 = vmatpush2.bf16.msra.mxu0 0
        %2476 = vmatprep.subr.bf16.mxu0 0
        %2477 = vmatpush2.bf16.msra.mxu0 0
        %2478 = vmatprep.mubr.bf16.mxu0 0
        %2479 = vmatmul.mubr.bf16.gmra.mxu0 %v2365
        %v2480 = vpop.f32.mrf.mxu0
        %v2481 = vadd.f32 %v2396, %v2480
        %v2482 = vpop.f32.mrf.mxu0
        %v2483 = vpop.f32.mrf.mxu0
        %v2484 = vadd.f32 %v2396, %v2483
        %v2485 = vpop.f32.mrf.mxu0
        %2486 = vmatprep.mubr.bf16.mxu0 0
        %2487 = vmatmul.mubr.bf16.gmra.mxu0 %v2366
        %v2488 = vpop.f32.mrf.mxu0
        %v2489 = vadd.f32 %v2396, %v2488
        %v2490 = vpop.f32.mrf.mxu0
        %v2491 = vpop.f32.mrf.mxu0
        %v2492 = vadd.f32 %v2396, %v2491
        %v2493 = vpop.f32.mrf.mxu0
        %2494 = vmatprep.mubr.bf16.mxu0 0
        %2495 = vmatmul.mubr.bf16.gmra.mxu0 %v2367
        %v2496 = vpop.f32.mrf.mxu0
        %v2497 = vadd.f32 %v2396, %v2496
        %v2498 = vpop.f32.mrf.mxu0
        %v2499 = vpop.f32.mrf.mxu0
        %v2500 = vadd.f32 %v2396, %v2499
        %v2501 = vpop.f32.mrf.mxu0
        %2502 = vmatprep.mubr.bf16.mxu0 0
        %2503 = vmatmul.mubr.bf16.gmra.mxu0 %v2368
        %v2504 = vpop.f32.mrf.mxu0
        %v2505 = vadd.f32 %v2396, %v2504
        %v2506 = vpop.f32.mrf.mxu0
        %v2507 = vpop.f32.mrf.mxu0
        %v2508 = vadd.f32 %v2396, %v2507
        %v2509 = vpop.f32.mrf.mxu0
        %2510 = vmatprep.mubr.bf16.mxu0 0
        %2511 = vmatmul.mubr.bf16.gmra.mxu0 %v2369
        %v2512 = vpop.f32.mrf.mxu0
        %v2513 = vadd.f32 %v2396, %v2512
        %v2514 = vpop.f32.mrf.mxu0
        %v2515 = vpop.f32.mrf.mxu0
        %v2516 = vadd.f32 %v2396, %v2515
        %v2517 = vpop.f32.mrf.mxu0
        %2518 = vmatprep.mubr.bf16.mxu0 0
        %2519 = vmatmul.mubr.bf16.gmra.mxu0 %v2370
        %v2520 = vpop.f32.mrf.mxu0
        %v2521 = vadd.f32 %v2396, %v2520
        %v2522 = vpop.f32.mrf.mxu0
        %v2523 = vpop.f32.mrf.mxu0
        %v2524 = vadd.f32 %v2396, %v2523
        %v2525 = vpop.f32.mrf.mxu0
        %2526 = vmatprep.mubr.bf16.mxu0 0
        %2527 = vmatmul.mubr.bf16.gmra.mxu0 %v2371
        %v2528 = vpop.f32.mrf.mxu0
        %v2529 = vadd.f32 %v2396, %v2528
        %v2530 = vpop.f32.mrf.mxu0
        %v2531 = vpop.f32.mrf.mxu0
        %v2532 = vadd.f32 %v2396, %v2531
        %v2533 = vpop.f32.mrf.mxu0
        %2534 = vmatprep.mubr.bf16.mxu0 0
        %2535 = vmatmul.mubr.bf16.gmra.mxu0 %v2372
        %v2536 = vpop.f32.mrf.mxu0
        %v2537 = vadd.f32 %v2396, %v2536
        %v2538 = vpop.f32.mrf.mxu0
        %v2539 = vpop.f32.mrf.mxu0
        %v2540 = vadd.f32 %v2396, %v2539
        %v2541 = vpop.f32.mrf.mxu0
        %2542 = vmatprep.mubr.bf16.mxu0 0
        %2543 = vmatmul.mubr.bf16.gmra.mxu0 %v2373
        %v2544 = vpop.f32.mrf.mxu0
        %v2545 = vadd.f32 %v2396, %v2544
        %v2546 = vpop.f32.mrf.mxu0
        %v2547 = vpop.f32.mrf.mxu0
        %v2548 = vadd.f32 %v2396, %v2547
        %v2549 = vpop.f32.mrf.mxu0
        %2550 = vmatprep.mubr.bf16.mxu0 0
        %2551 = vmatmul.mubr.bf16.gmra.mxu0 %v2374
        %v2552 = vpop.f32.mrf.mxu0
        %v2553 = vadd.f32 %v2396, %v2552
        %v2554 = vpop.f32.mrf.mxu0
        %v2555 = vpop.f32.mrf.mxu0
        %v2556 = vpop.f32.mrf.mxu0
        %2557 = vdwg.mxu0
        %v2558 = vmul.f32 %v2481, 0.01
        %v2559 = vmul.f32 %v2484, 0.01
        %v2560 = vmul.f32 %v2489, 0.01
        %v2561 = vmul.f32 %v2492, 0.01
        %v2562 = vmul.f32 %v2497, 0.01
        %v2563 = vmul.f32 %v2500, 0.01
        %v2564 = vmul.f32 %v2505, 0.01
        %v2565 = vmul.f32 %v2508, 0.01
        %v2566 = vmul.f32 %v2513, 0.01
        %v2567 = vmul.f32 %v2516, 0.01
        %v2568 = vmul.f32 %v2521, 0.01
        %v2569 = vmul.f32 %v2524, 0.01
        %v2570 = vmul.f32 %v2529, 0.01
        %v2571 = vmul.f32 %v2532, 0.01
        %v2572 = vmul.f32 %v2537, 0.01
        %v2573 = vmul.f32 %v2540, 0.01
        %v2574 = vmul.f32 %v2545, 0.01
        %v2575 = vmul.f32 %v2548, 0.01
        %v2576 = vmul.f32 %v2553, 0.01
        %v2577 = vmax.f32 %v2481, %v2558
        %v2578 = vmax.f32 %v2484, %v2559
        %v2579 = vmax.f32 %v2489, %v2560
        %v2580 = vmax.f32 %v2492, %v2561
        %v2581 = vmax.f32 %v2497, %v2562
        %v2582 = vmax.f32 %v2500, %v2563
        %v2583 = vmax.f32 %v2505, %v2564
        %v2584 = vmax.f32 %v2508, %v2565
        %v2585 = vmax.f32 %v2513, %v2566
        %v2586 = vmax.f32 %v2516, %v2567
        %v2587 = vmax.f32 %v2521, %v2568
        %v2588 = vmax.f32 %v2524, %v2569
        %v2589 = vmax.f32 %v2529, %v2570
        %v2590 = vmax.f32 %v2532, %v2571
        %v2591 = vmax.f32 %v2537, %v2572
        %v2592 = vmax.f32 %v2540, %v2573
        %v2593 = vmax.f32 %v2545, %v2574
        %v2594 = vmax.f32 %v2548, %v2575
        %v2595 = vmax.f32 %v2553, %v2576
        %v2596 = vpack.c.bf16 %v2578, %v2577
        %v2597 = vpack.c.bf16 %v2580, %v2579
        %v2598 = vpack.c.bf16 %v2582, %v2581
        %v2599 = vpack.c.bf16 %v2584, %v2583
        %v2600 = vpack.c.bf16 %v2586, %v2585
        %v2601 = vpack.c.bf16 %v2588, %v2587
        %v2602 = vpack.c.bf16 %v2590, %v2589
        %v2603 = vpack.c.bf16 %v2592, %v2591
        %v2604 = vpack.c.bf16 %v2594, %v2593
        %v2605 = vpack.c.bf16 %v2595, %v2595
        %v2606 = vld [vmem:[%s9] sm:$0xf]
        %v2607 = vld [vmem:[%s9 + $0x4] sm:$0xf]
        %v2608 = vld [vmem:[%s9 + $0x8] sm:$0xf]
        %v2609 = vld [vmem:[%s9 + $0xc] sm:$0xf]
        %v2610 = vld [vmem:[%s9 + $0x10] sm:$0xf]
        %v2611 = vld [vmem:[%s9 + $0x14] sm:$0xf]
        %v2612 = vld [vmem:[%s9 + $0x18] sm:$0xf]
        %v2613 = vld [vmem:[%s9 + $0x1c] sm:$0xf]
        %v2614 = vld [vmem:[%s9 + $0x20] sm:$0xf]
        %v2615 = vld [vmem:[%s9 + $0x24] sm:$0xf]
        %v2616 = vld [vmem:[%s9 + $0x28] sm:$0xf]
        %v2617 = vld [vmem:[%s9 + $0x2c] sm:$0xf]
        %v2618 = vld [vmem:[%s9 + $0x30] sm:$0xf]
        %v2619 = vld [vmem:[%s9 + $0x34] sm:$0xf]
        %v2620 = vld [vmem:[%s9 + $0x38] sm:$0xf]
        %v2621 = vld [vmem:[%s9 + $0x3c] sm:$0xf]
        %v2622 = vld [vmem:[%s10] sm:$0x1]
        %v2624 = vlaneseq
        %v2625 = vshrl.u32 %v2624, 7
        %v2626 = vsub.s32 0, %v2625
        %v2627 = vrot.slane %v2622, %v2626
        %v2645 = vunpack.c.l.b16 %v2606
        %v2646 = vunpack.c.l.b16 %v2607
        %v2647 = vunpack.c.l.b16 %v2608
        %v2648 = vunpack.c.l.b16 %v2609
        %v2649 = vunpack.c.l.b16 %v2610
        %v2650 = vunpack.c.l.b16 %v2611
        %v2651 = vunpack.c.l.b16 %v2612
        %v2652 = vunpack.c.l.b16 %v2613
        %v2653 = vunpack.c.l.b16 %v2614
        %v2654 = vunpack.c.l.b16 %v2615
        %v2655 = vunpack.c.l.b16 %v2616
        %v2656 = vunpack.c.l.b16 %v2617
        %v2657 = vunpack.c.l.b16 %v2618
        %v2658 = vunpack.c.l.b16 %v2619
        %v2659 = vunpack.c.l.b16 %v2620
        %v2660 = vunpack.c.l.b16 %v2621
        %v2661 = vpack.c.b16 %v2646, %v2645
        %v2662 = vpack.c.b16 %v2648, %v2647
        %v2663 = vpack.c.b16 %v2650, %v2649
        %v2664 = vpack.c.b16 %v2652, %v2651
        %v2665 = vpack.c.b16 %v2654, %v2653
        %v2666 = vpack.c.b16 %v2656, %v2655
        %v2667 = vpack.c.b16 %v2658, %v2657
        %v2668 = vpack.c.b16 %v2660, %v2659
        %2677 = vmatprep.subr.bf16.mxu0 0
        %2678 = vmatpush1.bf16.msra.mxu0 %v2668
        %2679 = vmatprep.subr.bf16.mxu0 0
        %2680 = vmatpush1.bf16.msra.mxu0 %v2667
        %2681 = vmatprep.subr.bf16.mxu0 0
        %2682 = vmatpush1.bf16.msra.mxu0 %v2666
        %2683 = vmatprep.subr.bf16.mxu0 0
        %2684 = vmatpush1.bf16.msra.mxu0 %v2665
        %2685 = vmatprep.subr.bf16.mxu0 0
        %2686 = vmatpush1.bf16.msra.mxu0 %v2664
        %2687 = vmatprep.subr.bf16.mxu0 0
        %2688 = vmatpush1.bf16.msra.mxu0 %v2663
        %2689 = vmatprep.subr.bf16.mxu0 0
        %2690 = vmatpush1.bf16.msra.mxu0 %v2662
        %2691 = vmatprep.subr.bf16.mxu0 0
        %2692 = vmatpush1.bf16.msra.mxu0 %v2661
        %2693 = vmatprep.subr.bf16.mxu0 0
        %2694 = vmatpush2.bf16.msra.mxu0 0
        %2695 = vmatprep.subr.bf16.mxu0 0
        %2696 = vmatpush2.bf16.msra.mxu0 0
        %2697 = vmatprep.subr.bf16.mxu0 0
        %2698 = vmatpush2.bf16.msra.mxu0 0
        %2699 = vmatprep.subr.bf16.mxu0 0
        %2700 = vmatpush2.bf16.msra.mxu0 0
        %2701 = vmatprep.subr.bf16.mxu0 0
        %2702 = vmatpush2.bf16.msra.mxu0 0
        %2703 = vmatprep.subr.bf16.mxu0 0
        %2704 = vmatpush2.bf16.msra.mxu0 0
        %2705 = vmatprep.subr.bf16.mxu0 0
        %2706 = vmatpush2.bf16.msra.mxu0 0
        %2707 = vmatprep.subr.bf16.mxu0 0
        %2708 = vmatpush2.bf16.msra.mxu0 0
        %2709 = vmatprep.mubr.bf16.mxu0 0
        %2710 = vmatmul.mubr.bf16.gmra.mxu0 %v2596
        %v2711 = vpop.f32.mrf.mxu0
        %v2712 = vadd.f32 %v2627, %v2711
        %v2713 = vpop.f32.mrf.mxu0
        %v2714 = vpop.f32.mrf.mxu0
        %v2715 = vadd.f32 %v2627, %v2714
        %v2716 = vpop.f32.mrf.mxu0
        %2717 = vmatprep.mubr.bf16.mxu0 0
        %2718 = vmatmul.mubr.bf16.gmra.mxu0 %v2597
        %v2719 = vpop.f32.mrf.mxu0
        %v2720 = vadd.f32 %v2627, %v2719
        %v2721 = vpop.f32.mrf.mxu0
        %v2722 = vpop.f32.mrf.mxu0
        %v2723 = vadd.f32 %v2627, %v2722
        %v2724 = vpop.f32.mrf.mxu0
        %2725 = vmatprep.mubr.bf16.mxu0 0
        %2726 = vmatmul.mubr.bf16.gmra.mxu0 %v2598
        %v2727 = vpop.f32.mrf.mxu0
        %v2728 = vadd.f32 %v2627, %v2727
        %v2729 = vpop.f32.mrf.mxu0
        %v2730 = vpop.f32.mrf.mxu0
        %v2731 = vadd.f32 %v2627, %v2730
        %v2732 = vpop.f32.mrf.mxu0
        %2733 = vmatprep.mubr.bf16.mxu0 0
        %2734 = vmatmul.mubr.bf16.gmra.mxu0 %v2599
        %v2735 = vpop.f32.mrf.mxu0
        %v2736 = vadd.f32 %v2627, %v2735
        %v2737 = vpop.f32.mrf.mxu0
        %v2738 = vpop.f32.mrf.mxu0
        %v2739 = vadd.f32 %v2627, %v2738
        %v2740 = vpop.f32.mrf.mxu0
        %2741 = vmatprep.mubr.bf16.mxu0 0
        %2742 = vmatmul.mubr.bf16.gmra.mxu0 %v2600
        %v2743 = vpop.f32.mrf.mxu0
        %v2744 = vadd.f32 %v2627, %v2743
        %v2745 = vpop.f32.mrf.mxu0
        %v2746 = vpop.f32.mrf.mxu0
        %v2747 = vadd.f32 %v2627, %v2746
        %v2748 = vpop.f32.mrf.mxu0
        %2749 = vmatprep.mubr.bf16.mxu0 0
        %2750 = vmatmul.mubr.bf16.gmra.mxu0 %v2601
        %v2751 = vpop.f32.mrf.mxu0
        %v2752 = vadd.f32 %v2627, %v2751
        %v2753 = vpop.f32.mrf.mxu0
        %v2754 = vpop.f32.mrf.mxu0
        %v2755 = vadd.f32 %v2627, %v2754
        %v2756 = vpop.f32.mrf.mxu0
        %2757 = vmatprep.mubr.bf16.mxu0 0
        %2758 = vmatmul.mubr.bf16.gmra.mxu0 %v2602
        %v2759 = vpop.f32.mrf.mxu0
        %v2760 = vadd.f32 %v2627, %v2759
        %v2761 = vpop.f32.mrf.mxu0
        %v2762 = vpop.f32.mrf.mxu0
        %v2763 = vadd.f32 %v2627, %v2762
        %v2764 = vpop.f32.mrf.mxu0
        %2765 = vmatprep.mubr.bf16.mxu0 0
        %2766 = vmatmul.mubr.bf16.gmra.mxu0 %v2603
        %v2767 = vpop.f32.mrf.mxu0
        %v2768 = vadd.f32 %v2627, %v2767
        %v2769 = vpop.f32.mrf.mxu0
        %v2770 = vpop.f32.mrf.mxu0
        %v2771 = vadd.f32 %v2627, %v2770
        %v2772 = vpop.f32.mrf.mxu0
        %2773 = vmatprep.mubr.bf16.mxu0 0
        %2774 = vmatmul.mubr.bf16.gmra.mxu0 %v2604
        %v2775 = vpop.f32.mrf.mxu0
        %v2776 = vadd.f32 %v2627, %v2775
        %v2777 = vpop.f32.mrf.mxu0
        %v2778 = vpop.f32.mrf.mxu0
        %v2779 = vadd.f32 %v2627, %v2778
        %v2780 = vpop.f32.mrf.mxu0
        %2781 = vmatprep.mubr.bf16.mxu0 0
        %2782 = vmatmul.mubr.bf16.gmra.mxu0 %v2605
        %v2783 = vpop.f32.mrf.mxu0
        %v2784 = vadd.f32 %v2627, %v2783
        %v2785 = vpop.f32.mrf.mxu0
        %v2786 = vpop.f32.mrf.mxu0
        %v2787 = vpop.f32.mrf.mxu0
        %2788 = vdwg.mxu0
        %v2789 = vmul.f32 %v2712, 0.01
        %v2790 = vmul.f32 %v2715, 0.01
        %v2791 = vmul.f32 %v2720, 0.01
        %v2792 = vmul.f32 %v2723, 0.01
        %v2793 = vmul.f32 %v2728, 0.01
        %v2794 = vmul.f32 %v2731, 0.01
        %v2795 = vmul.f32 %v2736, 0.01
        %v2796 = vmul.f32 %v2739, 0.01
        %v2797 = vmul.f32 %v2744, 0.01
        %v2798 = vmul.f32 %v2747, 0.01
        %v2799 = vmul.f32 %v2752, 0.01
        %v2800 = vmul.f32 %v2755, 0.01
        %v2801 = vmul.f32 %v2760, 0.01
        %v2802 = vmul.f32 %v2763, 0.01
        %v2803 = vmul.f32 %v2768, 0.01
        %v2804 = vmul.f32 %v2771, 0.01
        %v2805 = vmul.f32 %v2776, 0.01
        %v2806 = vmul.f32 %v2779, 0.01
        %v2807 = vmul.f32 %v2784, 0.01
        %v2808 = vmax.f32 %v2712, %v2789
        %v2809 = vmax.f32 %v2715, %v2790
        %v2810 = vmax.f32 %v2720, %v2791
        %v2811 = vmax.f32 %v2723, %v2792
        %v2812 = vmax.f32 %v2728, %v2793
        %v2813 = vmax.f32 %v2731, %v2794
        %v2814 = vmax.f32 %v2736, %v2795
        %v2815 = vmax.f32 %v2739, %v2796
        %v2816 = vmax.f32 %v2744, %v2797
        %v2817 = vmax.f32 %v2747, %v2798
        %v2818 = vmax.f32 %v2752, %v2799
        %v2819 = vmax.f32 %v2755, %v2800
        %v2820 = vmax.f32 %v2760, %v2801
        %v2821 = vmax.f32 %v2763, %v2802
        %v2822 = vmax.f32 %v2768, %v2803
        %v2823 = vmax.f32 %v2771, %v2804
        %v2824 = vmax.f32 %v2776, %v2805
        %v2825 = vmax.f32 %v2779, %v2806
        %v2826 = vmax.f32 %v2784, %v2807
        %v2827 = vpack.c.bf16 %v2809, %v2808
        %v2828 = vpack.c.bf16 %v2811, %v2810
        %v2829 = vpack.c.bf16 %v2813, %v2812
        %v2830 = vpack.c.bf16 %v2815, %v2814
        %v2831 = vpack.c.bf16 %v2817, %v2816
        %v2832 = vpack.c.bf16 %v2819, %v2818
        %v2833 = vpack.c.bf16 %v2821, %v2820
        %v2834 = vpack.c.bf16 %v2823, %v2822
        %v2835 = vpack.c.bf16 %v2825, %v2824
        %v2836 = vpack.c.bf16 %v2826, %v2826
        %v2837 = vld [vmem:[#allocation9] sm:$0xf]
        %v2838 = vld [vmem:[#allocation9 + $0x4] sm:$0xf]
        %v2839 = vld [vmem:[#allocation9 + $0x8] sm:$0xf]
        %v2840 = vld [vmem:[#allocation9 + $0xc] sm:$0xf]
        %v2841 = vld [vmem:[#allocation9 + $0x10] sm:$0xf]
        %v2842 = vld [vmem:[#allocation9 + $0x14] sm:$0xf]
        %v2843 = vld [vmem:[#allocation9 + $0x18] sm:$0xf]
        %v2844 = vld [vmem:[#allocation9 + $0x1c] sm:$0xf]
        %v2845 = vld [vmem:[#allocation9 + $0x20] sm:$0xf]
        %v2846 = vld [vmem:[#allocation9 + $0x24] sm:$0xf]
        %v2847 = vld [vmem:[#allocation9 + $0x28] sm:$0xf]
        %v2848 = vld [vmem:[#allocation9 + $0x2c] sm:$0xf]
        %v2849 = vld [vmem:[#allocation9 + $0x30] sm:$0xf]
        %v2850 = vld [vmem:[#allocation9 + $0x34] sm:$0xf]
        %v2851 = vld [vmem:[#allocation9 + $0x38] sm:$0xf]
        %v2852 = vld [vmem:[#allocation9 + $0x3c] sm:$0xf]
        %v2853 = vld [vmem:[%s12] sm:$0x1]
        %v2855 = vlaneseq
        %v2856 = vshrl.u32 %v2855, 7
        %v2857 = vsub.s32 0, %v2856
        %v2858 = vrot.slane %v2853, %v2857
        %v2876 = vunpack.c.l.b16 %v2837
        %v2877 = vunpack.c.l.b16 %v2838
        %v2878 = vunpack.c.l.b16 %v2839
        %v2879 = vunpack.c.l.b16 %v2840
        %v2880 = vunpack.c.l.b16 %v2841
        %v2881 = vunpack.c.l.b16 %v2842
        %v2882 = vunpack.c.l.b16 %v2843
        %v2883 = vunpack.c.l.b16 %v2844
        %v2884 = vunpack.c.l.b16 %v2845
        %v2885 = vunpack.c.l.b16 %v2846
        %v2886 = vunpack.c.l.b16 %v2847
        %v2887 = vunpack.c.l.b16 %v2848
        %v2888 = vunpack.c.l.b16 %v2849
        %v2889 = vunpack.c.l.b16 %v2850
        %v2890 = vunpack.c.l.b16 %v2851
        %v2891 = vunpack.c.l.b16 %v2852
        %v2892 = vpack.c.b16 %v2877, %v2876
        %v2893 = vpack.c.b16 %v2879, %v2878
        %v2894 = vpack.c.b16 %v2881, %v2880
        %v2895 = vpack.c.b16 %v2883, %v2882
        %v2896 = vpack.c.b16 %v2885, %v2884
        %v2897 = vpack.c.b16 %v2887, %v2886
        %v2898 = vpack.c.b16 %v2889, %v2888
        %v2899 = vpack.c.b16 %v2891, %v2890
        %2908 = vmatprep.subr.bf16.mxu0 0
        %2909 = vmatpush1.bf16.msra.mxu0 %v2899
        %2910 = vmatprep.subr.bf16.mxu0 0
        %2911 = vmatpush1.bf16.msra.mxu0 %v2898
        %2912 = vmatprep.subr.bf16.mxu0 0
        %2913 = vmatpush1.bf16.msra.mxu0 %v2897
        %2914 = vmatprep.subr.bf16.mxu0 0
        %2915 = vmatpush1.bf16.msra.mxu0 %v2896
        %2916 = vmatprep.subr.bf16.mxu0 0
        %2917 = vmatpush1.bf16.msra.mxu0 %v2895
        %2918 = vmatprep.subr.bf16.mxu0 0
        %2919 = vmatpush1.bf16.msra.mxu0 %v2894
        %2920 = vmatprep.subr.bf16.mxu0 0
        %2921 = vmatpush1.bf16.msra.mxu0 %v2893
        %2922 = vmatprep.subr.bf16.mxu0 0
        %2923 = vmatpush1.bf16.msra.mxu0 %v2892
        %2924 = vmatprep.subr.bf16.mxu0 0
        %2925 = vmatpush2.bf16.msra.mxu0 0
        %2926 = vmatprep.subr.bf16.mxu0 0
        %2927 = vmatpush2.bf16.msra.mxu0 0
        %2928 = vmatprep.subr.bf16.mxu0 0
        %2929 = vmatpush2.bf16.msra.mxu0 0
        %2930 = vmatprep.subr.bf16.mxu0 0
        %2931 = vmatpush2.bf16.msra.mxu0 0
        %2932 = vmatprep.subr.bf16.mxu0 0
        %2933 = vmatpush2.bf16.msra.mxu0 0
        %2934 = vmatprep.subr.bf16.mxu0 0
        %2935 = vmatpush2.bf16.msra.mxu0 0
        %2936 = vmatprep.subr.bf16.mxu0 0
        %2937 = vmatpush2.bf16.msra.mxu0 0
        %2938 = vmatprep.subr.bf16.mxu0 0
        %2939 = vmatpush2.bf16.msra.mxu0 0
        %2940 = vmatprep.mubr.bf16.mxu0 0
        %2941 = vmatmul.mubr.bf16.gmra.mxu0 %v2827
        %v2942 = vpop.f32.mrf.mxu0
        %v2943 = vadd.f32 %v2858, %v2942
        %v2944 = vpop.f32.mrf.mxu0
        %v2945 = vpop.f32.mrf.mxu0
        %v2946 = vadd.f32 %v2858, %v2945
        %v2947 = vpop.f32.mrf.mxu0
        %2948 = vmatprep.mubr.bf16.mxu0 0
        %2949 = vmatmul.mubr.bf16.gmra.mxu0 %v2828
        %v2950 = vpop.f32.mrf.mxu0
        %v2951 = vadd.f32 %v2858, %v2950
        %v2952 = vpop.f32.mrf.mxu0
        %v2953 = vpop.f32.mrf.mxu0
        %v2954 = vadd.f32 %v2858, %v2953
        %v2955 = vpop.f32.mrf.mxu0
        %2956 = vmatprep.mubr.bf16.mxu0 0
        %2957 = vmatmul.mubr.bf16.gmra.mxu0 %v2829
        %v2958 = vpop.f32.mrf.mxu0
        %v2959 = vadd.f32 %v2858, %v2958
        %v2960 = vpop.f32.mrf.mxu0
        %v2961 = vpop.f32.mrf.mxu0
        %v2962 = vadd.f32 %v2858, %v2961
        %v2963 = vpop.f32.mrf.mxu0
        %2964 = vmatprep.mubr.bf16.mxu0 0
        %2965 = vmatmul.mubr.bf16.gmra.mxu0 %v2830
        %v2966 = vpop.f32.mrf.mxu0
        %v2967 = vadd.f32 %v2858, %v2966
        %v2968 = vpop.f32.mrf.mxu0
        %v2969 = vpop.f32.mrf.mxu0
        %v2970 = vadd.f32 %v2858, %v2969
        %v2971 = vpop.f32.mrf.mxu0
        %2972 = vmatprep.mubr.bf16.mxu0 0
        %2973 = vmatmul.mubr.bf16.gmra.mxu0 %v2831
        %v2974 = vpop.f32.mrf.mxu0
        %v2975 = vadd.f32 %v2858, %v2974
        %v2976 = vpop.f32.mrf.mxu0
        %v2977 = vpop.f32.mrf.mxu0
        %v2978 = vadd.f32 %v2858, %v2977
        %v2979 = vpop.f32.mrf.mxu0
        %2980 = vmatprep.mubr.bf16.mxu0 0
        %2981 = vmatmul.mubr.bf16.gmra.mxu0 %v2832
        %v2982 = vpop.f32.mrf.mxu0
        %v2983 = vadd.f32 %v2858, %v2982
        %v2984 = vpop.f32.mrf.mxu0
        %v2985 = vpop.f32.mrf.mxu0
        %v2986 = vadd.f32 %v2858, %v2985
        %v2987 = vpop.f32.mrf.mxu0
        %2988 = vmatprep.mubr.bf16.mxu0 0
        %2989 = vmatmul.mubr.bf16.gmra.mxu0 %v2833
        %v2990 = vpop.f32.mrf.mxu0
        %v2991 = vadd.f32 %v2858, %v2990
        %v2992 = vpop.f32.mrf.mxu0
        %v2993 = vpop.f32.mrf.mxu0
        %v2994 = vadd.f32 %v2858, %v2993
        %v2995 = vpop.f32.mrf.mxu0
        %2996 = vmatprep.mubr.bf16.mxu0 0
        %2997 = vmatmul.mubr.bf16.gmra.mxu0 %v2834
        %v2998 = vpop.f32.mrf.mxu0
        %v2999 = vadd.f32 %v2858, %v2998
        %v3000 = vpop.f32.mrf.mxu0
        %v3001 = vpop.f32.mrf.mxu0
        %v3002 = vadd.f32 %v2858, %v3001
        %v3003 = vpop.f32.mrf.mxu0
        %3004 = vmatprep.mubr.bf16.mxu0 0
        %3005 = vmatmul.mubr.bf16.gmra.mxu0 %v2835
        %v3006 = vpop.f32.mrf.mxu0
        %v3007 = vadd.f32 %v2858, %v3006
        %v3008 = vpop.f32.mrf.mxu0
        %v3009 = vpop.f32.mrf.mxu0
        %v3010 = vadd.f32 %v2858, %v3009
        %v3011 = vpop.f32.mrf.mxu0
        %3012 = vmatprep.mubr.bf16.mxu0 0
        %3013 = vmatmul.mubr.bf16.gmra.mxu0 %v2836
        %v3014 = vpop.f32.mrf.mxu0
        %v3015 = vadd.f32 %v2858, %v3014
        %v3016 = vpop.f32.mrf.mxu0
        %v3017 = vpop.f32.mrf.mxu0
        %v3018 = vpop.f32.mrf.mxu0
        %3019 = vdwg.mxu0
        %v3020 = vmul.f32 %v2943, 0.01
        %v3021 = vmul.f32 %v2946, 0.01
        %v3022 = vmul.f32 %v2951, 0.01
        %v3023 = vmul.f32 %v2954, 0.01
        %v3024 = vmul.f32 %v2959, 0.01
        %v3025 = vmul.f32 %v2962, 0.01
        %v3026 = vmul.f32 %v2967, 0.01
        %v3027 = vmul.f32 %v2970, 0.01
        %v3028 = vmul.f32 %v2975, 0.01
        %v3029 = vmul.f32 %v2978, 0.01
        %v3030 = vmul.f32 %v2983, 0.01
        %v3031 = vmul.f32 %v2986, 0.01
        %v3032 = vmul.f32 %v2991, 0.01
        %v3033 = vmul.f32 %v2994, 0.01
        %v3034 = vmul.f32 %v2999, 0.01
        %v3035 = vmul.f32 %v3002, 0.01
        %v3036 = vmul.f32 %v3007, 0.01
        %v3037 = vmul.f32 %v3010, 0.01
        %v3038 = vmul.f32 %v3015, 0.01
        %v3039 = vmax.f32 %v2943, %v3020
        %v3040 = vmax.f32 %v2946, %v3021
        %v3041 = vmax.f32 %v2951, %v3022
        %v3042 = vmax.f32 %v2954, %v3023
        %v3043 = vmax.f32 %v2959, %v3024
        %v3044 = vmax.f32 %v2962, %v3025
        %v3045 = vmax.f32 %v2967, %v3026
        %v3046 = vmax.f32 %v2970, %v3027
        %v3047 = vmax.f32 %v2975, %v3028
        %v3048 = vmax.f32 %v2978, %v3029
        %v3049 = vmax.f32 %v2983, %v3030
        %v3050 = vmax.f32 %v2986, %v3031
        %v3051 = vmax.f32 %v2991, %v3032
        %v3052 = vmax.f32 %v2994, %v3033
        %v3053 = vmax.f32 %v2999, %v3034
        %v3054 = vmax.f32 %v3002, %v3035
        %v3055 = vmax.f32 %v3007, %v3036
        %v3056 = vmax.f32 %v3010, %v3037
        %v3057 = vmax.f32 %v3015, %v3038
        %v3058 = vpack.c.bf16 %v3040, %v3039
        %v3059 = vpack.c.bf16 %v3042, %v3041
        %v3060 = vpack.c.bf16 %v3044, %v3043
        %v3061 = vpack.c.bf16 %v3046, %v3045
        %v3062 = vpack.c.bf16 %v3048, %v3047
        %v3063 = vpack.c.bf16 %v3050, %v3049
        %v3064 = vpack.c.bf16 %v3052, %v3051
        %v3065 = vpack.c.bf16 %v3054, %v3053
        %v3066 = vpack.c.bf16 %v3056, %v3055
        %v3067 = vpack.c.bf16 %v3057, %v3057
        %v3068 = vld [vmem:[#allocation10] sm:$0xf]
        %v3069 = vld [vmem:[#allocation10 + $0x4] sm:$0xf]
        %v3070 = vld [vmem:[#allocation10 + $0x8] sm:$0xf]
        %v3071 = vld [vmem:[#allocation10 + $0xc] sm:$0xf]
        %v3072 = vld [vmem:[#allocation10 + $0x10] sm:$0xf]
        %v3073 = vld [vmem:[#allocation10 + $0x14] sm:$0xf]
        %v3074 = vld [vmem:[#allocation10 + $0x18] sm:$0xf]
        %v3075 = vld [vmem:[#allocation10 + $0x1c] sm:$0xf]
        %v3076 = vld [vmem:[#allocation10 + $0x20] sm:$0xf]
        %v3077 = vld [vmem:[#allocation10 + $0x24] sm:$0xf]
        %v3078 = vld [vmem:[#allocation10 + $0x28] sm:$0xf]
        %v3079 = vld [vmem:[#allocation10 + $0x2c] sm:$0xf]
        %v3080 = vld [vmem:[#allocation10 + $0x30] sm:$0xf]
        %v3081 = vld [vmem:[#allocation10 + $0x34] sm:$0xf]
        %v3082 = vld [vmem:[#allocation10 + $0x38] sm:$0xf]
        %v3083 = vld [vmem:[#allocation10 + $0x3c] sm:$0xf]
        %v3084 = vld [vmem:[%s14] sm:$0x1]
        %v3086 = vlaneseq
        %v3087 = vshrl.u32 %v3086, 7
        %v3088 = vsub.s32 0, %v3087
        %v3089 = vrot.slane %v3084, %v3088
        %v3107 = vunpack.c.l.b16 %v3068
        %v3108 = vunpack.c.l.b16 %v3069
        %v3109 = vunpack.c.l.b16 %v3070
        %v3110 = vunpack.c.l.b16 %v3071
        %v3111 = vunpack.c.l.b16 %v3072
        %v3112 = vunpack.c.l.b16 %v3073
        %v3113 = vunpack.c.l.b16 %v3074
        %v3114 = vunpack.c.l.b16 %v3075
        %v3115 = vunpack.c.l.b16 %v3076
        %v3116 = vunpack.c.l.b16 %v3077
        %v3117 = vunpack.c.l.b16 %v3078
        %v3118 = vunpack.c.l.b16 %v3079
        %v3119 = vunpack.c.l.b16 %v3080
        %v3120 = vunpack.c.l.b16 %v3081
        %v3121 = vunpack.c.l.b16 %v3082
        %v3122 = vunpack.c.l.b16 %v3083
        %v3123 = vpack.c.b16 %v3108, %v3107
        %v3124 = vpack.c.b16 %v3110, %v3109
        %v3125 = vpack.c.b16 %v3112, %v3111
        %v3126 = vpack.c.b16 %v3114, %v3113
        %v3127 = vpack.c.b16 %v3116, %v3115
        %v3128 = vpack.c.b16 %v3118, %v3117
        %v3129 = vpack.c.b16 %v3120, %v3119
        %v3130 = vpack.c.b16 %v3122, %v3121
        %3139 = vmatprep.subr.bf16.mxu0 0
        %3140 = vmatpush1.bf16.msra.mxu0 %v3130
        %3141 = vmatprep.subr.bf16.mxu0 0
        %3142 = vmatpush1.bf16.msra.mxu0 %v3129
        %3143 = vmatprep.subr.bf16.mxu0 0
        %3144 = vmatpush1.bf16.msra.mxu0 %v3128
        %3145 = vmatprep.subr.bf16.mxu0 0
        %3146 = vmatpush1.bf16.msra.mxu0 %v3127
        %3147 = vmatprep.subr.bf16.mxu0 0
        %3148 = vmatpush1.bf16.msra.mxu0 %v3126
        %3149 = vmatprep.subr.bf16.mxu0 0
        %3150 = vmatpush1.bf16.msra.mxu0 %v3125
        %3151 = vmatprep.subr.bf16.mxu0 0
        %3152 = vmatpush1.bf16.msra.mxu0 %v3124
        %3153 = vmatprep.subr.bf16.mxu0 0
        %3154 = vmatpush1.bf16.msra.mxu0 %v3123
        %3155 = vmatprep.subr.bf16.mxu0 0
        %3156 = vmatpush2.bf16.msra.mxu0 0
        %3157 = vmatprep.subr.bf16.mxu0 0
        %3158 = vmatpush2.bf16.msra.mxu0 0
        %3159 = vmatprep.subr.bf16.mxu0 0
        %3160 = vmatpush2.bf16.msra.mxu0 0
        %3161 = vmatprep.subr.bf16.mxu0 0
        %3162 = vmatpush2.bf16.msra.mxu0 0
        %3163 = vmatprep.subr.bf16.mxu0 0
        %3164 = vmatpush2.bf16.msra.mxu0 0
        %3165 = vmatprep.subr.bf16.mxu0 0
        %3166 = vmatpush2.bf16.msra.mxu0 0
        %3167 = vmatprep.subr.bf16.mxu0 0
        %3168 = vmatpush2.bf16.msra.mxu0 0
        %3169 = vmatprep.subr.bf16.mxu0 0
        %3170 = vmatpush2.bf16.msra.mxu0 0
        %3171 = vmatprep.mubr.bf16.mxu0 0
        %3172 = vmatmul.mubr.bf16.gmra.mxu0 %v3058
        %v3173 = vpop.f32.mrf.mxu0
        %v3174 = vadd.f32 %v3089, %v3173
        %v3175 = vpop.f32.mrf.mxu0
        %v3176 = vpop.f32.mrf.mxu0
        %v3177 = vadd.f32 %v3089, %v3176
        %v3178 = vpop.f32.mrf.mxu0
        %3179 = vmatprep.mubr.bf16.mxu0 0
        %3180 = vmatmul.mubr.bf16.gmra.mxu0 %v3059
        %v3181 = vpop.f32.mrf.mxu0
        %v3182 = vadd.f32 %v3089, %v3181
        %v3183 = vpop.f32.mrf.mxu0
        %v3184 = vpop.f32.mrf.mxu0
        %v3185 = vadd.f32 %v3089, %v3184
        %v3186 = vpop.f32.mrf.mxu0
        %3187 = vmatprep.mubr.bf16.mxu0 0
        %3188 = vmatmul.mubr.bf16.gmra.mxu0 %v3060
        %v3189 = vpop.f32.mrf.mxu0
        %v3190 = vadd.f32 %v3089, %v3189
        %v3191 = vpop.f32.mrf.mxu0
        %v3192 = vpop.f32.mrf.mxu0
        %v3193 = vadd.f32 %v3089, %v3192
        %v3194 = vpop.f32.mrf.mxu0
        %3195 = vmatprep.mubr.bf16.mxu0 0
        %3196 = vmatmul.mubr.bf16.gmra.mxu0 %v3061
        %v3197 = vpop.f32.mrf.mxu0
        %v3198 = vadd.f32 %v3089, %v3197
        %v3199 = vpop.f32.mrf.mxu0
        %v3200 = vpop.f32.mrf.mxu0
        %v3201 = vadd.f32 %v3089, %v3200
        %v3202 = vpop.f32.mrf.mxu0
        %3203 = vmatprep.mubr.bf16.mxu0 0
        %3204 = vmatmul.mubr.bf16.gmra.mxu0 %v3062
        %v3205 = vpop.f32.mrf.mxu0
        %v3206 = vadd.f32 %v3089, %v3205
        %v3207 = vpop.f32.mrf.mxu0
        %v3208 = vpop.f32.mrf.mxu0
        %v3209 = vadd.f32 %v3089, %v3208
        %v3210 = vpop.f32.mrf.mxu0
        %3211 = vmatprep.mubr.bf16.mxu0 0
        %3212 = vmatmul.mubr.bf16.gmra.mxu0 %v3063
        %v3213 = vpop.f32.mrf.mxu0
        %v3214 = vadd.f32 %v3089, %v3213
        %v3215 = vpop.f32.mrf.mxu0
        %v3216 = vpop.f32.mrf.mxu0
        %v3217 = vadd.f32 %v3089, %v3216
        %v3218 = vpop.f32.mrf.mxu0
        %3219 = vmatprep.mubr.bf16.mxu0 0
        %3220 = vmatmul.mubr.bf16.gmra.mxu0 %v3064
        %v3221 = vpop.f32.mrf.mxu0
        %v3222 = vadd.f32 %v3089, %v3221
        %v3223 = vpop.f32.mrf.mxu0
        %v3224 = vpop.f32.mrf.mxu0
        %v3225 = vadd.f32 %v3089, %v3224
        %v3226 = vpop.f32.mrf.mxu0
        %3227 = vmatprep.mubr.bf16.mxu0 0
        %3228 = vmatmul.mubr.bf16.gmra.mxu0 %v3065
        %v3229 = vpop.f32.mrf.mxu0
        %v3230 = vadd.f32 %v3089, %v3229
        %v3231 = vpop.f32.mrf.mxu0
        %v3232 = vpop.f32.mrf.mxu0
        %v3233 = vadd.f32 %v3089, %v3232
        %v3234 = vpop.f32.mrf.mxu0
        %3235 = vmatprep.mubr.bf16.mxu0 0
        %3236 = vmatmul.mubr.bf16.gmra.mxu0 %v3066
        %v3237 = vpop.f32.mrf.mxu0
        %v3238 = vadd.f32 %v3089, %v3237
        %v3239 = vpop.f32.mrf.mxu0
        %v3240 = vpop.f32.mrf.mxu0
        %v3241 = vadd.f32 %v3089, %v3240
        %v3242 = vpop.f32.mrf.mxu0
        %3243 = vmatprep.mubr.bf16.mxu0 0
        %3244 = vmatmul.mubr.bf16.gmra.mxu0 %v3067
        %v3245 = vpop.f32.mrf.mxu0
        %v3246 = vadd.f32 %v3089, %v3245
        %v3247 = vpop.f32.mrf.mxu0
        %v3248 = vpop.f32.mrf.mxu0
        %v3249 = vpop.f32.mrf.mxu0
        %3250 = vdwg.mxu0
        %v3251 = vmul.f32 %v3174, 0.01
        %v3252 = vmul.f32 %v3177, 0.01
        %v3253 = vmul.f32 %v3182, 0.01
        %v3254 = vmul.f32 %v3185, 0.01
        %v3255 = vmul.f32 %v3190, 0.01
        %v3256 = vmul.f32 %v3193, 0.01
        %v3257 = vmul.f32 %v3198, 0.01
        %v3258 = vmul.f32 %v3201, 0.01
        %v3259 = vmul.f32 %v3206, 0.01
        %v3260 = vmul.f32 %v3209, 0.01
        %v3261 = vmul.f32 %v3214, 0.01
        %v3262 = vmul.f32 %v3217, 0.01
        %v3263 = vmul.f32 %v3222, 0.01
        %v3264 = vmul.f32 %v3225, 0.01
        %v3265 = vmul.f32 %v3230, 0.01
        %v3266 = vmul.f32 %v3233, 0.01
        %v3267 = vmul.f32 %v3238, 0.01
        %v3268 = vmul.f32 %v3241, 0.01
        %v3269 = vmul.f32 %v3246, 0.01
        %v3270 = vmax.f32 %v3174, %v3251
        %v3271 = vmax.f32 %v3177, %v3252
        %v3272 = vmax.f32 %v3182, %v3253
        %v3273 = vmax.f32 %v3185, %v3254
        %v3274 = vmax.f32 %v3190, %v3255
        %v3275 = vmax.f32 %v3193, %v3256
        %v3276 = vmax.f32 %v3198, %v3257
        %v3277 = vmax.f32 %v3201, %v3258
        %v3278 = vmax.f32 %v3206, %v3259
        %v3279 = vmax.f32 %v3209, %v3260
        %v3280 = vmax.f32 %v3214, %v3261
        %v3281 = vmax.f32 %v3217, %v3262
        %v3282 = vmax.f32 %v3222, %v3263
        %v3283 = vmax.f32 %v3225, %v3264
        %v3284 = vmax.f32 %v3230, %v3265
        %v3285 = vmax.f32 %v3233, %v3266
        %v3286 = vmax.f32 %v3238, %v3267
        %v3287 = vmax.f32 %v3241, %v3268
        %v3288 = vmax.f32 %v3246, %v3269
        %3289 = vst [vmem:[%s578] sm:$0xff] %v3270
        %3290 = vst [vmem:[%s578 + $0x8] sm:$0xff] %v3271
        %3291 = vst [vmem:[%s578 + $0x10] sm:$0xff] %v3272
        %3292 = vst [vmem:[%s578 + $0x18] sm:$0xff] %v3273
        %3293 = vst [vmem:[%s578 + $0x20] sm:$0xff] %v3274
        %3294 = vst [vmem:[%s578 + $0x28] sm:$0xff] %v3275
        %3295 = vst [vmem:[%s578 + $0x30] sm:$0xff] %v3276
        %3296 = vst [vmem:[%s578 + $0x38] sm:$0xff] %v3277
        %3297 = vst [vmem:[%s578 + $0x40] sm:$0xff] %v3278
        %3298 = vst [vmem:[%s578 + $0x48] sm:$0xff] %v3279
        %3299 = vst [vmem:[%s578 + $0x50] sm:$0xff] %v3280
        %3300 = vst [vmem:[%s578 + $0x58] sm:$0xff] %v3281
        %3301 = vst [vmem:[%s578 + $0x60] sm:$0xff] %v3282
        %3302 = vst [vmem:[%s578 + $0x68] sm:$0xff] %v3283
        %3303 = vst [vmem:[%s578 + $0x70] sm:$0xff] %v3284
        %3304 = vst [vmem:[%s578 + $0x78] sm:$0xff] %v3285
        %3305 = vst [vmem:[%s578 + $0x80] sm:$0xff] %v3286
        %3306 = vst [vmem:[%s578 + $0x88] sm:$0xff] %v3287
        %3307 = vst [vmem:[%s578 + $0x90] sm:$0xff] %v3288
        %s3308 = smul.u32 19, %s30
        %p3309 = scmp.lt.s32.totalorder %s3308, 37
        %s3310 = scalar_select %p3309, %s3308, 37
        %s3311 = smul.addr %s3310, 8
        %s3312 = scalar_lea.vmem %s15, %s3311
        // Predicated region
        $region105: #{mlp_forward.1} parent=79 // pred_check
          %p3313 = pneg %p368
        $region106: #{mlp_forward.1} parent=79 // pred_check_branch
          %3315 = sbr.rel (%p3313) target = $region108
        $region107: #{mlp_forward.1} parent=79 // pred_region
          %s3316 = smul.u32 19, %s30
        $region108: #{mlp_forward.1} parent=79 // pred_fallthru
          _
      $region80: #{mlp_forward.1} parent=5 // pred_fallthru
        _
      %p3317 = scmp.le.s32.totalorder 2, %s25
      // Predicated region
      $region109: #{mlp_forward.1} parent=5 // pred_check
        %p3318 = pneg %p3317
      $region110: #{mlp_forward.1} parent=5 // pred_check_branch
        %3320 = sbr.rel (%p3318) target = $region112
      $region111: #{mlp_forward.1} parent=5 // pred_region
        %s3321 = ssub.s32 %s25, 2
        // Predicated region
        $region113: #{mlp_forward.1} parent=111 // pred_check
          %p3322 = pneg %p374
        $region114: #{mlp_forward.1} parent=111 // pred_check_branch
          %3324 = sbr.rel (%p3322) target = $region116
        $region115: #{mlp_forward.1} parent=111 // pred_region
          %s3325 = smul.u32 19, %s31
          %p3326 = scmp.lt.s32.totalorder %s3325, 37
          %s3327 = scalar_select %p3326, %s3325, 37
          %s3328 = smul.addr %s3327, 8
          %s3329 = scalar_lea.vmem %s15, %s3328
        $region116: #{mlp_forward.1} parent=111 // pred_fallthru
          _
      $region112: #{mlp_forward.1} parent=5 // pred_fallthru
        _
    $region6: #{mlp_forward.1} parent=1 // loop_footer
      %s29 = sadd.s32 1, %s25
    $region7: #{mlp_forward.1} parent=1 // loop_footer_branch
      %24 = sbr.rel target = $region3
    $region8: #{mlp_forward.1} parent=1 // loop_exit
      _
    %3330 = vsyncpa [#allocation3], 1
    %s3331 = scalar_lea.sflag [#allocation3], 1
    %3332 = vsyncpa %s3331, 1
    %3333 = vsyncpa [#allocation5], 1
    %3334 = vsyncpa [#allocation8], 1
    %3335 = vsyncpa [#allocation11], 1

</llo_original>
